<compile_context>
chip_gen: v5e
topology: v5e:2x2
jax: 0.10.0
libtpu: 0.0.40
codegen_flags: <defaults>
</compile_context>

<pallas_src>
import numpy as np
import jax
import jax.numpy as jnp
from jax.experimental import pallas as pl
from jax.experimental.pallas import tpu as pltpu

# ----------------------------- configuration --------------------------------
INPUT_CHANNELS = 3
WIDTH = 8
NUM_STACKS = 2
NUM_MODULES_PER_STACK = 1
NUM_CLASSES = 10
BN_EPS = 1e-5
CPAD = 8            # per-vertex channel blocks are padded to 8 sublanes
NEG_BIG = -1e30     # additive "-inf" used for maxpool boundary padding

MATRIX = np.array(
    [[0, 1, 1, 1, 0, 1, 0],
     [0, 0, 0, 0, 0, 0, 1],
     [0, 0, 0, 0, 0, 0, 1],
     [0, 0, 0, 0, 1, 0, 0],
     [0, 0, 0, 0, 0, 0, 1],
     [0, 0, 0, 0, 0, 0, 1],
     [0, 0, 0, 0, 0, 0, 0]], dtype=np.int32)
OPS = ['input', 'conv3x3-bn-relu', 'conv1x1-bn-relu', 'conv3x3-bn-relu',
       'conv3x3-bn-relu', 'maxpool3x3', 'output']


# ------------------------ NAS-Bench channel arithmetic -----------------------
def compute_vertex_channels(input_channels, output_channels, matrix):
    num_vertices = np.shape(matrix)[0]
    vertex_channels = [0] * num_vertices
    vertex_channels[0] = input_channels
    vertex_channels[num_vertices - 1] = output_channels
    if num_vertices == 2:
        return vertex_channels
    in_degree = np.sum(matrix[1:], axis=0)
    interior_channels = output_channels // in_degree[num_vertices - 1]
    correction = output_channels % in_degree[num_vertices - 1]
    for v in range(1, num_vertices - 1):
        if matrix[v, num_vertices - 1]:
            vertex_channels[v] = interior_channels
            if correction:
                vertex_channels[v] += 1
                correction -= 1
    for v in range(num_vertices - 3, 0, -1):
        if not matrix[v, num_vertices - 1]:
            for dst in range(v + 1, num_vertices - 1):
                if matrix[v, dst]:
                    vertex_channels[v] = max(vertex_channels[v], vertex_channels[dst])
        assert vertex_channels[v] > 0
    final_fan_in = 0
    for v in range(1, num_vertices - 1):
        if matrix[v, num_vertices - 1]:
            final_fan_in += vertex_channels[v]
        for dst in range(v + 1, num_vertices - 1):
            if matrix[v, dst]:
                assert vertex_channels[v] >= vertex_channels[dst]
    assert final_fan_in == output_channels or num_vertices == 2
    return [int(c) for c in vertex_channels]


# ----------------------------- host-side packing ------------------------------
def _round8(n):
    return ((n + 7) // 8) * 8


class _RowPacker:
    """Packs 8-row-aligned blocks into one contiguous 2-D f32 blob."""

    def __init__(self, width):
        self.width = width
        self.blocks = []
        self.off = 0

    def add(self, blk):
        blk = np.asarray(blk, np.float32)
        assert blk.ndim == 2 and blk.shape[1] == self.width
        assert blk.shape[0] % 8 == 0
        off = self.off
        self.blocks.append(blk)
        self.off += blk.shape[0]
        return off

    def finalize(self):
        if not self.blocks:
            return np.zeros((8, self.width), np.float32)
        return np.concatenate(self.blocks, axis=0)


# TODO(synk): BatchNorm is folded with inference-mode statistics
# (running_mean=0, running_var=1); training-mode batch statistics are not
# computed in-kernel.
def _init_conv_bn(rng, k, cin, cout):
    w = rng.standard_normal((cout, cin, k, k)).astype(np.float32) / np.sqrt(k * k * cin)
    gamma = (1.0 + 0.1 * rng.standard_normal(cout)).astype(np.float32)
    beta = (0.1 * rng.standard_normal(cout)).astype(np.float32)
    scale = gamma / np.sqrt(1.0 + BN_EPS)
    bias = beta
    return (w * scale[:, None, None, None]).astype(np.float32), bias.astype(np.float32)


def _pack_conv3(w, out_rows, row_off):
    """(cout,cin,3,3) -> (out_rows, 9*CPAD) im2col-packed, BN-scale folded."""
    cout, cin = w.shape[:2]
    blk = np.zeros((out_rows, 9 * CPAD), np.float32)
    for dy in range(3):
        for dx in range(3):
            tap = dy * 3 + dx
            blk[row_off:row_off + cout, tap * CPAD:tap * CPAD + cin] = w[:, :, dy, dx]
    return blk


def _pack_conv1(w, out_rows, row_off):
    cout, cin = w.shape[:2]
    blk = np.zeros((out_rows, CPAD), np.float32)
    blk[row_off:row_off + cout, :cin] = w[:, :, 0, 0]
    return blk


def _pack_bias(b, out_rows, row_off):
    blk = np.zeros((out_rows, 1), np.float32)
    blk[row_off:row_off + b.shape[0], 0] = b
    return blk


def _placement(out_c, c, off):
    p = np.zeros((_round8(out_c), CPAD), np.float32)
    for j in range(c):
        p[off + j, j] = 1.0
    return p


def _build_masks(N, H, W):
    """(2, 16, NHW): [0]=multiplicative 0/1 conv masks, [1]=additive 0/-BIG."""
    NHW = N * H * W
    mult = np.zeros((16, NHW), np.float32)
    addm = np.zeros((16, NHW), np.float32)
    for dy in range(3):
        for dx in range(3):
            vh = (np.arange(H) + dy - 1 >= 0) & (np.arange(H) + dy - 1 < H)
            vw = (np.arange(W) + dx - 1 >= 0) & (np.arange(W) + dx - 1 < W)
            valid = np.tile(np.outer(vh, vw).reshape(1, H * W), (N, 1)).reshape(NHW)
            idx = dy * 3 + dx
            mult[idx] = valid.astype(np.float32)
            addm[idx] = np.where(valid, 0.0, NEG_BIG).astype(np.float32)
    return np.stack([mult, addm], axis=0)


def _build_ds_sel(N, H, W):
    """(NHW_in, NHW_out) selection: top-left of each 2x2 block (stride-2 pool)."""
    Ho, Wo = H // 2, W // 2
    sel = np.zeros((N * H * W, N * Ho * Wo), np.float32)
    for n in range(N):
        for ho in range(Ho):
            for wo in range(Wo):
                sel[n * H * W + 2 * ho * W + 2 * wo, n * Ho * Wo + ho * Wo + wo] = 1.0
    return sel


def _build_gap(N, H, W):
    g = np.zeros((N * H * W, N), np.float32)
    for n in range(N):
        g[n * H * W:(n + 1) * H * W, n] = 1.0 / float(H * W)
    return g


def _build_cell(rng, pk, in_c, out_c, matrix, ops):
    nv = matrix.shape[0]
    vc = compute_vertex_channels(in_c, out_c, matrix)
    assert in_c <= CPAD and max(vc[1:nv - 1]) <= CPAD
    # TODO(synk): wider cells (in_c or interior channels > 8) need a larger CPAD.

    plan = {'out_c': out_c, 'proj': None, 'out_proj': None, 'vertices': []}

    # final torch.cat order / offsets
    offsets = {}
    off = 0
    for t in range(1, nv - 1):
        if matrix[t, nv - 1]:
            offsets[t] = off
            off += vc[t]

    # fused 1x1 input projections (one matmul for all interior projections)
    proj_ts = [t for t in range(1, nv - 1) if matrix[0, t]]
    if proj_ts:
        rows = CPAD * len(proj_ts)
        wblk = np.zeros((rows, CPAD), np.float32)
        bblk = np.zeros((rows, 1), np.float32)
        slots = {}
        for j, t in enumerate(proj_ts):
            w, b = _init_conv_bn(rng, 1, in_c, vc[t])
            wblk[CPAD * j:CPAD * j + vc[t], :in_c] = w[:, :, 0, 0]
            bblk[CPAD * j:CPAD * j + vc[t], 0] = b
            slots[t] = j
        plan['proj'] = {'w_off': pk['w8'].add(wblk), 'rows': rows,
                        'b_off': pk['bias'].add(bblk), 'slots': slots}

    for t in range(1, nv - 1):
        srcs = []
        for src in range(1, t):
            if matrix[src, t]:
                # TODO(synk): generic truncate(inputs, channels) not needed for
                # this MATRIX (equal channels); would need a row mask otherwise.
                assert vc[src] == vc[t]
                srcs.append(('vertex', src))
        if matrix[0, t]:
            srcs.append(('proj', t))
        to_out = bool(matrix[t, nv - 1])
        feeds_int = any(matrix[t, d] for d in range(t + 1, nv - 1))
        v = {'t': t, 'srcs': srcs, 'to_out': to_out}
        op = ops[t]
        if op == 'maxpool3x3':
            v['op'] = 'maxpool'
            if to_out:
                v['place_off'] = pk['w8'].add(_placement(out_c, vc[t], offsets[t]))
        elif op in ('conv3x3-bn-relu', 'conv1x1-bn-relu'):
            k = 3 if op == 'conv3x3-bn-relu' else 1
            w, b = _init_conv_bn(rng, k, vc[t], vc[t])
            pad_to_out = to_out and not feeds_int
            out_rows = _round8(out_c) if pad_to_out else CPAD
            roff = offsets[t] if pad_to_out else 0
            if k == 3:
                v['op'] = 'conv3'
                v['w_off'] = pk['w72'].add(_pack_conv3(w, out_rows, roff))
            else:
                v['op'] = 'conv1'
                v['w_off'] = pk['w8'].add(_pack_conv1(w, out_rows, roff))
            v['b_off'] = pk['bias'].add(_pack_bias(b, out_rows, roff))
            v['out_rows'] = out_rows
            v['padded_to_out'] = pad_to_out
            if to_out and not pad_to_out:
                v['place_off'] = pk['w8'].add(_placement(out_c, vc[t], offsets[t]))
        else:
            raise ValueError(op)
        plan['vertices'].append(v)

    if matrix[0, nv - 1]:
        w, b = _init_conv_bn(rng, 1, in_c, out_c)
        rows = _round8(out_c)
        plan['out_proj'] = {'w_off': pk['w8'].add(_pack_conv1(w, rows, 0)),
                            'rows': rows,
                            'b_off': pk['bias'].add(_pack_bias(b, rows, 0))}
    return plan


def build_model(seed, N, H, W):
    rng = np.random.default_rng(seed)
    pk = {'w72': _RowPacker(9 * CPAD), 'w8': _RowPacker(CPAD), 'bias': _RowPacker(1)}
    plan = {'layers': [], 'cells': []}

    # CIFAR stem: Conv3x3BnRelu(INPUT_CHANNELS -> WIDTH)
    w, b = _init_conv_bn(rng, 3, INPUT_CHANNELS, WIDTH)
    stem_rows = _round8(WIDTH)
    plan['stem'] = {'w_off': pk['w72'].add(_pack_conv3(w, stem_rows, 0)),
                    'out_rows': stem_rows,
                    'b_off': pk['bias'].add(_pack_bias(b, stem_rows, 0))}

    in_c = out_c = WIDTH
    h, wd = H, W
    resolutions = [(h, wd)]
    ds_sels = []
    for stack in range(NUM_STACKS):
        if stack > 0:
            ds_sels.append(_build_ds_sel(N, h, wd))
            plan['layers'].append({'kind': 'down', 'idx': len(ds_sels) - 1})
            h //= 2
            wd //= 2
            out_c *= 2
            resolutions.append((h, wd))
        for _ in range(NUM_MODULES_PER_STACK):
            cp = _build_cell(rng, pk, in_c, out_c, MATRIX, OPS)
            plan['cells'].append(cp)
            plan['layers'].append({'kind': 'cell', 'idx': len(plan['cells']) - 1})
            in_c = out_c

    # classifier: GAP + Linear(out_c -> NUM_CLASSES), rows padded to 16
    cls_rows = _round8(NUM_CLASSES)
    wc = rng.standard_normal((NUM_CLASSES, out_c)).astype(np.float32) / np.sqrt(out_c)
    bc = (0.01 * rng.standard_normal(NUM_CLASSES)).astype(np.float32)
    wcls = np.zeros((cls_rows, out_c), np.float32)
    wcls[:NUM_CLASSES] = wc
    plan['cls'] = {'rows': cls_rows, 'b_off': pk['bias'].add(_pack_bias(bc, cls_rows, 0))}
    plan['widths'] = [w_ for (_, w_) in resolutions]

    return {
        'w72': jnp.asarray(pk['w72'].finalize()),
        'w8': jnp.asarray(pk['w8'].finalize()),
        'wcls': jnp.asarray(wcls),
        'bias': jnp.asarray(pk['bias'].finalize()),
        'masks': [jnp.asarray(_build_masks(N, hh, ww)) for (hh, ww) in resolutions],
        'ds_sel': [jnp.asarray(s) for s in ds_sels],
        'gap': jnp.asarray(_build_gap(N, h, wd)),
        'plan': plan,
    }


# --------------------------------- the kernel ---------------------------------
def _make_kernel(plan, n_res, n_ds):
    widths = plan['widths']

    def kernel(*refs):
        x_ref, w72, w8, wcls, bias = refs[0:5]
        mask_refs = refs[5:5 + n_res]
        ds_refs = refs[5 + n_res:5 + n_res + n_ds]
        gap_ref = refs[5 + n_res + n_ds]
        o_ref = refs[5 + n_res + n_ds + 1]

        def lane_roll(a, s):                      # XLU rotation, np.roll(a, -s) semantics
            n = a.shape[1]
            return pltpu.roll(a, (-s) % n, axis=1)

        def im2col9(xp, mult, wd):
            taps = []
            for dy in range(3):
                for dx in range(3):
                    s = (dy - 1) * wd + (dx - 1)
                    xs = xp if s == 0 else lane_roll(xp, s)
                    if not (dy == 1 and dx == 1):
                        xs = xs * mult[dy * 3 + dx:dy * 3 + dx + 1, :]
                    taps.append(xs)
            return jnp.concatenate(taps, axis=0)   # (9*CPAD, NHW)

        def conv3(xp, w_off, rows, b_off, mult, wd):
            patches = im2col9(xp, mult, wd)
            acc = jnp.dot(w72[w_off:w_off + rows, :], patches,
                          preferred_element_type=jnp.float32)
            return jnp.maximum(acc + bias[b_off:b_off + rows, :], 0.0)

        def conv1(xp, w_off, rows, b_off):
            acc = jnp.dot(w8[w_off:w_off + rows, :], xp,
                          preferred_element_type=jnp.float32)
            return jnp.maximum(acc + bias[b_off:b_off + rows, :], 0.0)

        def maxpool3x3(xp, addm, wd):
            out = xp                               # center tap, always valid
            for dy in range(3):
                for dx in range(3):
                    if dy == 1 and dx == 1:
                        continue
                    s = (dy - 1) * wd + (dx - 1)
                    xs = lane_roll(xp, s) + addm[dy * 3 + dx:dy * 3 + dx + 1, :]
                    out = jnp.maximum(out, xs)
            return out

        def maxpool2x2(xp, sel, wd):
            m = jnp.maximum(xp, lane_roll(xp, 1))
            m = jnp.maximum(m, lane_roll(xp, wd))
            m = jnp.maximum(m, lane_roll(xp, wd + 1))
            return jnp.dot(m, sel, preferred_element_type=jnp.float32)

        def cell(cp, xp, mult, addm, wd):
            pr = cp['proj']
            proj_all = None
            if pr is not None:                     # fused 1x1 input projections
                proj_all = conv1(xp, pr['w_off'], pr['rows'], pr['b_off'])
            vert = {}
            out_acc = None
            for v in cp['vertices']:
                terms = []
                for kind, s in v['srcs']:
                    if kind == 'proj':
                        j = pr['slots'][s]
                        terms.append(proj_all[CPAD * j:CPAD * (j + 1), :])
                    else:
                        terms.append(vert[s])
                vin = terms[0]
                for extra in terms[1:]:
                    vin = vin + extra
                if v['op'] == 'maxpool':
                    vout = maxpool3x3(vin, addm, wd)
                elif v['op'] == 'conv3':
                    vout = conv3(vin, v['w_off'], v['out_rows'], v['b_off'], mult, wd)
                else:
                    vout = conv1(vin, v['w_off'], v['out_rows'], v['b_off'])
                if v.get('padded_to_out', False):
                    # weights already placed at the concat offset -> just add
                    out_acc = vout if out_acc is None else out_acc + vout
                else:
                    vert[v['t']] = vout
                    if v['to_out']:
                        rows = _round8(cp['out_c'])
                        p = w8[v['place_off']:v['place_off'] + rows, :]
                        contrib = jnp.dot(p, vout, preferred_element_type=jnp.float32)
                        out_acc = contrib if out_acc is None else out_acc + contrib
            if cp['out_proj'] is not None:
                op_ = cp['out_proj']
                pout = conv1(xp, op_['w_off'], op_['rows'], op_['b_off'])
                out_acc = pout if out_acc is None else out_acc + pout
            return out_acc

        # ---- network: stem -> [cell | down]* -> GAP + linear ----
        res = 0
        wd = widths[0]
        mm = mask_refs[0][...]
        mult, addm = mm[0], mm[1]
        x = conv3(x_ref[...], plan['stem']['w_off'], plan['stem']['out_rows'],
                  plan['stem']['b_off'], mult, wd)
        for layer in plan['layers']:
            if layer['kind'] == 'down':
                x = maxpool2x2(x, ds_refs[layer['idx']][...], wd)
                res += 1
                wd = widths[res]
                mm = mask_refs[res][...]
                mult, addm = mm[0], mm[1]
            else:
                x = cell(plan['cells'][layer['idx']], x, mult, addm, wd)

        pooled = jnp.dot(x, gap_ref[...], preferred_element_type=jnp.float32)   # (Cf, N)
        cls = plan['cls']
        logits = jnp.dot(wcls[...], pooled, preferred_element_type=jnp.float32)
        o_ref[...] = logits + bias[cls['b_off']:cls['b_off'] + cls['rows'], :]

    return kernel


# ------------------------------- forward wrapper ------------------------------
def nas_bench_forward(params, x_nchw):
    # Preprocess() in the PyTorch pycls NAS-Bench code is an identity op.
    plan = params['plan']
    N, C, H, W = x_nchw.shape
    NHW = N * H * W
    # NCHW -> (C, N*H*W): channels on sublanes, batch*spatial lane-dense.
    x_flat = jnp.transpose(x_nchw, (1, 0, 2, 3)).reshape(C, NHW)
    if C < CPAD:
        x_flat = jnp.concatenate(
            [x_flat, jnp.zeros((CPAD - C, NHW), jnp.float32)], axis=0)

    n_res = len(params['masks'])
    n_ds = len(params['ds_sel'])
    kernel = _make_kernel(plan, n_res, n_ds)
    operands = [x_flat, params['w72'], params['w8'], params['wcls'], params['bias'],
                *params['masks'], *params['ds_sel'], params['gap']]

    logits_p = pl.pallas_call(
        kernel,
        out_shape=jax.ShapeDtypeStruct((plan['cls']['rows'], N), jnp.float32),
    )(*operands)
    return jnp.transpose(logits_p)[:, :NUM_CLASSES]       # (N, NUM_CLASSES)


# ----------------------------------- main -------------------------------------
if __name__ == "__main__":
    N, H, W = 2, 16, 16
    key = jax.random.PRNGKey(0)
    x = jax.random.normal(key, (N, INPUT_CHANNELS, H, W), jnp.float32)   # NCHW
    params = build_model(0, N, H, W)

    fwd = jax.jit(lambda inp: nas_bench_forward(params, inp))
    out = jax.block_until_ready(fwd(x))

    assert out.shape == (N, NUM_CLASSES), out.shape
    assert bool(jnp.all(jnp.isfinite(out)))
    print("KERNEL_OK")
</pallas_src>

<mosaic_0001>
module attributes {stable_mosaic.version = 11 : i64} {
  func.func @kernel(%arg0: memref<8x512xf32, #tpu.memory_space<vmem>>, %arg1: memref<72x72xf32, #tpu.memory_space<vmem>>, %arg2: memref<112x8xf32, #tpu.memory_space<vmem>>, %arg3: memref<16x16xf32, #tpu.memory_space<vmem>>, %arg4: memref<176x1xf32, #tpu.memory_space<vmem>>, %arg5: memref<2x16x512xf32, #tpu.memory_space<vmem>>, %arg6: memref<2x16x128xf32, #tpu.memory_space<vmem>>, %arg7: memref<512x128xf32, #tpu.memory_space<vmem>>, %arg8: memref<128x2xf32, #tpu.memory_space<vmem>>, %arg9: memref<16x2xf32, #tpu.memory_space<vmem>>) attributes {dimension_semantics = [], scalar_prefetch = 0 : i64, scratch_operands = 0 : i64, tpu.core_type = #tpu.core_type<tc>} {
    %c0 = arith.constant 0 : index
    %c0_0 = arith.constant 0 : index
    %c0_1 = arith.constant 0 : index
    %0 = vector.load %arg5[%c0, %c0_0, %c0_1] : memref<2x16x512xf32, #tpu.memory_space<vmem>>, vector<2x16x512xf32>
    %1 = vector.extract_strided_slice %0 {offsets = [0, 0, 0], sizes = [1, 16, 512], strides = [1, 1, 1]} : vector<2x16x512xf32> to vector<1x16x512xf32>
    %2 = vector.shape_cast %1 : vector<1x16x512xf32> to vector<16x512xf32>
    %3 = vector.extract_strided_slice %0 {offsets = [1, 0, 0], sizes = [1, 16, 512], strides = [1, 1, 1]} : vector<2x16x512xf32> to vector<1x16x512xf32>
    %4 = vector.shape_cast %3 : vector<1x16x512xf32> to vector<16x512xf32>
    %c0_2 = arith.constant 0 : index
    %c0_3 = arith.constant 0 : index
    %5 = vector.load %arg0[%c0_2, %c0_3] : memref<8x512xf32, #tpu.memory_space<vmem>>, vector<8x512xf32>
    %c17_i32 = arith.constant 17 : i32
    %6 = tpu.dynamic_rotate %5 by %c17_i32 dim 1 : vector<8x512xf32>, i32 -> vector<8x512xf32>
    %7 = vector.extract_strided_slice %2 {offsets = [0, 0], sizes = [1, 512], strides = [1, 1]} : vector<16x512xf32> to vector<1x512xf32>
    %8 = vector.broadcast %7 : vector<1x512xf32> to vector<8x512xf32>
    %9 = arith.mulf %6, %8 : vector<8x512xf32>
    %c16_i32 = arith.constant 16 : i32
    %10 = tpu.dynamic_rotate %5 by %c16_i32 dim 1 : vector<8x512xf32>, i32 -> vector<8x512xf32>
    %11 = vector.extract_strided_slice %2 {offsets = [1, 0], sizes = [1, 512], strides = [1, 1]} : vector<16x512xf32> to vector<1x512xf32>
    %12 = vector.broadcast %11 : vector<1x512xf32> to vector<8x512xf32>
    %13 = arith.mulf %10, %12 : vector<8x512xf32>
    %c15_i32 = arith.constant 15 : i32
    %14 = tpu.dynamic_rotate %5 by %c15_i32 dim 1 : vector<8x512xf32>, i32 -> vector<8x512xf32>
    %15 = vector.extract_strided_slice %2 {offsets = [2, 0], sizes = [1, 512], strides = [1, 1]} : vector<16x512xf32> to vector<1x512xf32>
    %16 = vector.broadcast %15 : vector<1x512xf32> to vector<8x512xf32>
    %17 = arith.mulf %14, %16 : vector<8x512xf32>
    %c1_i32 = arith.constant 1 : i32
    %18 = tpu.dynamic_rotate %5 by %c1_i32 dim 1 : vector<8x512xf32>, i32 -> vector<8x512xf32>
    %19 = vector.extract_strided_slice %2 {offsets = [3, 0], sizes = [1, 512], strides = [1, 1]} : vector<16x512xf32> to vector<1x512xf32>
    %20 = vector.broadcast %19 : vector<1x512xf32> to vector<8x512xf32>
    %21 = arith.mulf %18, %20 : vector<8x512xf32>
    %c511_i32 = arith.constant 511 : i32
    %22 = tpu.dynamic_rotate %5 by %c511_i32 dim 1 : vector<8x512xf32>, i32 -> vector<8x512xf32>
    %23 = vector.extract_strided_slice %2 {offsets = [5, 0], sizes = [1, 512], strides = [1, 1]} : vector<16x512xf32> to vector<1x512xf32>
    %24 = vector.broadcast %23 : vector<1x512xf32> to vector<8x512xf32>
    %25 = arith.mulf %22, %24 : vector<8x512xf32>
    %c497_i32 = arith.constant 497 : i32
    %26 = tpu.dynamic_rotate %5 by %c497_i32 dim 1 : vector<8x512xf32>, i32 -> vector<8x512xf32>
    %27 = vector.extract_strided_slice %2 {offsets = [6, 0], sizes = [1, 512], strides = [1, 1]} : vector<16x512xf32> to vector<1x512xf32>
    %28 = vector.broadcast %27 : vector<1x512xf32> to vector<8x512xf32>
    %29 = arith.mulf %26, %28 : vector<8x512xf32>
    %c496_i32 = arith.constant 496 : i32
    %30 = tpu.dynamic_rotate %5 by %c496_i32 dim 1 : vector<8x512xf32>, i32 -> vector<8x512xf32>
    %31 = vector.extract_strided_slice %2 {offsets = [7, 0], sizes = [1, 512], strides = [1, 1]} : vector<16x512xf32> to vector<1x512xf32>
    %32 = vector.broadcast %31 : vector<1x512xf32> to vector<8x512xf32>
    %33 = arith.mulf %30, %32 : vector<8x512xf32>
    %c495_i32 = arith.constant 495 : i32
    %34 = tpu.dynamic_rotate %5 by %c495_i32 dim 1 : vector<8x512xf32>, i32 -> vector<8x512xf32>
    %35 = vector.extract_strided_slice %2 {offsets = [8, 0], sizes = [1, 512], strides = [1, 1]} : vector<16x512xf32> to vector<1x512xf32>
    %36 = vector.broadcast %35 : vector<1x512xf32> to vector<8x512xf32>
    %37 = arith.mulf %34, %36 : vector<8x512xf32>
    %38 = tpu.concatenate %9, %13, %17, %21, %5, %25, %29, %33, %37 in 0 : vector<8x512xf32>, vector<8x512xf32>, vector<8x512xf32>, vector<8x512xf32>, vector<8x512xf32>, vector<8x512xf32>, vector<8x512xf32>, vector<8x512xf32>, vector<8x512xf32> -> vector<72x512xf32>
    %c0_4 = arith.constant 0 : index
    %c0_5 = arith.constant 0 : index
    %39 = vector.load %arg1[%c0_4, %c0_5] : memref<72x72xf32, #tpu.memory_space<vmem>>, vector<8x72xf32>
    %cst = arith.constant dense<0.000000e+00> : vector<8x512xf32>
    %40 = tpu.matmul %39, %38, %cst {dimension_numbers = #tpu.dot_dimension_numbers<[1], [0], [0], [1], [0, 0, 1, 1], [], []>} : vector<8x72xf32>, vector<72x512xf32>, vector<8x512xf32> -> vector<8x512xf32>
    %c0_6 = arith.constant 0 : index
    %c0_7 = arith.constant 0 : index
    %41 = vector.load %arg4[%c0_6, %c0_7] : memref<176x1xf32, #tpu.memory_space<vmem>>, vector<8x1xf32>
    %42 = vector.broadcast %41 : vector<8x1xf32> to vector<8x512xf32>
    %43 = arith.addf %40, %42 : vector<8x512xf32>
    %cst_8 = arith.constant 0.000000e+00 : f32
    %44 = vector.broadcast %cst_8 : f32 to vector<8x512xf32>
    %45 = arith.maximumf %43, %44 : vector<8x512xf32>
    %c0_9 = arith.constant 0 : index
    %c0_10 = arith.constant 0 : index
    %46 = vector.load %arg2[%c0_9, %c0_10] : memref<112x8xf32, #tpu.memory_space<vmem>>, vector<32x8xf32>
    %cst_11 = arith.constant dense<0.000000e+00> : vector<32x512xf32>
    %47 = tpu.matmul %46, %45, %cst_11 {dimension_numbers = #tpu.dot_dimension_numbers<[1], [0], [0], [1], [0, 0, 1, 1], [], []>} : vector<32x8xf32>, vector<8x512xf32>, vector<32x512xf32> -> vector<32x512xf32>
    %c8 = arith.constant 8 : index
    %c0_12 = arith.constant 0 : index
    %48 = vector.load %arg4[%c8, %c0_12] : memref<176x1xf32, #tpu.memory_space<vmem>>, vector<32x1xf32>
    %49 = vector.broadcast %48 : vector<32x1xf32> to vector<32x512xf32>
    %50 = arith.addf %47, %49 : vector<32x512xf32>
    %cst_13 = arith.constant 0.000000e+00 : f32
    %51 = vector.broadcast %cst_13 : f32 to vector<32x512xf32>
    %52 = arith.maximumf %50, %51 : vector<32x512xf32>
    %53 = vector.extract_strided_slice %52 {offsets = [0, 0], sizes = [8, 512], strides = [1, 1]} : vector<32x512xf32> to vector<8x512xf32>
    %c17_i32_14 = arith.constant 17 : i32
    %54 = tpu.dynamic_rotate %53 by %c17_i32_14 dim 1 : vector<8x512xf32>, i32 -> vector<8x512xf32>
    %55 = vector.extract_strided_slice %2 {offsets = [0, 0], sizes = [1, 512], strides = [1, 1]} : vector<16x512xf32> to vector<1x512xf32>
    %56 = vector.broadcast %55 : vector<1x512xf32> to vector<8x512xf32>
    %57 = arith.mulf %54, %56 : vector<8x512xf32>
    %c16_i32_15 = arith.constant 16 : i32
    %58 = tpu.dynamic_rotate %53 by %c16_i32_15 dim 1 : vector<8x512xf32>, i32 -> vector<8x512xf32>
    %59 = vector.extract_strided_slice %2 {offsets = [1, 0], sizes = [1, 512], strides = [1, 1]} : vector<16x512xf32> to vector<1x512xf32>
    %60 = vector.broadcast %59 : vector<1x512xf32> to vector<8x512xf32>
    %61 = arith.mulf %58, %60 : vector<8x512xf32>
    %c15_i32_16 = arith.constant 15 : i32
    %62 = tpu.dynamic_rotate %53 by %c15_i32_16 dim 1 : vector<8x512xf32>, i32 -> vector<8x512xf32>
    %63 = vector.extract_strided_slice %2 {offsets = [2, 0], sizes = [1, 512], strides = [1, 1]} : vector<16x512xf32> to vector<1x512xf32>
    %64 = vector.broadcast %63 : vector<1x512xf32> to vector<8x512xf32>
    %65 = arith.mulf %62, %64 : vector<8x512xf32>
    %c1_i32_17 = arith.constant 1 : i32
    %66 = tpu.dynamic_rotate %53 by %c1_i32_17 dim 1 : vector<8x512xf32>, i32 -> vector<8x512xf32>
    %67 = vector.extract_strided_slice %2 {offsets = [3, 0], sizes = [1, 512], strides = [1, 1]} : vector<16x512xf32> to vector<1x512xf32>
    %68 = vector.broadcast %67 : vector<1x512xf32> to vector<8x512xf32>
    %69 = arith.mulf %66, %68 : vector<8x512xf32>
    %c511_i32_18 = arith.constant 511 : i32
    %70 = tpu.dynamic_rotate %53 by %c511_i32_18 dim 1 : vector<8x512xf32>, i32 -> vector<8x512xf32>
    %71 = vector.extract_strided_slice %2 {offsets = [5, 0], sizes = [1, 512], strides = [1, 1]} : vector<16x512xf32> to vector<1x512xf32>
    %72 = vector.broadcast %71 : vector<1x512xf32> to vector<8x512xf32>
    %73 = arith.mulf %70, %72 : vector<8x512xf32>
    %c497_i32_19 = arith.constant 497 : i32
    %74 = tpu.dynamic_rotate %53 by %c497_i32_19 dim 1 : vector<8x512xf32>, i32 -> vector<8x512xf32>
    %75 = vector.extract_strided_slice %2 {offsets = [6, 0], sizes = [1, 512], strides = [1, 1]} : vector<16x512xf32> to vector<1x512xf32>
    %76 = vector.broadcast %75 : vector<1x512xf32> to vector<8x512xf32>
    %77 = arith.mulf %74, %76 : vector<8x512xf32>
    %c496_i32_20 = arith.constant 496 : i32
    %78 = tpu.dynamic_rotate %53 by %c496_i32_20 dim 1 : vector<8x512xf32>, i32 -> vector<8x512xf32>
    %79 = vector.extract_strided_slice %2 {offsets = [7, 0], sizes = [1, 512], strides = [1, 1]} : vector<16x512xf32> to vector<1x512xf32>
    %80 = vector.broadcast %79 : vector<1x512xf32> to vector<8x512xf32>
    %81 = arith.mulf %78, %80 : vector<8x512xf32>
    %c495_i32_21 = arith.constant 495 : i32
    %82 = tpu.dynamic_rotate %53 by %c495_i32_21 dim 1 : vector<8x512xf32>, i32 -> vector<8x512xf32>
    %83 = vector.extract_strided_slice %2 {offsets = [8, 0], sizes = [1, 512], strides = [1, 1]} : vector<16x512xf32> to vector<1x512xf32>
    %84 = vector.broadcast %83 : vector<1x512xf32> to vector<8x512xf32>
    %85 = arith.mulf %82, %84 : vector<8x512xf32>
    %86 = tpu.concatenate %57, %61, %65, %69, %53, %73, %77, %81, %85 in 0 : vector<8x512xf32>, vector<8x512xf32>, vector<8x512xf32>, vector<8x512xf32>, vector<8x512xf32>, vector<8x512xf32>, vector<8x512xf32>, vector<8x512xf32>, vector<8x512xf32> -> vector<72x512xf32>
    %c8_22 = arith.constant 8 : index
    %c0_23 = arith.constant 0 : index
    %87 = vector.load %arg1[%c8_22, %c0_23] : memref<72x72xf32, #tpu.memory_space<vmem>>, vector<8x72xf32>
    %cst_24 = arith.constant dense<0.000000e+00> : vector<8x512xf32>
    %88 = tpu.matmul %87, %86, %cst_24 {dimension_numbers = #tpu.dot_dimension_numbers<[1], [0], [0], [1], [0, 0, 1, 1], [], []>} : vector<8x72xf32>, vector<72x512xf32>, vector<8x512xf32> -> vector<8x512xf32>
    %c40 = arith.constant 40 : index
    %c0_25 = arith.constant 0 : index
    %89 = vector.load %arg4[%c40, %c0_25] : memref<176x1xf32, #tpu.memory_space<vmem>>, vector<8x1xf32>
    %90 = vector.broadcast %89 : vector<8x1xf32> to vector<8x512xf32>
    %91 = arith.addf %88, %90 : vector<8x512xf32>
    %cst_26 = arith.constant 0.000000e+00 : f32
    %92 = vector.broadcast %cst_26 : f32 to vector<8x512xf32>
    %93 = arith.maximumf %91, %92 : vector<8x512xf32>
    %94 = vector.extract_strided_slice %52 {offsets = [8, 0], sizes = [8, 512], strides = [1, 1]} : vector<32x512xf32> to vector<8x512xf32>
    %c32 = arith.constant 32 : index
    %c0_27 = arith.constant 0 : index
    %95 = vector.load %arg2[%c32, %c0_27] : memref<112x8xf32, #tpu.memory_space<vmem>>, vector<8x8xf32>
    %cst_28 = arith.constant dense<0.000000e+00> : vector<8x512xf32>
    %96 = tpu.matmul %95, %94, %cst_28 {dimension_numbers = #tpu.dot_dimension_numbers<[1], [0], [0], [1], [0, 0, 1, 1], [], []>} : vector<8x8xf32>, vector<8x512xf32>, vector<8x512xf32> -> vector<8x512xf32>
    %c48 = arith.constant 48 : index
    %c0_29 = arith.constant 0 : index
    %97 = vector.load %arg4[%c48, %c0_29] : memref<176x1xf32, #tpu.memory_space<vmem>>, vector<8x1xf32>
    %98 = vector.broadcast %97 : vector<8x1xf32> to vector<8x512xf32>
    %99 = arith.addf %96, %98 : vector<8x512xf32>
    %cst_30 = arith.constant 0.000000e+00 : f32
    %100 = vector.broadcast %cst_30 : f32 to vector<8x512xf32>
    %101 = arith.maximumf %99, %100 : vector<8x512xf32>
    %102 = arith.addf %93, %101 : vector<8x512xf32>
    %103 = vector.extract_strided_slice %52 {offsets = [16, 0], sizes = [8, 512], strides = [1, 1]} : vector<32x512xf32> to vector<8x512xf32>
    %c17_i32_31 = arith.constant 17 : i32
    %104 = tpu.dynamic_rotate %103 by %c17_i32_31 dim 1 : vector<8x512xf32>, i32 -> vector<8x512xf32>
    %105 = vector.extract_strided_slice %2 {offsets = [0, 0], sizes = [1, 512], strides = [1, 1]} : vector<16x512xf32> to vector<1x512xf32>
    %106 = vector.broadcast %105 : vector<1x512xf32> to vector<8x512xf32>
    %107 = arith.mulf %104, %106 : vector<8x512xf32>
    %c16_i32_32 = arith.constant 16 : i32
    %108 = tpu.dynamic_rotate %103 by %c16_i32_32 dim 1 : vector<8x512xf32>, i32 -> vector<8x512xf32>
    %109 = vector.extract_strided_slice %2 {offsets = [1, 0], sizes = [1, 512], strides = [1, 1]} : vector<16x512xf32> to vector<1x512xf32>
    %110 = vector.broadcast %109 : vector<1x512xf32> to vector<8x512xf32>
    %111 = arith.mulf %108, %110 : vector<8x512xf32>
    %c15_i32_33 = arith.constant 15 : i32
    %112 = tpu.dynamic_rotate %103 by %c15_i32_33 dim 1 : vector<8x512xf32>, i32 -> vector<8x512xf32>
    %113 = vector.extract_strided_slice %2 {offsets = [2, 0], sizes = [1, 512], strides = [1, 1]} : vector<16x512xf32> to vector<1x512xf32>
    %114 = vector.broadcast %113 : vector<1x512xf32> to vector<8x512xf32>
    %115 = arith.mulf %112, %114 : vector<8x512xf32>
    %c1_i32_34 = arith.constant 1 : i32
    %116 = tpu.dynamic_rotate %103 by %c1_i32_34 dim 1 : vector<8x512xf32>, i32 -> vector<8x512xf32>
    %117 = vector.extract_strided_slice %2 {offsets = [3, 0], sizes = [1, 512], strides = [1, 1]} : vector<16x512xf32> to vector<1x512xf32>
    %118 = vector.broadcast %117 : vector<1x512xf32> to vector<8x512xf32>
    %119 = arith.mulf %116, %118 : vector<8x512xf32>
    %c511_i32_35 = arith.constant 511 : i32
    %120 = tpu.dynamic_rotate %103 by %c511_i32_35 dim 1 : vector<8x512xf32>, i32 -> vector<8x512xf32>
    %121 = vector.extract_strided_slice %2 {offsets = [5, 0], sizes = [1, 512], strides = [1, 1]} : vector<16x512xf32> to vector<1x512xf32>
    %122 = vector.broadcast %121 : vector<1x512xf32> to vector<8x512xf32>
    %123 = arith.mulf %120, %122 : vector<8x512xf32>
    %c497_i32_36 = arith.constant 497 : i32
    %124 = tpu.dynamic_rotate %103 by %c497_i32_36 dim 1 : vector<8x512xf32>, i32 -> vector<8x512xf32>
    %125 = vector.extract_strided_slice %2 {offsets = [6, 0], sizes = [1, 512], strides = [1, 1]} : vector<16x512xf32> to vector<1x512xf32>
    %126 = vector.broadcast %125 : vector<1x512xf32> to vector<8x512xf32>
    %127 = arith.mulf %124, %126 : vector<8x512xf32>
    %c496_i32_37 = arith.constant 496 : i32
    %128 = tpu.dynamic_rotate %103 by %c496_i32_37 dim 1 : vector<8x512xf32>, i32 -> vector<8x512xf32>
    %129 = vector.extract_strided_slice %2 {offsets = [7, 0], sizes = [1, 512], strides = [1, 1]} : vector<16x512xf32> to vector<1x512xf32>
    %130 = vector.broadcast %129 : vector<1x512xf32> to vector<8x512xf32>
    %131 = arith.mulf %128, %130 : vector<8x512xf32>
    %c495_i32_38 = arith.constant 495 : i32
    %132 = tpu.dynamic_rotate %103 by %c495_i32_38 dim 1 : vector<8x512xf32>, i32 -> vector<8x512xf32>
    %133 = vector.extract_strided_slice %2 {offsets = [8, 0], sizes = [1, 512], strides = [1, 1]} : vector<16x512xf32> to vector<1x512xf32>
    %134 = vector.broadcast %133 : vector<1x512xf32> to vector<8x512xf32>
    %135 = arith.mulf %132, %134 : vector<8x512xf32>
    %136 = tpu.concatenate %107, %111, %115, %119, %103, %123, %127, %131, %135 in 0 : vector<8x512xf32>, vector<8x512xf32>, vector<8x512xf32>, vector<8x512xf32>, vector<8x512xf32>, vector<8x512xf32>, vector<8x512xf32>, vector<8x512xf32>, vector<8x512xf32> -> vector<72x512xf32>
    %c16 = arith.constant 16 : index
    %c0_39 = arith.constant 0 : index
    %137 = vector.load %arg1[%c16, %c0_39] : memref<72x72xf32, #tpu.memory_space<vmem>>, vector<8x72xf32>
    %cst_40 = arith.constant dense<0.000000e+00> : vector<8x512xf32>
    %138 = tpu.matmul %137, %136, %cst_40 {dimension_numbers = #tpu.dot_dimension_numbers<[1], [0], [0], [1], [0, 0, 1, 1], [], []>} : vector<8x72xf32>, vector<72x512xf32>, vector<8x512xf32> -> vector<8x512xf32>
    %c56 = arith.constant 56 : index
    %c0_41 = arith.constant 0 : index
    %139 = vector.load %arg4[%c56, %c0_41] : memref<176x1xf32, #tpu.memory_space<vmem>>, vector<8x1xf32>
    %140 = vector.broadcast %139 : vector<8x1xf32> to vector<8x512xf32>
    %141 = arith.addf %138, %140 : vector<8x512xf32>
    %cst_42 = arith.constant 0.000000e+00 : f32
    %142 = vector.broadcast %cst_42 : f32 to vector<8x512xf32>
    %143 = arith.maximumf %141, %142 : vector<8x512xf32>
    %c17_i32_43 = arith.constant 17 : i32
    %144 = tpu.dynamic_rotate %143 by %c17_i32_43 dim 1 : vector<8x512xf32>, i32 -> vector<8x512xf32>
    %145 = vector.extract_strided_slice %2 {offsets = [0, 0], sizes = [1, 512], strides = [1, 1]} : vector<16x512xf32> to vector<1x512xf32>
    %146 = vector.broadcast %145 : vector<1x512xf32> to vector<8x512xf32>
    %147 = arith.mulf %144, %146 : vector<8x512xf32>
    %c16_i32_44 = arith.constant 16 : i32
    %148 = tpu.dynamic_rotate %143 by %c16_i32_44 dim 1 : vector<8x512xf32>, i32 -> vector<8x512xf32>
    %149 = vector.extract_strided_slice %2 {offsets = [1, 0], sizes = [1, 512], strides = [1, 1]} : vector<16x512xf32> to vector<1x512xf32>
    %150 = vector.broadcast %149 : vector<1x512xf32> to vector<8x512xf32>
    %151 = arith.mulf %148, %150 : vector<8x512xf32>
    %c15_i32_45 = arith.constant 15 : i32
    %152 = tpu.dynamic_rotate %143 by %c15_i32_45 dim 1 : vector<8x512xf32>, i32 -> vector<8x512xf32>
    %153 = vector.extract_strided_slice %2 {offsets = [2, 0], sizes = [1, 512], strides = [1, 1]} : vector<16x512xf32> to vector<1x512xf32>
    %154 = vector.broadcast %153 : vector<1x512xf32> to vector<8x512xf32>
    %155 = arith.mulf %152, %154 : vector<8x512xf32>
    %c1_i32_46 = arith.constant 1 : i32
    %156 = tpu.dynamic_rotate %143 by %c1_i32_46 dim 1 : vector<8x512xf32>, i32 -> vector<8x512xf32>
    %157 = vector.extract_strided_slice %2 {offsets = [3, 0], sizes = [1, 512], strides = [1, 1]} : vector<16x512xf32> to vector<1x512xf32>
    %158 = vector.broadcast %157 : vector<1x512xf32> to vector<8x512xf32>
    %159 = arith.mulf %156, %158 : vector<8x512xf32>
    %c511_i32_47 = arith.constant 511 : i32
    %160 = tpu.dynamic_rotate %143 by %c511_i32_47 dim 1 : vector<8x512xf32>, i32 -> vector<8x512xf32>
    %161 = vector.extract_strided_slice %2 {offsets = [5, 0], sizes = [1, 512], strides = [1, 1]} : vector<16x512xf32> to vector<1x512xf32>
    %162 = vector.broadcast %161 : vector<1x512xf32> to vector<8x512xf32>
    %163 = arith.mulf %160, %162 : vector<8x512xf32>
    %c497_i32_48 = arith.constant 497 : i32
    %164 = tpu.dynamic_rotate %143 by %c497_i32_48 dim 1 : vector<8x512xf32>, i32 -> vector<8x512xf32>
    %165 = vector.extract_strided_slice %2 {offsets = [6, 0], sizes = [1, 512], strides = [1, 1]} : vector<16x512xf32> to vector<1x512xf32>
    %166 = vector.broadcast %165 : vector<1x512xf32> to vector<8x512xf32>
    %167 = arith.mulf %164, %166 : vector<8x512xf32>
    %c496_i32_49 = arith.constant 496 : i32
    %168 = tpu.dynamic_rotate %143 by %c496_i32_49 dim 1 : vector<8x512xf32>, i32 -> vector<8x512xf32>
    %169 = vector.extract_strided_slice %2 {offsets = [7, 0], sizes = [1, 512], strides = [1, 1]} : vector<16x512xf32> to vector<1x512xf32>
    %170 = vector.broadcast %169 : vector<1x512xf32> to vector<8x512xf32>
    %171 = arith.mulf %168, %170 : vector<8x512xf32>
    %c495_i32_50 = arith.constant 495 : i32
    %172 = tpu.dynamic_rotate %143 by %c495_i32_50 dim 1 : vector<8x512xf32>, i32 -> vector<8x512xf32>
    %173 = vector.extract_strided_slice %2 {offsets = [8, 0], sizes = [1, 512], strides = [1, 1]} : vector<16x512xf32> to vector<1x512xf32>
    %174 = vector.broadcast %173 : vector<1x512xf32> to vector<8x512xf32>
    %175 = arith.mulf %172, %174 : vector<8x512xf32>
    %176 = tpu.concatenate %147, %151, %155, %159, %143, %163, %167, %171, %175 in 0 : vector<8x512xf32>, vector<8x512xf32>, vector<8x512xf32>, vector<8x512xf32>, vector<8x512xf32>, vector<8x512xf32>, vector<8x512xf32>, vector<8x512xf32>, vector<8x512xf32> -> vector<72x512xf32>
    %c24 = arith.constant 24 : index
    %c0_51 = arith.constant 0 : index
    %177 = vector.load %arg1[%c24, %c0_51] : memref<72x72xf32, #tpu.memory_space<vmem>>, vector<8x72xf32>
    %cst_52 = arith.constant dense<0.000000e+00> : vector<8x512xf32>
    %178 = tpu.matmul %177, %176, %cst_52 {dimension_numbers = #tpu.dot_dimension_numbers<[1], [0], [0], [1], [0, 0, 1, 1], [], []>} : vector<8x72xf32>, vector<72x512xf32>, vector<8x512xf32> -> vector<8x512xf32>
    %c64 = arith.constant 64 : index
    %c0_53 = arith.constant 0 : index
    %179 = vector.load %arg4[%c64, %c0_53] : memref<176x1xf32, #tpu.memory_space<vmem>>, vector<8x1xf32>
    %180 = vector.broadcast %179 : vector<8x1xf32> to vector<8x512xf32>
    %181 = arith.addf %178, %180 : vector<8x512xf32>
    %cst_54 = arith.constant 0.000000e+00 : f32
    %182 = vector.broadcast %cst_54 : f32 to vector<8x512xf32>
    %183 = arith.maximumf %181, %182 : vector<8x512xf32>
    %184 = arith.addf %102, %183 : vector<8x512xf32>
    %185 = vector.extract_strided_slice %52 {offsets = [24, 0], sizes = [8, 512], strides = [1, 1]} : vector<32x512xf32> to vector<8x512xf32>
    %c17_i32_55 = arith.constant 17 : i32
    %186 = tpu.dynamic_rotate %185 by %c17_i32_55 dim 1 : vector<8x512xf32>, i32 -> vector<8x512xf32>
    %187 = vector.extract_strided_slice %4 {offsets = [0, 0], sizes = [1, 512], strides = [1, 1]} : vector<16x512xf32> to vector<1x512xf32>
    %188 = vector.broadcast %187 : vector<1x512xf32> to vector<8x512xf32>
    %189 = arith.addf %186, %188 : vector<8x512xf32>
    %190 = arith.maximumf %185, %189 : vector<8x512xf32>
    %c16_i32_56 = arith.constant 16 : i32
    %191 = tpu.dynamic_rotate %185 by %c16_i32_56 dim 1 : vector<8x512xf32>, i32 -> vector<8x512xf32>
    %192 = vector.extract_strided_slice %4 {offsets = [1, 0], sizes = [1, 512], strides = [1, 1]} : vector<16x512xf32> to vector<1x512xf32>
    %193 = vector.broadcast %192 : vector<1x512xf32> to vector<8x512xf32>
    %194 = arith.addf %191, %193 : vector<8x512xf32>
    %195 = arith.maximumf %190, %194 : vector<8x512xf32>
    %c15_i32_57 = arith.constant 15 : i32
    %196 = tpu.dynamic_rotate %185 by %c15_i32_57 dim 1 : vector<8x512xf32>, i32 -> vector<8x512xf32>
    %197 = vector.extract_strided_slice %4 {offsets = [2, 0], sizes = [1, 512], strides = [1, 1]} : vector<16x512xf32> to vector<1x512xf32>
    %198 = vector.broadcast %197 : vector<1x512xf32> to vector<8x512xf32>
    %199 = arith.addf %196, %198 : vector<8x512xf32>
    %200 = arith.maximumf %195, %199 : vector<8x512xf32>
    %c1_i32_58 = arith.constant 1 : i32
    %201 = tpu.dynamic_rotate %185 by %c1_i32_58 dim 1 : vector<8x512xf32>, i32 -> vector<8x512xf32>
    %202 = vector.extract_strided_slice %4 {offsets = [3, 0], sizes = [1, 512], strides = [1, 1]} : vector<16x512xf32> to vector<1x512xf32>
    %203 = vector.broadcast %202 : vector<1x512xf32> to vector<8x512xf32>
    %204 = arith.addf %201, %203 : vector<8x512xf32>
    %205 = arith.maximumf %200, %204 : vector<8x512xf32>
    %c511_i32_59 = arith.constant 511 : i32
    %206 = tpu.dynamic_rotate %185 by %c511_i32_59 dim 1 : vector<8x512xf32>, i32 -> vector<8x512xf32>
    %207 = vector.extract_strided_slice %4 {offsets = [5, 0], sizes = [1, 512], strides = [1, 1]} : vector<16x512xf32> to vector<1x512xf32>
    %208 = vector.broadcast %207 : vector<1x512xf32> to vector<8x512xf32>
    %209 = arith.addf %206, %208 : vector<8x512xf32>
    %210 = arith.maximumf %205, %209 : vector<8x512xf32>
    %c497_i32_60 = arith.constant 497 : i32
    %211 = tpu.dynamic_rotate %185 by %c497_i32_60 dim 1 : vector<8x512xf32>, i32 -> vector<8x512xf32>
    %212 = vector.extract_strided_slice %4 {offsets = [6, 0], sizes = [1, 512], strides = [1, 1]} : vector<16x512xf32> to vector<1x512xf32>
    %213 = vector.broadcast %212 : vector<1x512xf32> to vector<8x512xf32>
    %214 = arith.addf %211, %213 : vector<8x512xf32>
    %215 = arith.maximumf %210, %214 : vector<8x512xf32>
    %c496_i32_61 = arith.constant 496 : i32
    %216 = tpu.dynamic_rotate %185 by %c496_i32_61 dim 1 : vector<8x512xf32>, i32 -> vector<8x512xf32>
    %217 = vector.extract_strided_slice %4 {offsets = [7, 0], sizes = [1, 512], strides = [1, 1]} : vector<16x512xf32> to vector<1x512xf32>
    %218 = vector.broadcast %217 : vector<1x512xf32> to vector<8x512xf32>
    %219 = arith.addf %216, %218 : vector<8x512xf32>
    %220 = arith.maximumf %215, %219 : vector<8x512xf32>
    %c495_i32_62 = arith.constant 495 : i32
    %221 = tpu.dynamic_rotate %185 by %c495_i32_62 dim 1 : vector<8x512xf32>, i32 -> vector<8x512xf32>
    %222 = vector.extract_strided_slice %4 {offsets = [8, 0], sizes = [1, 512], strides = [1, 1]} : vector<16x512xf32> to vector<1x512xf32>
    %223 = vector.broadcast %222 : vector<1x512xf32> to vector<8x512xf32>
    %224 = arith.addf %221, %223 : vector<8x512xf32>
    %225 = arith.maximumf %220, %224 : vector<8x512xf32>
    %c40_63 = arith.constant 40 : index
    %c0_64 = arith.constant 0 : index
    %226 = vector.load %arg2[%c40_63, %c0_64] : memref<112x8xf32, #tpu.memory_space<vmem>>, vector<8x8xf32>
    %cst_65 = arith.constant dense<0.000000e+00> : vector<8x512xf32>
    %227 = tpu.matmul %226, %225, %cst_65 {dimension_numbers = #tpu.dot_dimension_numbers<[1], [0], [0], [1], [0, 0, 1, 1], [], []>} : vector<8x8xf32>, vector<8x512xf32>, vector<8x512xf32> -> vector<8x512xf32>
    %228 = arith.addf %184, %227 : vector<8x512xf32>
    %c0_66 = arith.constant 0 : index
    %c0_67 = arith.constant 0 : index
    %229 = vector.load %arg7[%c0_66, %c0_67] : memref<512x128xf32, #tpu.memory_space<vmem>>, vector<512x128xf32>
    %c511_i32_68 = arith.constant 511 : i32
    %230 = tpu.dynamic_rotate %228 by %c511_i32_68 dim 1 : vector<8x512xf32>, i32 -> vector<8x512xf32>
    %231 = arith.maximumf %228, %230 : vector<8x512xf32>
    %c496_i32_69 = arith.constant 496 : i32
    %232 = tpu.dynamic_rotate %228 by %c496_i32_69 dim 1 : vector<8x512xf32>, i32 -> vector<8x512xf32>
    %233 = arith.maximumf %231, %232 : vector<8x512xf32>
    %c495_i32_70 = arith.constant 495 : i32
    %234 = tpu.dynamic_rotate %228 by %c495_i32_70 dim 1 : vector<8x512xf32>, i32 -> vector<8x512xf32>
    %235 = arith.maximumf %233, %234 : vector<8x512xf32>
    %cst_71 = arith.constant dense<0.000000e+00> : vector<8x128xf32>
    %236 = tpu.matmul %235, %229, %cst_71 {dimension_numbers = #tpu.dot_dimension_numbers<[1], [0], [0], [1], [0, 0, 1, 1], [], []>} : vector<8x512xf32>, vector<512x128xf32>, vector<8x128xf32> -> vector<8x128xf32>
    %c0_72 = arith.constant 0 : index
    %c0_73 = arith.constant 0 : index
    %c0_74 = arith.constant 0 : index
    %237 = vector.load %arg6[%c0_72, %c0_73, %c0_74] : memref<2x16x128xf32, #tpu.memory_space<vmem>>, vector<2x16x128xf32>
    %238 = vector.extract_strided_slice %237 {offsets = [0, 0, 0], sizes = [1, 16, 128], strides = [1, 1, 1]} : vector<2x16x128xf32> to vector<1x16x128xf32>
    %239 = vector.shape_cast %238 : vector<1x16x128xf32> to vector<16x128xf32>
    %240 = vector.extract_strided_slice %237 {offsets = [1, 0, 0], sizes = [1, 16, 128], strides = [1, 1, 1]} : vector<2x16x128xf32> to vector<1x16x128xf32>
    %241 = vector.shape_cast %240 : vector<1x16x128xf32> to vector<16x128xf32>
    %c48_75 = arith.constant 48 : index
    %c0_76 = arith.constant 0 : index
    %242 = vector.load %arg2[%c48_75, %c0_76] : memref<112x8xf32, #tpu.memory_space<vmem>>, vector<32x8xf32>
    %cst_77 = arith.constant dense<0.000000e+00> : vector<32x128xf32>
    %243 = tpu.matmul %242, %236, %cst_77 {dimension_numbers = #tpu.dot_dimension_numbers<[1], [0], [0], [1], [0, 0, 1, 1], [], []>} : vector<32x8xf32>, vector<8x128xf32>, vector<32x128xf32> -> vector<32x128xf32>
    %c72 = arith.constant 72 : index
    %c0_78 = arith.constant 0 : index
    %244 = vector.load %arg4[%c72, %c0_78] : memref<176x1xf32, #tpu.memory_space<vmem>>, vector<32x1xf32>
    %245 = vector.broadcast %244 : vector<32x1xf32> to vector<32x128xf32>
    %246 = arith.addf %243, %245 : vector<32x128xf32>
    %cst_79 = arith.constant 0.000000e+00 : f32
    %247 = vector.broadcast %cst_79 : f32 to vector<32x128xf32>
    %248 = arith.maximumf %246, %247 : vector<32x128xf32>
    %249 = vector.extract_strided_slice %248 {offsets = [0, 0], sizes = [8, 128], strides = [1, 1]} : vector<32x128xf32> to vector<8x128xf32>
    %c9_i32 = arith.constant 9 : i32
    %250 = tpu.dynamic_rotate %249 by %c9_i32 dim 1 : vector<8x128xf32>, i32 -> vector<8x128xf32>
    %251 = vector.extract_strided_slice %239 {offsets = [0, 0], sizes = [1, 128], strides = [1, 1]} : vector<16x128xf32> to vector<1x128xf32>
    %252 = vector.broadcast %251 : vector<1x128xf32> to vector<8x128xf32>
    %253 = arith.mulf %250, %252 : vector<8x128xf32>
    %c8_i32 = arith.constant 8 : i32
    %254 = tpu.dynamic_rotate %249 by %c8_i32 dim 1 : vector<8x128xf32>, i32 -> vector<8x128xf32>
    %255 = vector.extract_strided_slice %239 {offsets = [1, 0], sizes = [1, 128], strides = [1, 1]} : vector<16x128xf32> to vector<1x128xf32>
    %256 = vector.broadcast %255 : vector<1x128xf32> to vector<8x128xf32>
    %257 = arith.mulf %254, %256 : vector<8x128xf32>
    %c7_i32 = arith.constant 7 : i32
    %258 = tpu.dynamic_rotate %249 by %c7_i32 dim 1 : vector<8x128xf32>, i32 -> vector<8x128xf32>
    %259 = vector.extract_strided_slice %239 {offsets = [2, 0], sizes = [1, 128], strides = [1, 1]} : vector<16x128xf32> to vector<1x128xf32>
    %260 = vector.broadcast %259 : vector<1x128xf32> to vector<8x128xf32>
    %261 = arith.mulf %258, %260 : vector<8x128xf32>
    %c1_i32_80 = arith.constant 1 : i32
    %262 = tpu.dynamic_rotate %249 by %c1_i32_80 dim 1 : vector<8x128xf32>, i32 -> vector<8x128xf32>
    %263 = vector.extract_strided_slice %239 {offsets = [3, 0], sizes = [1, 128], strides = [1, 1]} : vector<16x128xf32> to vector<1x128xf32>
    %264 = vector.broadcast %263 : vector<1x128xf32> to vector<8x128xf32>
    %265 = arith.mulf %262, %264 : vector<8x128xf32>
    %c127_i32 = arith.constant 127 : i32
    %266 = tpu.dynamic_rotate %249 by %c127_i32 dim 1 : vector<8x128xf32>, i32 -> vector<8x128xf32>
    %267 = vector.extract_strided_slice %239 {offsets = [5, 0], sizes = [1, 128], strides = [1, 1]} : vector<16x128xf32> to vector<1x128xf32>
    %268 = vector.broadcast %267 : vector<1x128xf32> to vector<8x128xf32>
    %269 = arith.mulf %266, %268 : vector<8x128xf32>
    %c121_i32 = arith.constant 121 : i32
    %270 = tpu.dynamic_rotate %249 by %c121_i32 dim 1 : vector<8x128xf32>, i32 -> vector<8x128xf32>
    %271 = vector.extract_strided_slice %239 {offsets = [6, 0], sizes = [1, 128], strides = [1, 1]} : vector<16x128xf32> to vector<1x128xf32>
    %272 = vector.broadcast %271 : vector<1x128xf32> to vector<8x128xf32>
    %273 = arith.mulf %270, %272 : vector<8x128xf32>
    %c120_i32 = arith.constant 120 : i32
    %274 = tpu.dynamic_rotate %249 by %c120_i32 dim 1 : vector<8x128xf32>, i32 -> vector<8x128xf32>
    %275 = vector.extract_strided_slice %239 {offsets = [7, 0], sizes = [1, 128], strides = [1, 1]} : vector<16x128xf32> to vector<1x128xf32>
    %276 = vector.broadcast %275 : vector<1x128xf32> to vector<8x128xf32>
    %277 = arith.mulf %274, %276 : vector<8x128xf32>
    %c119_i32 = arith.constant 119 : i32
    %278 = tpu.dynamic_rotate %249 by %c119_i32 dim 1 : vector<8x128xf32>, i32 -> vector<8x128xf32>
    %279 = vector.extract_strided_slice %239 {offsets = [8, 0], sizes = [1, 128], strides = [1, 1]} : vector<16x128xf32> to vector<1x128xf32>
    %280 = vector.broadcast %279 : vector<1x128xf32> to vector<8x128xf32>
    %281 = arith.mulf %278, %280 : vector<8x128xf32>
    %282 = tpu.concatenate %253, %257, %261, %265, %249, %269, %273, %277, %281 in 0 : vector<8x128xf32>, vector<8x128xf32>, vector<8x128xf32>, vector<8x128xf32>, vector<8x128xf32>, vector<8x128xf32>, vector<8x128xf32>, vector<8x128xf32>, vector<8x128xf32> -> vector<72x128xf32>
    %c32_81 = arith.constant 32 : index
    %c0_82 = arith.constant 0 : index
    %283 = vector.load %arg1[%c32_81, %c0_82] : memref<72x72xf32, #tpu.memory_space<vmem>>, vector<16x72xf32>
    %cst_83 = arith.constant dense<0.000000e+00> : vector<16x128xf32>
    %284 = tpu.matmul %283, %282, %cst_83 {dimension_numbers = #tpu.dot_dimension_numbers<[1], [0], [0], [1], [0, 0, 1, 1], [], []>} : vector<16x72xf32>, vector<72x128xf32>, vector<16x128xf32> -> vector<16x128xf32>
    %c104 = arith.constant 104 : index
    %c0_84 = arith.constant 0 : index
    %285 = vector.load %arg4[%c104, %c0_84] : memref<176x1xf32, #tpu.memory_space<vmem>>, vector<16x1xf32>
    %286 = vector.broadcast %285 : vector<16x1xf32> to vector<16x128xf32>
    %287 = arith.addf %284, %286 : vector<16x128xf32>
    %cst_85 = arith.constant 0.000000e+00 : f32
    %288 = vector.broadcast %cst_85 : f32 to vector<16x128xf32>
    %289 = arith.maximumf %287, %288 : vector<16x128xf32>
    %290 = vector.extract_strided_slice %248 {offsets = [8, 0], sizes = [8, 128], strides = [1, 1]} : vector<32x128xf32> to vector<8x128xf32>
    %c80 = arith.constant 80 : index
    %c0_86 = arith.constant 0 : index
    %291 = vector.load %arg2[%c80, %c0_86] : memref<112x8xf32, #tpu.memory_space<vmem>>, vector<16x8xf32>
    %cst_87 = arith.constant dense<0.000000e+00> : vector<16x128xf32>
    %292 = tpu.matmul %291, %290, %cst_87 {dimension_numbers = #tpu.dot_dimension_numbers<[1], [0], [0], [1], [0, 0, 1, 1], [], []>} : vector<16x8xf32>, vector<8x128xf32>, vector<16x128xf32> -> vector<16x128xf32>
    %c120 = arith.constant 120 : index
    %c0_88 = arith.constant 0 : index
    %293 = vector.load %arg4[%c120, %c0_88] : memref<176x1xf32, #tpu.memory_space<vmem>>, vector<16x1xf32>
    %294 = vector.broadcast %293 : vector<16x1xf32> to vector<16x128xf32>
    %295 = arith.addf %292, %294 : vector<16x128xf32>
    %cst_89 = arith.constant 0.000000e+00 : f32
    %296 = vector.broadcast %cst_89 : f32 to vector<16x128xf32>
    %297 = arith.maximumf %295, %296 : vector<16x128xf32>
    %298 = arith.addf %289, %297 : vector<16x128xf32>
    %299 = vector.extract_strided_slice %248 {offsets = [16, 0], sizes = [8, 128], strides = [1, 1]} : vector<32x128xf32> to vector<8x128xf32>
    %c9_i32_90 = arith.constant 9 : i32
    %300 = tpu.dynamic_rotate %299 by %c9_i32_90 dim 1 : vector<8x128xf32>, i32 -> vector<8x128xf32>
    %301 = vector.extract_strided_slice %239 {offsets = [0, 0], sizes = [1, 128], strides = [1, 1]} : vector<16x128xf32> to vector<1x128xf32>
    %302 = vector.broadcast %301 : vector<1x128xf32> to vector<8x128xf32>
    %303 = arith.mulf %300, %302 : vector<8x128xf32>
    %c8_i32_91 = arith.constant 8 : i32
    %304 = tpu.dynamic_rotate %299 by %c8_i32_91 dim 1 : vector<8x128xf32>, i32 -> vector<8x128xf32>
    %305 = vector.extract_strided_slice %239 {offsets = [1, 0], sizes = [1, 128], strides = [1, 1]} : vector<16x128xf32> to vector<1x128xf32>
    %306 = vector.broadcast %305 : vector<1x128xf32> to vector<8x128xf32>
    %307 = arith.mulf %304, %306 : vector<8x128xf32>
    %c7_i32_92 = arith.constant 7 : i32
    %308 = tpu.dynamic_rotate %299 by %c7_i32_92 dim 1 : vector<8x128xf32>, i32 -> vector<8x128xf32>
    %309 = vector.extract_strided_slice %239 {offsets = [2, 0], sizes = [1, 128], strides = [1, 1]} : vector<16x128xf32> to vector<1x128xf32>
    %310 = vector.broadcast %309 : vector<1x128xf32> to vector<8x128xf32>
    %311 = arith.mulf %308, %310 : vector<8x128xf32>
    %c1_i32_93 = arith.constant 1 : i32
    %312 = tpu.dynamic_rotate %299 by %c1_i32_93 dim 1 : vector<8x128xf32>, i32 -> vector<8x128xf32>
    %313 = vector.extract_strided_slice %239 {offsets = [3, 0], sizes = [1, 128], strides = [1, 1]} : vector<16x128xf32> to vector<1x128xf32>
    %314 = vector.broadcast %313 : vector<1x128xf32> to vector<8x128xf32>
    %315 = arith.mulf %312, %314 : vector<8x128xf32>
    %c127_i32_94 = arith.constant 127 : i32
    %316 = tpu.dynamic_rotate %299 by %c127_i32_94 dim 1 : vector<8x128xf32>, i32 -> vector<8x128xf32>
    %317 = vector.extract_strided_slice %239 {offsets = [5, 0], sizes = [1, 128], strides = [1, 1]} : vector<16x128xf32> to vector<1x128xf32>
    %318 = vector.broadcast %317 : vector<1x128xf32> to vector<8x128xf32>
    %319 = arith.mulf %316, %318 : vector<8x128xf32>
    %c121_i32_95 = arith.constant 121 : i32
    %320 = tpu.dynamic_rotate %299 by %c121_i32_95 dim 1 : vector<8x128xf32>, i32 -> vector<8x128xf32>
    %321 = vector.extract_strided_slice %239 {offsets = [6, 0], sizes = [1, 128], strides = [1, 1]} : vector<16x128xf32> to vector<1x128xf32>
    %322 = vector.broadcast %321 : vector<1x128xf32> to vector<8x128xf32>
    %323 = arith.mulf %320, %322 : vector<8x128xf32>
    %c120_i32_96 = arith.constant 120 : i32
    %324 = tpu.dynamic_rotate %299 by %c120_i32_96 dim 1 : vector<8x128xf32>, i32 -> vector<8x128xf32>
    %325 = vector.extract_strided_slice %239 {offsets = [7, 0], sizes = [1, 128], strides = [1, 1]} : vector<16x128xf32> to vector<1x128xf32>
    %326 = vector.broadcast %325 : vector<1x128xf32> to vector<8x128xf32>
    %327 = arith.mulf %324, %326 : vector<8x128xf32>
    %c119_i32_97 = arith.constant 119 : i32
    %328 = tpu.dynamic_rotate %299 by %c119_i32_97 dim 1 : vector<8x128xf32>, i32 -> vector<8x128xf32>
    %329 = vector.extract_strided_slice %239 {offsets = [8, 0], sizes = [1, 128], strides = [1, 1]} : vector<16x128xf32> to vector<1x128xf32>
    %330 = vector.broadcast %329 : vector<1x128xf32> to vector<8x128xf32>
    %331 = arith.mulf %328, %330 : vector<8x128xf32>
    %332 = tpu.concatenate %303, %307, %311, %315, %299, %319, %323, %327, %331 in 0 : vector<8x128xf32>, vector<8x128xf32>, vector<8x128xf32>, vector<8x128xf32>, vector<8x128xf32>, vector<8x128xf32>, vector<8x128xf32>, vector<8x128xf32>, vector<8x128xf32> -> vector<72x128xf32>
    %c48_98 = arith.constant 48 : index
    %c0_99 = arith.constant 0 : index
    %333 = vector.load %arg1[%c48_98, %c0_99] : memref<72x72xf32, #tpu.memory_space<vmem>>, vector<8x72xf32>
    %cst_100 = arith.constant dense<0.000000e+00> : vector<8x128xf32>
    %334 = tpu.matmul %333, %332, %cst_100 {dimension_numbers = #tpu.dot_dimension_numbers<[1], [0], [0], [1], [0, 0, 1, 1], [], []>} : vector<8x72xf32>, vector<72x128xf32>, vector<8x128xf32> -> vector<8x128xf32>
    %c136 = arith.constant 136 : index
    %c0_101 = arith.constant 0 : index
    %335 = vector.load %arg4[%c136, %c0_101] : memref<176x1xf32, #tpu.memory_space<vmem>>, vector<8x1xf32>
    %336 = vector.broadcast %335 : vector<8x1xf32> to vector<8x128xf32>
    %337 = arith.addf %334, %336 : vector<8x128xf32>
    %cst_102 = arith.constant 0.000000e+00 : f32
    %338 = vector.broadcast %cst_102 : f32 to vector<8x128xf32>
    %339 = arith.maximumf %337, %338 : vector<8x128xf32>
    %c9_i32_103 = arith.constant 9 : i32
    %340 = tpu.dynamic_rotate %339 by %c9_i32_103 dim 1 : vector<8x128xf32>, i32 -> vector<8x128xf32>
    %341 = vector.extract_strided_slice %239 {offsets = [0, 0], sizes = [1, 128], strides = [1, 1]} : vector<16x128xf32> to vector<1x128xf32>
    %342 = vector.broadcast %341 : vector<1x128xf32> to vector<8x128xf32>
    %343 = arith.mulf %340, %342 : vector<8x128xf32>
    %c8_i32_104 = arith.constant 8 : i32
    %344 = tpu.dynamic_rotate %339 by %c8_i32_104 dim 1 : vector<8x128xf32>, i32 -> vector<8x128xf32>
    %345 = vector.extract_strided_slice %239 {offsets = [1, 0], sizes = [1, 128], strides = [1, 1]} : vector<16x128xf32> to vector<1x128xf32>
    %346 = vector.broadcast %345 : vector<1x128xf32> to vector<8x128xf32>
    %347 = arith.mulf %344, %346 : vector<8x128xf32>
    %c7_i32_105 = arith.constant 7 : i32
    %348 = tpu.dynamic_rotate %339 by %c7_i32_105 dim 1 : vector<8x128xf32>, i32 -> vector<8x128xf32>
    %349 = vector.extract_strided_slice %239 {offsets = [2, 0], sizes = [1, 128], strides = [1, 1]} : vector<16x128xf32> to vector<1x128xf32>
    %350 = vector.broadcast %349 : vector<1x128xf32> to vector<8x128xf32>
    %351 = arith.mulf %348, %350 : vector<8x128xf32>
    %c1_i32_106 = arith.constant 1 : i32
    %352 = tpu.dynamic_rotate %339 by %c1_i32_106 dim 1 : vector<8x128xf32>, i32 -> vector<8x128xf32>
    %353 = vector.extract_strided_slice %239 {offsets = [3, 0], sizes = [1, 128], strides = [1, 1]} : vector<16x128xf32> to vector<1x128xf32>
    %354 = vector.broadcast %353 : vector<1x128xf32> to vector<8x128xf32>
    %355 = arith.mulf %352, %354 : vector<8x128xf32>
    %c127_i32_107 = arith.constant 127 : i32
    %356 = tpu.dynamic_rotate %339 by %c127_i32_107 dim 1 : vector<8x128xf32>, i32 -> vector<8x128xf32>
    %357 = vector.extract_strided_slice %239 {offsets = [5, 0], sizes = [1, 128], strides = [1, 1]} : vector<16x128xf32> to vector<1x128xf32>
    %358 = vector.broadcast %357 : vector<1x128xf32> to vector<8x128xf32>
    %359 = arith.mulf %356, %358 : vector<8x128xf32>
    %c121_i32_108 = arith.constant 121 : i32
    %360 = tpu.dynamic_rotate %339 by %c121_i32_108 dim 1 : vector<8x128xf32>, i32 -> vector<8x128xf32>
    %361 = vector.extract_strided_slice %239 {offsets = [6, 0], sizes = [1, 128], strides = [1, 1]} : vector<16x128xf32> to vector<1x128xf32>
    %362 = vector.broadcast %361 : vector<1x128xf32> to vector<8x128xf32>
    %363 = arith.mulf %360, %362 : vector<8x128xf32>
    %c120_i32_109 = arith.constant 120 : i32
    %364 = tpu.dynamic_rotate %339 by %c120_i32_109 dim 1 : vector<8x128xf32>, i32 -> vector<8x128xf32>
    %365 = vector.extract_strided_slice %239 {offsets = [7, 0], sizes = [1, 128], strides = [1, 1]} : vector<16x128xf32> to vector<1x128xf32>
    %366 = vector.broadcast %365 : vector<1x128xf32> to vector<8x128xf32>
    %367 = arith.mulf %364, %366 : vector<8x128xf32>
    %c119_i32_110 = arith.constant 119 : i32
    %368 = tpu.dynamic_rotate %339 by %c119_i32_110 dim 1 : vector<8x128xf32>, i32 -> vector<8x128xf32>
    %369 = vector.extract_strided_slice %239 {offsets = [8, 0], sizes = [1, 128], strides = [1, 1]} : vector<16x128xf32> to vector<1x128xf32>
    %370 = vector.broadcast %369 : vector<1x128xf32> to vector<8x128xf32>
    %371 = arith.mulf %368, %370 : vector<8x128xf32>
    %372 = tpu.concatenate %343, %347, %351, %355, %339, %359, %363, %367, %371 in 0 : vector<8x128xf32>, vector<8x128xf32>, vector<8x128xf32>, vector<8x128xf32>, vector<8x128xf32>, vector<8x128xf32>, vector<8x128xf32>, vector<8x128xf32>, vector<8x128xf32> -> vector<72x128xf32>
    %c56_111 = arith.constant 56 : index
    %c0_112 = arith.constant 0 : index
    %373 = vector.load %arg1[%c56_111, %c0_112] : memref<72x72xf32, #tpu.memory_space<vmem>>, vector<16x72xf32>
    %cst_113 = arith.constant dense<0.000000e+00> : vector<16x128xf32>
    %374 = tpu.matmul %373, %372, %cst_113 {dimension_numbers = #tpu.dot_dimension_numbers<[1], [0], [0], [1], [0, 0, 1, 1], [], []>} : vector<16x72xf32>, vector<72x128xf32>, vector<16x128xf32> -> vector<16x128xf32>
    %c144 = arith.constant 144 : index
    %c0_114 = arith.constant 0 : index
    %375 = vector.load %arg4[%c144, %c0_114] : memref<176x1xf32, #tpu.memory_space<vmem>>, vector<16x1xf32>
    %376 = vector.broadcast %375 : vector<16x1xf32> to vector<16x128xf32>
    %377 = arith.addf %374, %376 : vector<16x128xf32>
    %cst_115 = arith.constant 0.000000e+00 : f32
    %378 = vector.broadcast %cst_115 : f32 to vector<16x128xf32>
    %379 = arith.maximumf %377, %378 : vector<16x128xf32>
    %380 = arith.addf %298, %379 : vector<16x128xf32>
    %381 = vector.extract_strided_slice %248 {offsets = [24, 0], sizes = [8, 128], strides = [1, 1]} : vector<32x128xf32> to vector<8x128xf32>
    %c9_i32_116 = arith.constant 9 : i32
    %382 = tpu.dynamic_rotate %381 by %c9_i32_116 dim 1 : vector<8x128xf32>, i32 -> vector<8x128xf32>
    %383 = vector.extract_strided_slice %241 {offsets = [0, 0], sizes = [1, 128], strides = [1, 1]} : vector<16x128xf32> to vector<1x128xf32>
    %384 = vector.broadcast %383 : vector<1x128xf32> to vector<8x128xf32>
    %385 = arith.addf %382, %384 : vector<8x128xf32>
    %386 = arith.maximumf %381, %385 : vector<8x128xf32>
    %c8_i32_117 = arith.constant 8 : i32
    %387 = tpu.dynamic_rotate %381 by %c8_i32_117 dim 1 : vector<8x128xf32>, i32 -> vector<8x128xf32>
    %388 = vector.extract_strided_slice %241 {offsets = [1, 0], sizes = [1, 128], strides = [1, 1]} : vector<16x128xf32> to vector<1x128xf32>
    %389 = vector.broadcast %388 : vector<1x128xf32> to vector<8x128xf32>
    %390 = arith.addf %387, %389 : vector<8x128xf32>
    %391 = arith.maximumf %386, %390 : vector<8x128xf32>
    %c7_i32_118 = arith.constant 7 : i32
    %392 = tpu.dynamic_rotate %381 by %c7_i32_118 dim 1 : vector<8x128xf32>, i32 -> vector<8x128xf32>
    %393 = vector.extract_strided_slice %241 {offsets = [2, 0], sizes = [1, 128], strides = [1, 1]} : vector<16x128xf32> to vector<1x128xf32>
    %394 = vector.broadcast %393 : vector<1x128xf32> to vector<8x128xf32>
    %395 = arith.addf %392, %394 : vector<8x128xf32>
    %396 = arith.maximumf %391, %395 : vector<8x128xf32>
    %c1_i32_119 = arith.constant 1 : i32
    %397 = tpu.dynamic_rotate %381 by %c1_i32_119 dim 1 : vector<8x128xf32>, i32 -> vector<8x128xf32>
    %398 = vector.extract_strided_slice %241 {offsets = [3, 0], sizes = [1, 128], strides = [1, 1]} : vector<16x128xf32> to vector<1x128xf32>
    %399 = vector.broadcast %398 : vector<1x128xf32> to vector<8x128xf32>
    %400 = arith.addf %397, %399 : vector<8x128xf32>
    %401 = arith.maximumf %396, %400 : vector<8x128xf32>
    %c127_i32_120 = arith.constant 127 : i32
    %402 = tpu.dynamic_rotate %381 by %c127_i32_120 dim 1 : vector<8x128xf32>, i32 -> vector<8x128xf32>
    %403 = vector.extract_strided_slice %241 {offsets = [5, 0], sizes = [1, 128], strides = [1, 1]} : vector<16x128xf32> to vector<1x128xf32>
    %404 = vector.broadcast %403 : vector<1x128xf32> to vector<8x128xf32>
    %405 = arith.addf %402, %404 : vector<8x128xf32>
    %406 = arith.maximumf %401, %405 : vector<8x128xf32>
    %c121_i32_121 = arith.constant 121 : i32
    %407 = tpu.dynamic_rotate %381 by %c121_i32_121 dim 1 : vector<8x128xf32>, i32 -> vector<8x128xf32>
    %408 = vector.extract_strided_slice %241 {offsets = [6, 0], sizes = [1, 128], strides = [1, 1]} : vector<16x128xf32> to vector<1x128xf32>
    %409 = vector.broadcast %408 : vector<1x128xf32> to vector<8x128xf32>
    %410 = arith.addf %407, %409 : vector<8x128xf32>
    %411 = arith.maximumf %406, %410 : vector<8x128xf32>
    %c120_i32_122 = arith.constant 120 : i32
    %412 = tpu.dynamic_rotate %381 by %c120_i32_122 dim 1 : vector<8x128xf32>, i32 -> vector<8x128xf32>
    %413 = vector.extract_strided_slice %241 {offsets = [7, 0], sizes = [1, 128], strides = [1, 1]} : vector<16x128xf32> to vector<1x128xf32>
    %414 = vector.broadcast %413 : vector<1x128xf32> to vector<8x128xf32>
    %415 = arith.addf %412, %414 : vector<8x128xf32>
    %416 = arith.maximumf %411, %415 : vector<8x128xf32>
    %c119_i32_123 = arith.constant 119 : i32
    %417 = tpu.dynamic_rotate %381 by %c119_i32_123 dim 1 : vector<8x128xf32>, i32 -> vector<8x128xf32>
    %418 = vector.extract_strided_slice %241 {offsets = [8, 0], sizes = [1, 128], strides = [1, 1]} : vector<16x128xf32> to vector<1x128xf32>
    %419 = vector.broadcast %418 : vector<1x128xf32> to vector<8x128xf32>
    %420 = arith.addf %417, %419 : vector<8x128xf32>
    %421 = arith.maximumf %416, %420 : vector<8x128xf32>
    %c96 = arith.constant 96 : index
    %c0_124 = arith.constant 0 : index
    %422 = vector.load %arg2[%c96, %c0_124] : memref<112x8xf32, #tpu.memory_space<vmem>>, vector<16x8xf32>
    %cst_125 = arith.constant dense<0.000000e+00> : vector<16x128xf32>
    %423 = tpu.matmul %422, %421, %cst_125 {dimension_numbers = #tpu.dot_dimension_numbers<[1], [0], [0], [1], [0, 0, 1, 1], [], []>} : vector<16x8xf32>, vector<8x128xf32>, vector<16x128xf32> -> vector<16x128xf32>
    %424 = arith.addf %380, %423 : vector<16x128xf32>
    %c0_126 = arith.constant 0 : index
    %c0_127 = arith.constant 0 : index
    %425 = vector.load %arg8[%c0_126, %c0_127] : memref<128x2xf32, #tpu.memory_space<vmem>>, vector<128x2xf32>
    %cst_128 = arith.constant dense<0.000000e+00> : vector<16x2xf32>
    %426 = tpu.matmul %424, %425, %cst_128 {dimension_numbers = #tpu.dot_dimension_numbers<[1], [0], [0], [1], [0, 0, 1, 1], [], []>} : vector<16x128xf32>, vector<128x2xf32>, vector<16x2xf32> -> vector<16x2xf32>
    %c0_129 = arith.constant 0 : index
    %c0_130 = arith.constant 0 : index
    %427 = vector.load %arg3[%c0_129, %c0_130] : memref<16x16xf32, #tpu.memory_space<vmem>>, vector<16x16xf32>
    %cst_131 = arith.constant dense<0.000000e+00> : vector<16x2xf32>
    %428 = tpu.matmul %427, %426, %cst_131 {dimension_numbers = #tpu.dot_dimension_numbers<[1], [0], [0], [1], [0, 0, 1, 1], [], []>} : vector<16x16xf32>, vector<16x2xf32>, vector<16x2xf32> -> vector<16x2xf32>
    %c160 = arith.constant 160 : index
    %c0_132 = arith.constant 0 : index
    %429 = vector.load %arg4[%c160, %c0_132] : memref<176x1xf32, #tpu.memory_space<vmem>>, vector<16x1xf32>
    %430 = vector.broadcast %429 : vector<16x1xf32> to vector<16x2xf32>
    %431 = arith.addf %428, %430 : vector<16x2xf32>
    %c0_133 = arith.constant 0 : index
    %c0_134 = arith.constant 0 : index
    %432 = vector.load %arg9[%c0_133, %c0_134] : memref<16x2xf32, #tpu.memory_space<vmem>>, vector<16x2xf32>
    tpu.vector_store %arg9[%c0_133, %c0_134], %431 {strides = array<i32>} : memref<16x2xf32, #tpu.memory_space<vmem>>, vector<16x2xf32>,
    return
  }
}

</mosaic_0001>

<llo_original>
// kernel: _lambda_.1
$region0: #{_lambda_.1}
  #allocation0 [shape = 'u32[]', space=smem, size = 0x4, offset = 0x4, fixed_abs, tag = 'smem constant byte address 0x4 - core index']
  #allocation1 [shape = 'u32[72,128]{1,0:T(1,128)}', space=vmem, size = 0x9000, scoped, tag = 'internal scratch']
  %s0 = inlined_call_operand.vmem [shape: f32[8,512], index: 0, kind: input, shape index: {}]
  %s1 = inlined_call_operand.hbm [shape: f32[72,72], index: 1, kind: input, shape index: {}]
  %s2 = inlined_call_operand.hbm [shape: f32[112,8], index: 2, kind: input, shape index: {}]
  %s3 = inlined_call_operand.vmem [shape: f32[16,16], index: 3, kind: input, shape index: {}]
  %s4 = inlined_call_operand.vmem [shape: f32[176,1], index: 4, kind: input, shape index: {}]
  %s5 = inlined_call_operand.hbm [shape: f32[2,16,512], index: 5, kind: input, shape index: {}]
  %s6 = inlined_call_operand.vmem [shape: f32[2,16,128], index: 6, kind: input, shape index: {}]
  %s7 = inlined_call_operand.hbm [shape: f32[512,128], index: 7, kind: input, shape index: {}]
  %s8 = inlined_call_operand.vmem [shape: f32[128,2], index: 8, kind: input, shape index: {}]
  %s9 = inlined_call_operand.vmem [shape: f32[16,2], index: 9, kind: output, shape index: {}]
  %s10 = sld [smem:[#allocation0]]
  $region62: #{_lambda_.1} parent=0
    _
  %s12 = ssub.s32 1, %s10
  %s13 = scalar_select 0, %s12, %s10
  $region1: #{_lambda_.1} parent=0
    #allocation2 [shape = 'u8[36864]{0}', space=vmem, size = 0x9000, scoped, tag = 'input window, operand 1, single buffered']
    #allocation3 [shape = 's32[1]{0}', space=sflag, size = 0x4, scoped, tag = 'scoped memory for _lambda_.1']
    #allocation4 [shape = 'u8[57344]{0}', space=vmem, size = 0xe000, scoped, tag = 'input window, operand 2, single buffered']
    #allocation5 [shape = 's32[1]{0}', space=sflag, size = 0x4, scoped, tag = 'scoped memory for _lambda_.1']
    #allocation6 [shape = 'u8[65536]{0}', space=vmem, size = 0x10000, scoped, tag = 'input window, operand 5, single buffered']
    #allocation7 [shape = 'u8[262144]{0}', space=vmem, size = 0x40000, scoped, tag = 'input window, operand 7, single buffered']
    #allocation8 [shape = 's32[1]{0}', space=sflag, size = 0x4, scoped, tag = 'scoped memory for _lambda_.1']
    %14 = vsyncpa [#allocation3], 0
    %15 = vsyncpa [#allocation5], 0
    %16 = vsyncpa [#allocation8], 0
    // Predicated region
    $region2: #{_lambda_.1} parent=1 // pred_check
      _
    $region3: #{_lambda_.1} parent=1 // pred_check_branch
      %18 = sbr.rel (0) target = $region5
    $region4: #{_lambda_.1} parent=1 // pred_region
      _
    $region5: #{_lambda_.1} parent=1 // pred_fallthru
      _
    // Predicated region
    $region6: #{_lambda_.1} parent=1 // pred_check
      _
    $region7: #{_lambda_.1} parent=1 // pred_check_branch
      %20 = sbr.rel (0) target = $region9
    $region8: #{_lambda_.1} parent=1 // pred_region
      %22 = vsyncadd [#allocation3], 0
      %s23 = sshll.u32 %s1, 4
      %s24 = int_to_ptr.hbm [resolvable:$true] %s23
      %s25 = sshll.u32 [#allocation2], 4
      %s26 = int_to_ptr.vmem [resolvable:$true] %s25
      %31 = dma.hbm_to_vmem [thread:$0]  %s24, 1152, %s26, [#allocation3], 128, 128, 8
    $region9: #{_lambda_.1} parent=1 // pred_fallthru
      _
    // Predicated region
    $region10: #{_lambda_.1} parent=1 // pred_check
      _
    $region11: #{_lambda_.1} parent=1 // pred_check_branch
      %33 = sbr.rel (0) target = $region13
    $region12: #{_lambda_.1} parent=1 // pred_region
      %35 = vsyncadd [#allocation5], 0
      %s36 = sshll.u32 %s2, 4
      %s37 = int_to_ptr.hbm [resolvable:$true] %s36
      %s38 = sshll.u32 [#allocation4], 4
      %s39 = int_to_ptr.vmem [resolvable:$true] %s38
      %44 = dma.hbm_to_vmem [thread:$0]  %s37, 1792, %s39, [#allocation5], 128, 128, 8
    $region13: #{_lambda_.1} parent=1 // pred_fallthru
      _
    // Predicated region
    $region14: #{_lambda_.1} parent=1 // pred_check
      _
    $region15: #{_lambda_.1} parent=1 // pred_check_branch
      %46 = sbr.rel (0) target = $region17
    $region16: #{_lambda_.1} parent=1 // pred_region
      _
    $region17: #{_lambda_.1} parent=1 // pred_fallthru
      _
    // Predicated region
    $region18: #{_lambda_.1} parent=1 // pred_check
      _
    $region19: #{_lambda_.1} parent=1 // pred_check_branch
      %48 = sbr.rel (0) target = $region21
    $region20: #{_lambda_.1} parent=1 // pred_region
      _
    $region21: #{_lambda_.1} parent=1 // pred_fallthru
      _
    // Predicated region
    $region22: #{_lambda_.1} parent=1 // pred_check
      _
    $region23: #{_lambda_.1} parent=1 // pred_check_branch
      %50 = sbr.rel (0) target = $region25
    $region24: #{_lambda_.1} parent=1 // pred_region
      %52 = vsyncadd [#allocation5], 0
      %s53 = sshll.u32 %s5, 4
      %s54 = int_to_ptr.hbm [resolvable:$true] %s53
      %s55 = sshll.u32 [#allocation6], 4
      %s56 = int_to_ptr.vmem [resolvable:$true] %s55
      %61 = dma.hbm_to_vmem [thread:$0]  %s54, 2048, %s56, [#allocation5], 512, 512, 32
    $region25: #{_lambda_.1} parent=1 // pred_fallthru
      _
    // Predicated region
    $region26: #{_lambda_.1} parent=1 // pred_check
      _
    $region27: #{_lambda_.1} parent=1 // pred_check_branch
      %63 = sbr.rel (0) target = $region29
    $region28: #{_lambda_.1} parent=1 // pred_region
      _
    $region29: #{_lambda_.1} parent=1 // pred_fallthru
      _
    // Predicated region
    $region30: #{_lambda_.1} parent=1 // pred_check
      _
    $region31: #{_lambda_.1} parent=1 // pred_check_branch
      %65 = sbr.rel (0) target = $region33
    $region32: #{_lambda_.1} parent=1 // pred_region
      %67 = vsyncadd [#allocation8], 0
      %s68 = sshll.u32 %s7, 4
      %s69 = int_to_ptr.hbm [resolvable:$true] %s68
      %s70 = sshll.u32 [#allocation7], 4
      %s71 = int_to_ptr.vmem [resolvable:$true] %s70
      %76 = dma.hbm_to_vmem [thread:$0]  %s69, 8192, %s71, [#allocation8], 128, 128, 8
    $region33: #{_lambda_.1} parent=1 // pred_fallthru
      _
    // Predicated region
    $region34: #{_lambda_.1} parent=1 // pred_check
      _
    $region35: #{_lambda_.1} parent=1 // pred_check_branch
      %78 = sbr.rel (0) target = $region37
    $region36: #{_lambda_.1} parent=1 // pred_region
      _
    $region37: #{_lambda_.1} parent=1 // pred_fallthru
      _
    // Predicated region
    $region38: #{_lambda_.1} parent=1 // pred_check
      _
    $region39: #{_lambda_.1} parent=1 // pred_check_branch
      %80 = sbr.rel (0) target = $region41
    $region40: #{_lambda_.1} parent=1 // pred_region
      %82 = dma.done [#allocation3], 1152
    $region41: #{_lambda_.1} parent=1 // pred_fallthru
      _
    // Predicated region
    $region42: #{_lambda_.1} parent=1 // pred_check
      _
    $region43: #{_lambda_.1} parent=1 // pred_check_branch
      %84 = sbr.rel (0) target = $region45
    $region44: #{_lambda_.1} parent=1 // pred_region
      %86 = dma.done [#allocation5], 1792
    $region45: #{_lambda_.1} parent=1 // pred_fallthru
      _
    // Predicated region
    $region46: #{_lambda_.1} parent=1 // pred_check
      _
    $region47: #{_lambda_.1} parent=1 // pred_check_branch
      %88 = sbr.rel (0) target = $region49
    $region48: #{_lambda_.1} parent=1 // pred_region
      %90 = dma.done [#allocation5], 2048
    $region49: #{_lambda_.1} parent=1 // pred_fallthru
      _
    // Predicated region
    $region50: #{_lambda_.1} parent=1 // pred_check
      _
    $region51: #{_lambda_.1} parent=1 // pred_check_branch
      %92 = sbr.rel (0) target = $region53
    $region52: #{_lambda_.1} parent=1 // pred_region
      %94 = dma.done [#allocation8], 8192
    $region53: #{_lambda_.1} parent=1 // pred_fallthru
      _
    %v95 = vld [vmem:[#allocation6] sm:$0xff]
    %v96 = vld [vmem:[#allocation6 + $0x8] sm:$0xff]
    %v97 = vld [vmem:[#allocation6 + $0x10] sm:$0xff]
    %v98 = vld [vmem:[#allocation6 + $0x18] sm:$0xff]
    %v99 = vld [vmem:[#allocation6 + $0x20] sm:$0xff]
    %v100 = vld [vmem:[#allocation6 + $0x28] sm:$0xff]
    %v101 = vld [vmem:[#allocation6 + $0x30] sm:$0xff]
    %v102 = vld [vmem:[#allocation6 + $0x38] sm:$0xff]
    %v103 = vld [vmem:[#allocation6 + $0x40] sm:$0xff]
    %v104 = vld [vmem:[#allocation6 + $0x48] sm:$0xff]
    %v105 = vld [vmem:[#allocation6 + $0x50] sm:$0xff]
    %v106 = vld [vmem:[#allocation6 + $0x58] sm:$0xff]
    %v107 = vld [vmem:[#allocation6 + $0x60] sm:$0xff]
    %v108 = vld [vmem:[#allocation6 + $0x68] sm:$0xff]
    %v109 = vld [vmem:[#allocation6 + $0x70] sm:$0xff]
    %v110 = vld [vmem:[#allocation6 + $0x78] sm:$0xff]
    %v111 = vld [vmem:[%s0] sm:$0xff]
    %v112 = vld [vmem:[%s0 + $0x8] sm:$0xff]
    %v113 = vld [vmem:[%s0 + $0x10] sm:$0xff]
    %v114 = vld [vmem:[%s0 + $0x18] sm:$0xff]
    %115 = vrot.lane.b32.xlu0 %v111, 17
    %v116 = vpop.permute.xlu0 %115
    %117 = vrot.lane.b32.xlu0 %v112, 17
    %v118 = vpop.permute.xlu0 %117
    %119 = vrot.lane.b32.xlu0 %v113, 17
    %v120 = vpop.permute.xlu0 %119
    %121 = vrot.lane.b32.xlu0 %v114, 17
    %v122 = vpop.permute.xlu0 %121
    %v123 = vlaneseq
    %v124 = vand.u32 %v123, 127
    %vm125 = vcmp.lt.s32.totalorder %v124, 17
    %v126 = vsel %vm125, %v120, %v122
    %v127 = vsel %vm125, %v118, %v120
    %v128 = vsel %vm125, %v116, %v118
    %v129 = vsel %vm125, %v122, %v116
    %v130 = vperm.slane %v95, 0
    %v131 = vperm.slane %v96, 0
    %v132 = vperm.slane %v97, 0
    %v133 = vperm.slane %v98, 0
    %v134 = vmul.f32 %v129, %v130
    %v135 = vmul.f32 %v128, %v131
    %v136 = vmul.f32 %v127, %v132
    %v137 = vmul.f32 %v126, %v133
    %138 = vrot.lane.b32.xlu0 %v111, 16
    %v139 = vpop.permute.xlu0 %138
    %140 = vrot.lane.b32.xlu0 %v112, 16
    %v141 = vpop.permute.xlu0 %140
    %142 = vrot.lane.b32.xlu0 %v113, 16
    %v143 = vpop.permute.xlu0 %142
    %144 = vrot.lane.b32.xlu0 %v114, 16
    %v145 = vpop.permute.xlu0 %144
    %vm146 = vcmp.lt.s32.totalorder %v124, 16
    %v147 = vsel %vm146, %v143, %v145
    %v148 = vsel %vm146, %v141, %v143
    %v149 = vsel %vm146, %v139, %v141
    %v150 = vsel %vm146, %v145, %v139
    %v151 = vperm.slane %v95, 1
    %v152 = vperm.slane %v96, 1
    %v153 = vperm.slane %v97, 1
    %v154 = vperm.slane %v98, 1
    %v155 = vmul.f32 %v150, %v151
    %v156 = vmul.f32 %v149, %v152
    %v157 = vmul.f32 %v148, %v153
    %v158 = vmul.f32 %v147, %v154
    %159 = vrot.lane.b32.xlu0 %v111, 15
    %v160 = vpop.permute.xlu0 %159
    %161 = vrot.lane.b32.xlu0 %v112, 15
    %v162 = vpop.permute.xlu0 %161
    %163 = vrot.lane.b32.xlu0 %v113, 15
    %v164 = vpop.permute.xlu0 %163
    %165 = vrot.lane.b32.xlu0 %v114, 15
    %v166 = vpop.permute.xlu0 %165
    %vm167 = vcmp.lt.s32.totalorder %v124, 15
    %v168 = vsel %vm167, %v164, %v166
    %v169 = vsel %vm167, %v162, %v164
    %v170 = vsel %vm167, %v160, %v162
    %v171 = vsel %vm167, %v166, %v160
    %v172 = vperm.slane %v95, 2
    %v173 = vperm.slane %v96, 2
    %v174 = vperm.slane %v97, 2
    %v175 = vperm.slane %v98, 2
    %v176 = vmul.f32 %v171, %v172
    %v177 = vmul.f32 %v170, %v173
    %v178 = vmul.f32 %v169, %v174
    %v179 = vmul.f32 %v168, %v175
    %180 = vrot.lane.b32.xlu0 %v111, 1
    %v181 = vpop.permute.xlu0 %180
    %182 = vrot.lane.b32.xlu0 %v112, 1
    %v183 = vpop.permute.xlu0 %182
    %184 = vrot.lane.b32.xlu0 %v113, 1
    %v185 = vpop.permute.xlu0 %184
    %186 = vrot.lane.b32.xlu0 %v114, 1
    %v187 = vpop.permute.xlu0 %186
    %vm188 = vcmp.lt.s32.totalorder %v124, 1
    %v189 = vsel %vm188, %v185, %v187
    %v190 = vsel %vm188, %v183, %v185
    %v191 = vsel %vm188, %v181, %v183
    %v192 = vsel %vm188, %v187, %v181
    %v193 = vperm.slane %v95, 3
    %v194 = vperm.slane %v96, 3
    %v195 = vperm.slane %v97, 3
    %v196 = vperm.slane %v98, 3
    %v197 = vmul.f32 %v192, %v193
    %v198 = vmul.f32 %v191, %v194
    %v199 = vmul.f32 %v190, %v195
    %v200 = vmul.f32 %v189, %v196
    %201 = vrot.lane.b32.xlu0 %v111, 127
    %v202 = vpop.permute.xlu0 %201
    %203 = vrot.lane.b32.xlu0 %v112, 127
    %v204 = vpop.permute.xlu0 %203
    %205 = vrot.lane.b32.xlu0 %v113, 127
    %v206 = vpop.permute.xlu0 %205
    %207 = vrot.lane.b32.xlu0 %v114, 127
    %v208 = vpop.permute.xlu0 %207
    %vm209 = vcmp.lt.s32.totalorder %v124, 127
    %v210 = vsel %vm209, %v206, %v208
    %v211 = vsel %vm209, %v204, %v206
    %v212 = vsel %vm209, %v202, %v204
    %v213 = vsel %vm209, %v208, %v202
    %v214 = vperm.slane %v95, 5
    %v215 = vperm.slane %v96, 5
    %v216 = vperm.slane %v97, 5
    %v217 = vperm.slane %v98, 5
    %v218 = vmul.f32 %v212, %v214
    %v219 = vmul.f32 %v211, %v215
    %v220 = vmul.f32 %v210, %v216
    %v221 = vmul.f32 %v213, %v217
    %222 = vrot.lane.b32.xlu0 %v111, 113
    %v223 = vpop.permute.xlu0 %222
    %224 = vrot.lane.b32.xlu0 %v112, 113
    %v225 = vpop.permute.xlu0 %224
    %226 = vrot.lane.b32.xlu0 %v113, 113
    %v227 = vpop.permute.xlu0 %226
    %228 = vrot.lane.b32.xlu0 %v114, 113
    %v229 = vpop.permute.xlu0 %228
    %vm230 = vcmp.lt.s32.totalorder %v124, 113
    %v231 = vsel %vm230, %v227, %v229
    %v232 = vsel %vm230, %v225, %v227
    %v233 = vsel %vm230, %v223, %v225
    %v234 = vsel %vm230, %v229, %v223
    %v235 = vperm.slane %v95, 6
    %v236 = vperm.slane %v96, 6
    %v237 = vperm.slane %v97, 6
    %v238 = vperm.slane %v98, 6
    %v239 = vmul.f32 %v233, %v235
    %v240 = vmul.f32 %v232, %v236
    %v241 = vmul.f32 %v231, %v237
    %v242 = vmul.f32 %v234, %v238
    %243 = vrot.lane.b32.xlu0 %v111, 112
    %v244 = vpop.permute.xlu0 %243
    %245 = vrot.lane.b32.xlu0 %v112, 112
    %v246 = vpop.permute.xlu0 %245
    %247 = vrot.lane.b32.xlu0 %v113, 112
    %v248 = vpop.permute.xlu0 %247
    %249 = vrot.lane.b32.xlu0 %v114, 112
    %v250 = vpop.permute.xlu0 %249
    %vm251 = vcmp.lt.s32.totalorder %v124, 112
    %v252 = vsel %vm251, %v248, %v250
    %v253 = vsel %vm251, %v246, %v248
    %v254 = vsel %vm251, %v244, %v246
    %v255 = vsel %vm251, %v250, %v244
    %v256 = vperm.slane %v95, 7
    %v257 = vperm.slane %v96, 7
    %v258 = vperm.slane %v97, 7
    %v259 = vperm.slane %v98, 7
    %v260 = vmul.f32 %v254, %v256
    %v261 = vmul.f32 %v253, %v257
    %v262 = vmul.f32 %v252, %v258
    %v263 = vmul.f32 %v255, %v259
    %264 = vrot.lane.b32.xlu0 %v111, 111
    %v265 = vpop.permute.xlu0 %264
    %266 = vrot.lane.b32.xlu0 %v112, 111
    %v267 = vpop.permute.xlu0 %266
    %268 = vrot.lane.b32.xlu0 %v113, 111
    %v269 = vpop.permute.xlu0 %268
    %270 = vrot.lane.b32.xlu0 %v114, 111
    %v271 = vpop.permute.xlu0 %270
    %vm272 = vcmp.lt.s32.totalorder %v124, 111
    %v273 = vsel %vm272, %v269, %v271
    %v274 = vsel %vm272, %v267, %v269
    %v275 = vsel %vm272, %v265, %v267
    %v276 = vsel %vm272, %v271, %v265
    %v277 = vperm.slane %v99, 0
    %v278 = vperm.slane %v100, 0
    %v279 = vperm.slane %v101, 0
    %v280 = vperm.slane %v102, 0
    %v281 = vmul.f32 %v275, %v277
    %v282 = vmul.f32 %v274, %v278
    %v283 = vmul.f32 %v273, %v279
    %v284 = vmul.f32 %v276, %v280
    %v285 = vld [vmem:[#allocation2] sm:$0xff]
    %v286 = vld [vmem:[%s4] sm:$0xff]
    %288 = vset.pattern.permute.xlu0 0
    %289 = vperm.xlu0 %288, %v286
    %v290 = vpop.permute.xlu0 %289
    %vm292 = vcmask 588800
    %v294 = vsel %vm292, %v285, 0
    %296 = vmatpush.msra.mxu0 0.0
    %297 = vmatpush.msra.mxu0 0.0
    %298 = vmatpush.msra.mxu0 0.0
    %299 = vmatpush.msra.mxu0 0.0
    %300 = vmatpush.msra.mxu0 0.0
    %301 = vmatpush.msra.mxu0 0.0
    %302 = vmatpush.msra.mxu0 0.0
    %303 = vmatpush.msra.mxu0 %v281
    %304 = vmatpush.msra.mxu0 %v260
    %305 = vmatpush.msra.mxu0 %v239
    %306 = vmatpush.msra.mxu0 %v218
    %307 = vmatpush.msra.mxu0 %v111
    %308 = vmatpush.msra.mxu0 %v197
    %309 = vmatpush.msra.mxu0 %v176
    %310 = vmatpush.msra.mxu0 %v155
    %311 = vmatpush.msra.mxu0 %v134
    %312 = vmatmul.f32.gmra.mxu0 %v294
    %v313 = vpop.f32.mrf.mxu0
    %v314 = vadd.f32 %v290, %v313
    %315 = vdwg.mxu0
    %316 = vmatpush.msra.mxu0 0.0
    %317 = vmatpush.msra.mxu0 0.0
    %318 = vmatpush.msra.mxu0 0.0
    %319 = vmatpush.msra.mxu0 0.0
    %320 = vmatpush.msra.mxu0 0.0
    %321 = vmatpush.msra.mxu0 0.0
    %322 = vmatpush.msra.mxu0 0.0
    %323 = vmatpush.msra.mxu0 %v282
    %324 = vmatpush.msra.mxu0 %v261
    %325 = vmatpush.msra.mxu0 %v240
    %326 = vmatpush.msra.mxu0 %v219
    %327 = vmatpush.msra.mxu0 %v112
    %328 = vmatpush.msra.mxu0 %v198
    %329 = vmatpush.msra.mxu0 %v177
    %330 = vmatpush.msra.mxu0 %v156
    %331 = vmatpush.msra.mxu0 %v135
    %332 = vmatmul.f32.gmra.mxu0 %v294
    %v333 = vpop.f32.mrf.mxu0
    %v334 = vadd.f32 %v290, %v333
    %335 = vdwg.mxu0
    %336 = vmatpush.msra.mxu0 0.0
    %337 = vmatpush.msra.mxu0 0.0
    %338 = vmatpush.msra.mxu0 0.0
    %339 = vmatpush.msra.mxu0 0.0
    %340 = vmatpush.msra.mxu0 0.0
    %341 = vmatpush.msra.mxu0 0.0
    %342 = vmatpush.msra.mxu0 0.0
    %343 = vmatpush.msra.mxu0 %v283
    %344 = vmatpush.msra.mxu0 %v262
    %345 = vmatpush.msra.mxu0 %v241
    %346 = vmatpush.msra.mxu0 %v220
    %347 = vmatpush.msra.mxu0 %v113
    %348 = vmatpush.msra.mxu0 %v199
    %349 = vmatpush.msra.mxu0 %v178
    %350 = vmatpush.msra.mxu0 %v157
    %351 = vmatpush.msra.mxu0 %v136
    %352 = vmatmul.f32.gmra.mxu0 %v294
    %v353 = vpop.f32.mrf.mxu0
    %v354 = vadd.f32 %v290, %v353
    %355 = vdwg.mxu0
    %356 = vmatpush.msra.mxu0 0.0
    %357 = vmatpush.msra.mxu0 0.0
    %358 = vmatpush.msra.mxu0 0.0
    %359 = vmatpush.msra.mxu0 0.0
    %360 = vmatpush.msra.mxu0 0.0
    %361 = vmatpush.msra.mxu0 0.0
    %362 = vmatpush.msra.mxu0 0.0
    %363 = vmatpush.msra.mxu0 %v284
    %364 = vmatpush.msra.mxu0 %v263
    %365 = vmatpush.msra.mxu0 %v242
    %366 = vmatpush.msra.mxu0 %v221
    %367 = vmatpush.msra.mxu0 %v114
    %368 = vmatpush.msra.mxu0 %v200
    %369 = vmatpush.msra.mxu0 %v179
    %370 = vmatpush.msra.mxu0 %v158
    %371 = vmatpush.msra.mxu0 %v137
    %372 = vmatmul.f32.gmra.mxu0 %v294
    %v373 = vpop.f32.mrf.mxu0
    %v374 = vadd.f32 %v290, %v373
    %375 = vdwg.mxu0
    %v376 = vmax.f32 %v314, 0.0
    %v377 = vmax.f32 %v334, 0.0
    %v378 = vmax.f32 %v354, 0.0
    %v379 = vmax.f32 %v374, 0.0
    %v380 = vld [vmem:[#allocation4] sm:$0xff]
    %v381 = vld [vmem:[#allocation4 + $0x8] sm:$0xff]
    %v382 = vld [vmem:[#allocation4 + $0x10] sm:$0xff]
    %v383 = vld [vmem:[#allocation4 + $0x18] sm:$0xff]
    %v384 = vld [vmem:[%s4 + $0x8] sm:$0xff]
    %v385 = vld [vmem:[%s4 + $0x10] sm:$0xff]
    %v386 = vld [vmem:[%s4 + $0x18] sm:$0xff]
    %v387 = vld [vmem:[%s4 + $0x20] sm:$0xff]
    %389 = vset.pattern.permute.xlu0 0
    %390 = vperm.xlu0 %389, %v384
    %v391 = vpop.permute.xlu0 %390
    %394 = vset.pattern.permute.xlu0 0
    %395 = vperm.xlu0 %394, %v385
    %v396 = vpop.permute.xlu0 %395
    %399 = vset.pattern.permute.xlu0 0
    %400 = vperm.xlu0 %399, %v386
    %v401 = vpop.permute.xlu0 %400
    %404 = vset.pattern.permute.xlu0 0
    %405 = vperm.xlu0 %404, %v387
    %v406 = vpop.permute.xlu0 %405
    %vm408 = vcmask 64512
    %v410 = vsel %vm408, %v380, 0
    %v413 = vsel %vm408, %v381, 0
    %v416 = vsel %vm408, %v382, 0
    %v419 = vsel %vm408, %v383, 0
    %421 = vmatpush.msra.mxu0 0.0
    %422 = vmatpush.msra.mxu0 0.0
    %423 = vmatpush.msra.mxu0 0.0
    %424 = vmatpush.msra.mxu0 0.0
    %425 = vmatpush.msra.mxu0 0.0
    %426 = vmatpush.msra.mxu0 0.0
    %427 = vmatpush.msra.mxu0 0.0
    %428 = vmatpush.msra.mxu0 0.0
    %429 = vmatpush.msra.mxu0 0.0
    %430 = vmatpush.msra.mxu0 0.0
    %431 = vmatpush.msra.mxu0 0.0
    %432 = vmatpush.msra.mxu0 0.0
    %433 = vmatpush.msra.mxu0 0.0
    %434 = vmatpush.msra.mxu0 0.0
    %435 = vmatpush.msra.mxu0 0.0
    %436 = vmatpush.msra.mxu0 %v376
    %437 = vmatmul.f32.gmra.mxu0 %v410
    %v438 = vpop.f32.mrf.mxu0
    %v439 = vadd.f32 %v391, %v438
    %440 = vmatmul.f32.gmra.mxu0 %v413
    %v441 = vpop.f32.mrf.mxu0
    %v442 = vadd.f32 %v396, %v441
    %443 = vmatmul.f32.gmra.mxu0 %v416
    %v444 = vpop.f32.mrf.mxu0
    %v445 = vadd.f32 %v401, %v444
    %446 = vmatmul.f32.gmra.mxu0 %v419
    %v447 = vpop.f32.mrf.mxu0
    %v448 = vadd.f32 %v406, %v447
    %449 = vdwg.mxu0
    %450 = vmatpush.msra.mxu0 0.0
    %451 = vmatpush.msra.mxu0 0.0
    %452 = vmatpush.msra.mxu0 0.0
    %453 = vmatpush.msra.mxu0 0.0
    %454 = vmatpush.msra.mxu0 0.0
    %455 = vmatpush.msra.mxu0 0.0
    %456 = vmatpush.msra.mxu0 0.0
    %457 = vmatpush.msra.mxu0 0.0
    %458 = vmatpush.msra.mxu0 0.0
    %459 = vmatpush.msra.mxu0 0.0
    %460 = vmatpush.msra.mxu0 0.0
    %461 = vmatpush.msra.mxu0 0.0
    %462 = vmatpush.msra.mxu0 0.0
    %463 = vmatpush.msra.mxu0 0.0
    %464 = vmatpush.msra.mxu0 0.0
    %465 = vmatpush.msra.mxu0 %v377
    %466 = vmatmul.f32.gmra.mxu0 %v410
    %v467 = vpop.f32.mrf.mxu0
    %v468 = vadd.f32 %v391, %v467
    %469 = vmatmul.f32.gmra.mxu0 %v413
    %v470 = vpop.f32.mrf.mxu0
    %v471 = vadd.f32 %v396, %v470
    %472 = vmatmul.f32.gmra.mxu0 %v416
    %v473 = vpop.f32.mrf.mxu0
    %v474 = vadd.f32 %v401, %v473
    %475 = vmatmul.f32.gmra.mxu0 %v419
    %v476 = vpop.f32.mrf.mxu0
    %v477 = vadd.f32 %v406, %v476
    %478 = vdwg.mxu0
    %479 = vmatpush.msra.mxu0 0.0
    %480 = vmatpush.msra.mxu0 0.0
    %481 = vmatpush.msra.mxu0 0.0
    %482 = vmatpush.msra.mxu0 0.0
    %483 = vmatpush.msra.mxu0 0.0
    %484 = vmatpush.msra.mxu0 0.0
    %485 = vmatpush.msra.mxu0 0.0
    %486 = vmatpush.msra.mxu0 0.0
    %487 = vmatpush.msra.mxu0 0.0
    %488 = vmatpush.msra.mxu0 0.0
    %489 = vmatpush.msra.mxu0 0.0
    %490 = vmatpush.msra.mxu0 0.0
    %491 = vmatpush.msra.mxu0 0.0
    %492 = vmatpush.msra.mxu0 0.0
    %493 = vmatpush.msra.mxu0 0.0
    %494 = vmatpush.msra.mxu0 %v378
    %495 = vmatmul.f32.gmra.mxu0 %v410
    %v496 = vpop.f32.mrf.mxu0
    %v497 = vadd.f32 %v391, %v496
    %498 = vmatmul.f32.gmra.mxu0 %v413
    %v499 = vpop.f32.mrf.mxu0
    %v500 = vadd.f32 %v396, %v499
    %501 = vmatmul.f32.gmra.mxu0 %v416
    %v502 = vpop.f32.mrf.mxu0
    %v503 = vadd.f32 %v401, %v502
    %504 = vmatmul.f32.gmra.mxu0 %v419
    %v505 = vpop.f32.mrf.mxu0
    %v506 = vadd.f32 %v406, %v505
    %507 = vdwg.mxu0
    %508 = vmatpush.msra.mxu0 0.0
    %509 = vmatpush.msra.mxu0 0.0
    %510 = vmatpush.msra.mxu0 0.0
    %511 = vmatpush.msra.mxu0 0.0
    %512 = vmatpush.msra.mxu0 0.0
    %513 = vmatpush.msra.mxu0 0.0
    %514 = vmatpush.msra.mxu0 0.0
    %515 = vmatpush.msra.mxu0 0.0
    %516 = vmatpush.msra.mxu0 0.0
    %517 = vmatpush.msra.mxu0 0.0
    %518 = vmatpush.msra.mxu0 0.0
    %519 = vmatpush.msra.mxu0 0.0
    %520 = vmatpush.msra.mxu0 0.0
    %521 = vmatpush.msra.mxu0 0.0
    %522 = vmatpush.msra.mxu0 0.0
    %523 = vmatpush.msra.mxu0 %v379
    %524 = vmatmul.f32.gmra.mxu0 %v410
    %v525 = vpop.f32.mrf.mxu0
    %v526 = vadd.f32 %v391, %v525
    %527 = vmatmul.f32.gmra.mxu0 %v413
    %v528 = vpop.f32.mrf.mxu0
    %v529 = vadd.f32 %v396, %v528
    %530 = vmatmul.f32.gmra.mxu0 %v416
    %v531 = vpop.f32.mrf.mxu0
    %v532 = vadd.f32 %v401, %v531
    %533 = vmatmul.f32.gmra.mxu0 %v419
    %v534 = vpop.f32.mrf.mxu0
    %v535 = vadd.f32 %v406, %v534
    %536 = vdwg.mxu0
    %v537 = vmax.f32 %v439, 0.0
    %v538 = vmax.f32 %v468, 0.0
    %v539 = vmax.f32 %v497, 0.0
    %v540 = vmax.f32 %v526, 0.0
    %v541 = vmax.f32 %v442, 0.0
    %v542 = vmax.f32 %v471, 0.0
    %v543 = vmax.f32 %v500, 0.0
    %v544 = vmax.f32 %v529, 0.0
    %v545 = vmax.f32 %v445, 0.0
    %v546 = vmax.f32 %v474, 0.0
    %v547 = vmax.f32 %v503, 0.0
    %v548 = vmax.f32 %v532, 0.0
    %v549 = vmax.f32 %v448, 0.0
    %v550 = vmax.f32 %v477, 0.0
    %v551 = vmax.f32 %v506, 0.0
    %v552 = vmax.f32 %v535, 0.0
    %553 = vrot.lane.b32.xlu0 %v537, 17
    %v554 = vpop.permute.xlu0 %553
    %555 = vrot.lane.b32.xlu0 %v538, 17
    %v556 = vpop.permute.xlu0 %555
    %557 = vrot.lane.b32.xlu0 %v539, 17
    %v558 = vpop.permute.xlu0 %557
    %559 = vrot.lane.b32.xlu0 %v540, 17
    %v560 = vpop.permute.xlu0 %559
    %v561 = vsel %vm125, %v558, %v560
    %v562 = vsel %vm125, %v556, %v558
    %v563 = vsel %vm125, %v554, %v556
    %v564 = vsel %vm125, %v560, %v554
    %v565 = vmul.f32 %v564, %v130
    %v566 = vmul.f32 %v563, %v131
    %v567 = vmul.f32 %v562, %v132
    %v568 = vmul.f32 %v561, %v133
    %569 = vrot.lane.b32.xlu0 %v537, 16
    %v570 = vpop.permute.xlu0 %569
    %571 = vrot.lane.b32.xlu0 %v538, 16
    %v572 = vpop.permute.xlu0 %571
    %573 = vrot.lane.b32.xlu0 %v539, 16
    %v574 = vpop.permute.xlu0 %573
    %575 = vrot.lane.b32.xlu0 %v540, 16
    %v576 = vpop.permute.xlu0 %575
    %v577 = vsel %vm146, %v574, %v576
    %v578 = vsel %vm146, %v572, %v574
    %v579 = vsel %vm146, %v570, %v572
    %v580 = vsel %vm146, %v576, %v570
    %v581 = vmul.f32 %v580, %v151
    %v582 = vmul.f32 %v579, %v152
    %v583 = vmul.f32 %v578, %v153
    %v584 = vmul.f32 %v577, %v154
    %585 = vrot.lane.b32.xlu0 %v537, 15
    %v586 = vpop.permute.xlu0 %585
    %587 = vrot.lane.b32.xlu0 %v538, 15
    %v588 = vpop.permute.xlu0 %587
    %589 = vrot.lane.b32.xlu0 %v539, 15
    %v590 = vpop.permute.xlu0 %589
    %591 = vrot.lane.b32.xlu0 %v540, 15
    %v592 = vpop.permute.xlu0 %591
    %v593 = vsel %vm167, %v590, %v592
    %v594 = vsel %vm167, %v588, %v590
    %v595 = vsel %vm167, %v586, %v588
    %v596 = vsel %vm167, %v592, %v586
    %v597 = vmul.f32 %v596, %v172
    %v598 = vmul.f32 %v595, %v173
    %v599 = vmul.f32 %v594, %v174
    %v600 = vmul.f32 %v593, %v175
    %601 = vrot.lane.b32.xlu0 %v537, 1
    %v602 = vpop.permute.xlu0 %601
    %603 = vrot.lane.b32.xlu0 %v538, 1
    %v604 = vpop.permute.xlu0 %603
    %605 = vrot.lane.b32.xlu0 %v539, 1
    %v606 = vpop.permute.xlu0 %605
    %607 = vrot.lane.b32.xlu0 %v540, 1
    %v608 = vpop.permute.xlu0 %607
    %v609 = vsel %vm188, %v606, %v608
    %v610 = vsel %vm188, %v604, %v606
    %v611 = vsel %vm188, %v602, %v604
    %v612 = vsel %vm188, %v608, %v602
    %v613 = vmul.f32 %v612, %v193
    %v614 = vmul.f32 %v611, %v194
    %v615 = vmul.f32 %v610, %v195
    %v616 = vmul.f32 %v609, %v196
    %617 = vrot.lane.b32.xlu0 %v537, 127
    %v618 = vpop.permute.xlu0 %617
    %619 = vrot.lane.b32.xlu0 %v538, 127
    %v620 = vpop.permute.xlu0 %619
    %621 = vrot.lane.b32.xlu0 %v539, 127
    %v622 = vpop.permute.xlu0 %621
    %623 = vrot.lane.b32.xlu0 %v540, 127
    %v624 = vpop.permute.xlu0 %623
    %v625 = vsel %vm209, %v622, %v624
    %v626 = vsel %vm209, %v620, %v622
    %v627 = vsel %vm209, %v618, %v620
    %v628 = vsel %vm209, %v624, %v618
    %v629 = vmul.f32 %v627, %v214
    %v630 = vmul.f32 %v626, %v215
    %v631 = vmul.f32 %v625, %v216
    %v632 = vmul.f32 %v628, %v217
    %633 = vrot.lane.b32.xlu0 %v537, 113
    %v634 = vpop.permute.xlu0 %633
    %635 = vrot.lane.b32.xlu0 %v538, 113
    %v636 = vpop.permute.xlu0 %635
    %637 = vrot.lane.b32.xlu0 %v539, 113
    %v638 = vpop.permute.xlu0 %637
    %639 = vrot.lane.b32.xlu0 %v540, 113
    %v640 = vpop.permute.xlu0 %639
    %v641 = vsel %vm230, %v638, %v640
    %v642 = vsel %vm230, %v636, %v638
    %v643 = vsel %vm230, %v634, %v636
    %v644 = vsel %vm230, %v640, %v634
    %v645 = vmul.f32 %v643, %v235
    %v646 = vmul.f32 %v642, %v236
    %v647 = vmul.f32 %v641, %v237
    %v648 = vmul.f32 %v644, %v238
    %649 = vrot.lane.b32.xlu0 %v537, 112
    %v650 = vpop.permute.xlu0 %649
    %651 = vrot.lane.b32.xlu0 %v538, 112
    %v652 = vpop.permute.xlu0 %651
    %653 = vrot.lane.b32.xlu0 %v539, 112
    %v654 = vpop.permute.xlu0 %653
    %655 = vrot.lane.b32.xlu0 %v540, 112
    %v656 = vpop.permute.xlu0 %655
    %v657 = vsel %vm251, %v654, %v656
    %v658 = vsel %vm251, %v652, %v654
    %v659 = vsel %vm251, %v650, %v652
    %v660 = vsel %vm251, %v656, %v650
    %v661 = vmul.f32 %v659, %v256
    %v662 = vmul.f32 %v658, %v257
    %v663 = vmul.f32 %v657, %v258
    %v664 = vmul.f32 %v660, %v259
    %665 = vrot.lane.b32.xlu0 %v537, 111
    %v666 = vpop.permute.xlu0 %665
    %667 = vrot.lane.b32.xlu0 %v538, 111
    %v668 = vpop.permute.xlu0 %667
    %669 = vrot.lane.b32.xlu0 %v539, 111
    %v670 = vpop.permute.xlu0 %669
    %671 = vrot.lane.b32.xlu0 %v540, 111
    %v672 = vpop.permute.xlu0 %671
    %v673 = vsel %vm272, %v670, %v672
    %v674 = vsel %vm272, %v668, %v670
    %v675 = vsel %vm272, %v666, %v668
    %v676 = vsel %vm272, %v672, %v666
    %v677 = vmul.f32 %v675, %v277
    %v678 = vmul.f32 %v674, %v278
    %v679 = vmul.f32 %v673, %v279
    %v680 = vmul.f32 %v676, %v280
    %v681 = vld [vmem:[#allocation2 + $0x8] sm:$0xff]
    %v682 = vld [vmem:[%s4 + $0x28] sm:$0xff]
    %684 = vset.pattern.permute.xlu0 0
    %685 = vperm.xlu0 %684, %v682
    %v686 = vpop.permute.xlu0 %685
    %v689 = vsel %vm292, %v681, 0
    %691 = vmatpush.msra.mxu0 0.0
    %692 = vmatpush.msra.mxu0 0.0
    %693 = vmatpush.msra.mxu0 0.0
    %694 = vmatpush.msra.mxu0 0.0
    %695 = vmatpush.msra.mxu0 0.0
    %696 = vmatpush.msra.mxu0 0.0
    %697 = vmatpush.msra.mxu0 0.0
    %698 = vmatpush.msra.mxu0 %v677
    %699 = vmatpush.msra.mxu0 %v661
    %700 = vmatpush.msra.mxu0 %v645
    %701 = vmatpush.msra.mxu0 %v629
    %702 = vmatpush.msra.mxu0 %v537
    %703 = vmatpush.msra.mxu0 %v613
    %704 = vmatpush.msra.mxu0 %v597
    %705 = vmatpush.msra.mxu0 %v581
    %706 = vmatpush.msra.mxu0 %v565
    %707 = vmatmul.f32.gmra.mxu0 %v689
    %v708 = vpop.f32.mrf.mxu0
    %v709 = vadd.f32 %v686, %v708
    %710 = vdwg.mxu0
    %711 = vmatpush.msra.mxu0 0.0
    %712 = vmatpush.msra.mxu0 0.0
    %713 = vmatpush.msra.mxu0 0.0
    %714 = vmatpush.msra.mxu0 0.0
    %715 = vmatpush.msra.mxu0 0.0
    %716 = vmatpush.msra.mxu0 0.0
    %717 = vmatpush.msra.mxu0 0.0
    %718 = vmatpush.msra.mxu0 %v678
    %719 = vmatpush.msra.mxu0 %v662
    %720 = vmatpush.msra.mxu0 %v646
    %721 = vmatpush.msra.mxu0 %v630
    %722 = vmatpush.msra.mxu0 %v538
    %723 = vmatpush.msra.mxu0 %v614
    %724 = vmatpush.msra.mxu0 %v598
    %725 = vmatpush.msra.mxu0 %v582
    %726 = vmatpush.msra.mxu0 %v566
    %727 = vmatmul.f32.gmra.mxu0 %v689
    %v728 = vpop.f32.mrf.mxu0
    %v729 = vadd.f32 %v686, %v728
    %730 = vdwg.mxu0
    %731 = vmatpush.msra.mxu0 0.0
    %732 = vmatpush.msra.mxu0 0.0
    %733 = vmatpush.msra.mxu0 0.0
    %734 = vmatpush.msra.mxu0 0.0
    %735 = vmatpush.msra.mxu0 0.0
    %736 = vmatpush.msra.mxu0 0.0
    %737 = vmatpush.msra.mxu0 0.0
    %738 = vmatpush.msra.mxu0 %v679
    %739 = vmatpush.msra.mxu0 %v663
    %740 = vmatpush.msra.mxu0 %v647
    %741 = vmatpush.msra.mxu0 %v631
    %742 = vmatpush.msra.mxu0 %v539
    %743 = vmatpush.msra.mxu0 %v615
    %744 = vmatpush.msra.mxu0 %v599
    %745 = vmatpush.msra.mxu0 %v583
    %746 = vmatpush.msra.mxu0 %v567
    %747 = vmatmul.f32.gmra.mxu0 %v689
    %v748 = vpop.f32.mrf.mxu0
    %v749 = vadd.f32 %v686, %v748
    %750 = vdwg.mxu0
    %751 = vmatpush.msra.mxu0 0.0
    %752 = vmatpush.msra.mxu0 0.0
    %753 = vmatpush.msra.mxu0 0.0
    %754 = vmatpush.msra.mxu0 0.0
    %755 = vmatpush.msra.mxu0 0.0
    %756 = vmatpush.msra.mxu0 0.0
    %757 = vmatpush.msra.mxu0 0.0
    %758 = vmatpush.msra.mxu0 %v680
    %759 = vmatpush.msra.mxu0 %v664
    %760 = vmatpush.msra.mxu0 %v648
    %761 = vmatpush.msra.mxu0 %v632
    %762 = vmatpush.msra.mxu0 %v540
    %763 = vmatpush.msra.mxu0 %v616
    %764 = vmatpush.msra.mxu0 %v600
    %765 = vmatpush.msra.mxu0 %v584
    %766 = vmatpush.msra.mxu0 %v568
    %767 = vmatmul.f32.gmra.mxu0 %v689
    %v768 = vpop.f32.mrf.mxu0
    %v769 = vadd.f32 %v686, %v768
    %770 = vdwg.mxu0
    %v771 = vmax.f32 %v709, 0.0
    %v772 = vmax.f32 %v729, 0.0
    %v773 = vmax.f32 %v749, 0.0
    %v774 = vmax.f32 %v769, 0.0
    %v775 = vld [vmem:[#allocation4 + $0x20] sm:$0xff]
    %v776 = vld [vmem:[%s4 + $0x30] sm:$0xff]
    %778 = vset.pattern.permute.xlu0 0
    %779 = vperm.xlu0 %778, %v776
    %v780 = vpop.permute.xlu0 %779
    %v783 = vsel %vm408, %v775, 0
    %785 = vmatpush.msra.mxu0 0.0
    %786 = vmatpush.msra.mxu0 0.0
    %787 = vmatpush.msra.mxu0 0.0
    %788 = vmatpush.msra.mxu0 0.0
    %789 = vmatpush.msra.mxu0 0.0
    %790 = vmatpush.msra.mxu0 0.0
    %791 = vmatpush.msra.mxu0 0.0
    %792 = vmatpush.msra.mxu0 0.0
    %793 = vmatpush.msra.mxu0 0.0
    %794 = vmatpush.msra.mxu0 0.0
    %795 = vmatpush.msra.mxu0 0.0
    %796 = vmatpush.msra.mxu0 0.0
    %797 = vmatpush.msra.mxu0 0.0
    %798 = vmatpush.msra.mxu0 0.0
    %799 = vmatpush.msra.mxu0 0.0
    %800 = vmatpush.msra.mxu0 %v541
    %801 = vmatmul.f32.gmra.mxu0 %v783
    %v802 = vpop.f32.mrf.mxu0
    %v803 = vadd.f32 %v780, %v802
    %804 = vdwg.mxu0
    %805 = vmatpush.msra.mxu0 0.0
    %806 = vmatpush.msra.mxu0 0.0
    %807 = vmatpush.msra.mxu0 0.0
    %808 = vmatpush.msra.mxu0 0.0
    %809 = vmatpush.msra.mxu0 0.0
    %810 = vmatpush.msra.mxu0 0.0
    %811 = vmatpush.msra.mxu0 0.0
    %812 = vmatpush.msra.mxu0 0.0
    %813 = vmatpush.msra.mxu0 0.0
    %814 = vmatpush.msra.mxu0 0.0
    %815 = vmatpush.msra.mxu0 0.0
    %816 = vmatpush.msra.mxu0 0.0
    %817 = vmatpush.msra.mxu0 0.0
    %818 = vmatpush.msra.mxu0 0.0
    %819 = vmatpush.msra.mxu0 0.0
    %820 = vmatpush.msra.mxu0 %v542
    %821 = vmatmul.f32.gmra.mxu0 %v783
    %v822 = vpop.f32.mrf.mxu0
    %v823 = vadd.f32 %v780, %v822
    %824 = vdwg.mxu0
    %825 = vmatpush.msra.mxu0 0.0
    %826 = vmatpush.msra.mxu0 0.0
    %827 = vmatpush.msra.mxu0 0.0
    %828 = vmatpush.msra.mxu0 0.0
    %829 = vmatpush.msra.mxu0 0.0
    %830 = vmatpush.msra.mxu0 0.0
    %831 = vmatpush.msra.mxu0 0.0
    %832 = vmatpush.msra.mxu0 0.0
    %833 = vmatpush.msra.mxu0 0.0
    %834 = vmatpush.msra.mxu0 0.0
    %835 = vmatpush.msra.mxu0 0.0
    %836 = vmatpush.msra.mxu0 0.0
    %837 = vmatpush.msra.mxu0 0.0
    %838 = vmatpush.msra.mxu0 0.0
    %839 = vmatpush.msra.mxu0 0.0
    %840 = vmatpush.msra.mxu0 %v543
    %841 = vmatmul.f32.gmra.mxu0 %v783
    %v842 = vpop.f32.mrf.mxu0
    %v843 = vadd.f32 %v780, %v842
    %844 = vdwg.mxu0
    %845 = vmatpush.msra.mxu0 0.0
    %846 = vmatpush.msra.mxu0 0.0
    %847 = vmatpush.msra.mxu0 0.0
    %848 = vmatpush.msra.mxu0 0.0
    %849 = vmatpush.msra.mxu0 0.0
    %850 = vmatpush.msra.mxu0 0.0
    %851 = vmatpush.msra.mxu0 0.0
    %852 = vmatpush.msra.mxu0 0.0
    %853 = vmatpush.msra.mxu0 0.0
    %854 = vmatpush.msra.mxu0 0.0
    %855 = vmatpush.msra.mxu0 0.0
    %856 = vmatpush.msra.mxu0 0.0
    %857 = vmatpush.msra.mxu0 0.0
    %858 = vmatpush.msra.mxu0 0.0
    %859 = vmatpush.msra.mxu0 0.0
    %860 = vmatpush.msra.mxu0 %v544
    %861 = vmatmul.f32.gmra.mxu0 %v783
    %v862 = vpop.f32.mrf.mxu0
    %v863 = vadd.f32 %v780, %v862
    %864 = vdwg.mxu0
    %v865 = vmax.f32 %v803, 0.0
    %v866 = vmax.f32 %v823, 0.0
    %v867 = vmax.f32 %v843, 0.0
    %v868 = vmax.f32 %v863, 0.0
    %v869 = vadd.f32 %v771, %v865
    %v870 = vadd.f32 %v772, %v866
    %v871 = vadd.f32 %v773, %v867
    %v872 = vadd.f32 %v774, %v868
    %873 = vrot.lane.b32.xlu0 %v545, 17
    %v874 = vpop.permute.xlu0 %873
    %875 = vrot.lane.b32.xlu0 %v546, 17
    %v876 = vpop.permute.xlu0 %875
    %877 = vrot.lane.b32.xlu0 %v547, 17
    %v878 = vpop.permute.xlu0 %877
    %879 = vrot.lane.b32.xlu0 %v548, 17
    %v880 = vpop.permute.xlu0 %879
    %v881 = vsel %vm125, %v878, %v880
    %v882 = vsel %vm125, %v876, %v878
    %v883 = vsel %vm125, %v874, %v876
    %v884 = vsel %vm125, %v880, %v874
    %v885 = vmul.f32 %v884, %v130
    %v886 = vmul.f32 %v883, %v131
    %v887 = vmul.f32 %v882, %v132
    %v888 = vmul.f32 %v881, %v133
    %889 = vrot.lane.b32.xlu0 %v545, 16
    %v890 = vpop.permute.xlu0 %889
    %891 = vrot.lane.b32.xlu0 %v546, 16
    %v892 = vpop.permute.xlu0 %891
    %893 = vrot.lane.b32.xlu0 %v547, 16
    %v894 = vpop.permute.xlu0 %893
    %895 = vrot.lane.b32.xlu0 %v548, 16
    %v896 = vpop.permute.xlu0 %895
    %v897 = vsel %vm146, %v894, %v896
    %v898 = vsel %vm146, %v892, %v894
    %v899 = vsel %vm146, %v890, %v892
    %v900 = vsel %vm146, %v896, %v890
    %v901 = vmul.f32 %v900, %v151
    %v902 = vmul.f32 %v899, %v152
    %v903 = vmul.f32 %v898, %v153
    %v904 = vmul.f32 %v897, %v154
    %905 = vrot.lane.b32.xlu0 %v545, 15
    %v906 = vpop.permute.xlu0 %905
    %907 = vrot.lane.b32.xlu0 %v546, 15
    %v908 = vpop.permute.xlu0 %907
    %909 = vrot.lane.b32.xlu0 %v547, 15
    %v910 = vpop.permute.xlu0 %909
    %911 = vrot.lane.b32.xlu0 %v548, 15
    %v912 = vpop.permute.xlu0 %911
    %v913 = vsel %vm167, %v910, %v912
    %v914 = vsel %vm167, %v908, %v910
    %v915 = vsel %vm167, %v906, %v908
    %v916 = vsel %vm167, %v912, %v906
    %v917 = vmul.f32 %v916, %v172
    %v918 = vmul.f32 %v915, %v173
    %v919 = vmul.f32 %v914, %v174
    %v920 = vmul.f32 %v913, %v175
    %921 = vrot.lane.b32.xlu0 %v545, 1
    %v922 = vpop.permute.xlu0 %921
    %923 = vrot.lane.b32.xlu0 %v546, 1
    %v924 = vpop.permute.xlu0 %923
    %925 = vrot.lane.b32.xlu0 %v547, 1
    %v926 = vpop.permute.xlu0 %925
    %927 = vrot.lane.b32.xlu0 %v548, 1
    %v928 = vpop.permute.xlu0 %927
    %v929 = vsel %vm188, %v926, %v928
    %v930 = vsel %vm188, %v924, %v926
    %v931 = vsel %vm188, %v922, %v924
    %v932 = vsel %vm188, %v928, %v922
    %v933 = vmul.f32 %v932, %v193
    %v934 = vmul.f32 %v931, %v194
    %v935 = vmul.f32 %v930, %v195
    %v936 = vmul.f32 %v929, %v196
    %937 = vrot.lane.b32.xlu0 %v545, 127
    %v938 = vpop.permute.xlu0 %937
    %939 = vrot.lane.b32.xlu0 %v546, 127
    %v940 = vpop.permute.xlu0 %939
    %941 = vrot.lane.b32.xlu0 %v547, 127
    %v942 = vpop.permute.xlu0 %941
    %943 = vrot.lane.b32.xlu0 %v548, 127
    %v944 = vpop.permute.xlu0 %943
    %v945 = vsel %vm209, %v942, %v944
    %v946 = vsel %vm209, %v940, %v942
    %v947 = vsel %vm209, %v938, %v940
    %v948 = vsel %vm209, %v944, %v938
    %v949 = vmul.f32 %v947, %v214
    %v950 = vmul.f32 %v946, %v215
    %v951 = vmul.f32 %v945, %v216
    %v952 = vmul.f32 %v948, %v217
    %953 = vrot.lane.b32.xlu0 %v545, 113
    %v954 = vpop.permute.xlu0 %953
    %955 = vrot.lane.b32.xlu0 %v546, 113
    %v956 = vpop.permute.xlu0 %955
    %957 = vrot.lane.b32.xlu0 %v547, 113
    %v958 = vpop.permute.xlu0 %957
    %959 = vrot.lane.b32.xlu0 %v548, 113
    %v960 = vpop.permute.xlu0 %959
    %v961 = vsel %vm230, %v958, %v960
    %v962 = vsel %vm230, %v956, %v958
    %v963 = vsel %vm230, %v954, %v956
    %v964 = vsel %vm230, %v960, %v954
    %v965 = vmul.f32 %v963, %v235
    %v966 = vmul.f32 %v962, %v236
    %v967 = vmul.f32 %v961, %v237
    %v968 = vmul.f32 %v964, %v238
    %969 = vrot.lane.b32.xlu0 %v545, 112
    %v970 = vpop.permute.xlu0 %969
    %971 = vrot.lane.b32.xlu0 %v546, 112
    %v972 = vpop.permute.xlu0 %971
    %973 = vrot.lane.b32.xlu0 %v547, 112
    %v974 = vpop.permute.xlu0 %973
    %975 = vrot.lane.b32.xlu0 %v548, 112
    %v976 = vpop.permute.xlu0 %975
    %v977 = vsel %vm251, %v974, %v976
    %v978 = vsel %vm251, %v972, %v974
    %v979 = vsel %vm251, %v970, %v972
    %v980 = vsel %vm251, %v976, %v970
    %v981 = vmul.f32 %v979, %v256
    %v982 = vmul.f32 %v978, %v257
    %v983 = vmul.f32 %v977, %v258
    %v984 = vmul.f32 %v980, %v259
    %985 = vrot.lane.b32.xlu0 %v545, 111
    %v986 = vpop.permute.xlu0 %985
    %987 = vrot.lane.b32.xlu0 %v546, 111
    %v988 = vpop.permute.xlu0 %987
    %989 = vrot.lane.b32.xlu0 %v547, 111
    %v990 = vpop.permute.xlu0 %989
    %991 = vrot.lane.b32.xlu0 %v548, 111
    %v992 = vpop.permute.xlu0 %991
    %v993 = vsel %vm272, %v990, %v992
    %v994 = vsel %vm272, %v988, %v990
    %v995 = vsel %vm272, %v986, %v988
    %v996 = vsel %vm272, %v992, %v986
    %v997 = vmul.f32 %v995, %v277
    %v998 = vmul.f32 %v994, %v278
    %v999 = vmul.f32 %v993, %v279
    %v1000 = vmul.f32 %v996, %v280
    %v1001 = vld [vmem:[#allocation2 + $0x10] sm:$0xff]
    %v1002 = vld [vmem:[%s4 + $0x38] sm:$0xff]
    %1004 = vset.pattern.permute.xlu0 0
    %1005 = vperm.xlu0 %1004, %v1002
    %v1006 = vpop.permute.xlu0 %1005
    %v1009 = vsel %vm292, %v1001, 0
    %1011 = vmatpush.msra.mxu0 0.0
    %1012 = vmatpush.msra.mxu0 0.0
    %1013 = vmatpush.msra.mxu0 0.0
    %1014 = vmatpush.msra.mxu0 0.0
    %1015 = vmatpush.msra.mxu0 0.0
    %1016 = vmatpush.msra.mxu0 0.0
    %1017 = vmatpush.msra.mxu0 0.0
    %1018 = vmatpush.msra.mxu0 %v997
    %1019 = vmatpush.msra.mxu0 %v981
    %1020 = vmatpush.msra.mxu0 %v965
    %1021 = vmatpush.msra.mxu0 %v949
    %1022 = vmatpush.msra.mxu0 %v545
    %1023 = vmatpush.msra.mxu0 %v933
    %1024 = vmatpush.msra.mxu0 %v917
    %1025 = vmatpush.msra.mxu0 %v901
    %1026 = vmatpush.msra.mxu0 %v885
    %1027 = vmatmul.f32.gmra.mxu0 %v1009
    %v1028 = vpop.f32.mrf.mxu0
    %v1029 = vadd.f32 %v1006, %v1028
    %1030 = vdwg.mxu0
    %1031 = vmatpush.msra.mxu0 0.0
    %1032 = vmatpush.msra.mxu0 0.0
    %1033 = vmatpush.msra.mxu0 0.0
    %1034 = vmatpush.msra.mxu0 0.0
    %1035 = vmatpush.msra.mxu0 0.0
    %1036 = vmatpush.msra.mxu0 0.0
    %1037 = vmatpush.msra.mxu0 0.0
    %1038 = vmatpush.msra.mxu0 %v998
    %1039 = vmatpush.msra.mxu0 %v982
    %1040 = vmatpush.msra.mxu0 %v966
    %1041 = vmatpush.msra.mxu0 %v950
    %1042 = vmatpush.msra.mxu0 %v546
    %1043 = vmatpush.msra.mxu0 %v934
    %1044 = vmatpush.msra.mxu0 %v918
    %1045 = vmatpush.msra.mxu0 %v902
    %1046 = vmatpush.msra.mxu0 %v886
    %1047 = vmatmul.f32.gmra.mxu0 %v1009
    %v1048 = vpop.f32.mrf.mxu0
    %v1049 = vadd.f32 %v1006, %v1048
    %1050 = vdwg.mxu0
    %1051 = vmatpush.msra.mxu0 0.0
    %1052 = vmatpush.msra.mxu0 0.0
    %1053 = vmatpush.msra.mxu0 0.0
    %1054 = vmatpush.msra.mxu0 0.0
    %1055 = vmatpush.msra.mxu0 0.0
    %1056 = vmatpush.msra.mxu0 0.0
    %1057 = vmatpush.msra.mxu0 0.0
    %1058 = vmatpush.msra.mxu0 %v999
    %1059 = vmatpush.msra.mxu0 %v983
    %1060 = vmatpush.msra.mxu0 %v967
    %1061 = vmatpush.msra.mxu0 %v951
    %1062 = vmatpush.msra.mxu0 %v547
    %1063 = vmatpush.msra.mxu0 %v935
    %1064 = vmatpush.msra.mxu0 %v919
    %1065 = vmatpush.msra.mxu0 %v903
    %1066 = vmatpush.msra.mxu0 %v887
    %1067 = vmatmul.f32.gmra.mxu0 %v1009
    %v1068 = vpop.f32.mrf.mxu0
    %v1069 = vadd.f32 %v1006, %v1068
    %1070 = vdwg.mxu0
    %1071 = vmatpush.msra.mxu0 0.0
    %1072 = vmatpush.msra.mxu0 0.0
    %1073 = vmatpush.msra.mxu0 0.0
    %1074 = vmatpush.msra.mxu0 0.0
    %1075 = vmatpush.msra.mxu0 0.0
    %1076 = vmatpush.msra.mxu0 0.0
    %1077 = vmatpush.msra.mxu0 0.0
    %1078 = vmatpush.msra.mxu0 %v1000
    %1079 = vmatpush.msra.mxu0 %v984
    %1080 = vmatpush.msra.mxu0 %v968
    %1081 = vmatpush.msra.mxu0 %v952
    %1082 = vmatpush.msra.mxu0 %v548
    %1083 = vmatpush.msra.mxu0 %v936
    %1084 = vmatpush.msra.mxu0 %v920
    %1085 = vmatpush.msra.mxu0 %v904
    %1086 = vmatpush.msra.mxu0 %v888
    %1087 = vmatmul.f32.gmra.mxu0 %v1009
    %v1088 = vpop.f32.mrf.mxu0
    %v1089 = vadd.f32 %v1006, %v1088
    %1090 = vdwg.mxu0
    %v1091 = vmax.f32 %v1029, 0.0
    %v1092 = vmax.f32 %v1049, 0.0
    %v1093 = vmax.f32 %v1069, 0.0
    %v1094 = vmax.f32 %v1089, 0.0
    %1095 = vrot.lane.b32.xlu0 %v1091, 17
    %v1096 = vpop.permute.xlu0 %1095
    %1097 = vrot.lane.b32.xlu0 %v1092, 17
    %v1098 = vpop.permute.xlu0 %1097
    %1099 = vrot.lane.b32.xlu0 %v1093, 17
    %v1100 = vpop.permute.xlu0 %1099
    %1101 = vrot.lane.b32.xlu0 %v1094, 17
    %v1102 = vpop.permute.xlu0 %1101
    %v1103 = vsel %vm125, %v1100, %v1102
    %v1104 = vsel %vm125, %v1098, %v1100
    %v1105 = vsel %vm125, %v1096, %v1098
    %v1106 = vsel %vm125, %v1102, %v1096
    %v1107 = vmul.f32 %v1106, %v130
    %v1108 = vmul.f32 %v1105, %v131
    %v1109 = vmul.f32 %v1104, %v132
    %v1110 = vmul.f32 %v1103, %v133
    %1111 = vrot.lane.b32.xlu0 %v1091, 16
    %v1112 = vpop.permute.xlu0 %1111
    %1113 = vrot.lane.b32.xlu0 %v1092, 16
    %v1114 = vpop.permute.xlu0 %1113
    %1115 = vrot.lane.b32.xlu0 %v1093, 16
    %v1116 = vpop.permute.xlu0 %1115
    %1117 = vrot.lane.b32.xlu0 %v1094, 16
    %v1118 = vpop.permute.xlu0 %1117
    %v1119 = vsel %vm146, %v1116, %v1118
    %v1120 = vsel %vm146, %v1114, %v1116
    %v1121 = vsel %vm146, %v1112, %v1114
    %v1122 = vsel %vm146, %v1118, %v1112
    %v1123 = vmul.f32 %v1122, %v151
    %v1124 = vmul.f32 %v1121, %v152
    %v1125 = vmul.f32 %v1120, %v153
    %v1126 = vmul.f32 %v1119, %v154
    %1127 = vrot.lane.b32.xlu0 %v1091, 15
    %v1128 = vpop.permute.xlu0 %1127
    %1129 = vrot.lane.b32.xlu0 %v1092, 15
    %v1130 = vpop.permute.xlu0 %1129
    %1131 = vrot.lane.b32.xlu0 %v1093, 15
    %v1132 = vpop.permute.xlu0 %1131
    %1133 = vrot.lane.b32.xlu0 %v1094, 15
    %v1134 = vpop.permute.xlu0 %1133
    %v1135 = vsel %vm167, %v1132, %v1134
    %v1136 = vsel %vm167, %v1130, %v1132
    %v1137 = vsel %vm167, %v1128, %v1130
    %v1138 = vsel %vm167, %v1134, %v1128
    %v1139 = vmul.f32 %v1138, %v172
    %v1140 = vmul.f32 %v1137, %v173
    %v1141 = vmul.f32 %v1136, %v174
    %v1142 = vmul.f32 %v1135, %v175
    %1143 = vrot.lane.b32.xlu0 %v1091, 1
    %v1144 = vpop.permute.xlu0 %1143
    %1145 = vrot.lane.b32.xlu0 %v1092, 1
    %v1146 = vpop.permute.xlu0 %1145
    %1147 = vrot.lane.b32.xlu0 %v1093, 1
    %v1148 = vpop.permute.xlu0 %1147
    %1149 = vrot.lane.b32.xlu0 %v1094, 1
    %v1150 = vpop.permute.xlu0 %1149
    %v1151 = vsel %vm188, %v1148, %v1150
    %v1152 = vsel %vm188, %v1146, %v1148
    %v1153 = vsel %vm188, %v1144, %v1146
    %v1154 = vsel %vm188, %v1150, %v1144
    %v1155 = vmul.f32 %v1154, %v193
    %v1156 = vmul.f32 %v1153, %v194
    %v1157 = vmul.f32 %v1152, %v195
    %v1158 = vmul.f32 %v1151, %v196
    %1159 = vrot.lane.b32.xlu0 %v1091, 127
    %v1160 = vpop.permute.xlu0 %1159
    %1161 = vrot.lane.b32.xlu0 %v1092, 127
    %v1162 = vpop.permute.xlu0 %1161
    %1163 = vrot.lane.b32.xlu0 %v1093, 127
    %v1164 = vpop.permute.xlu0 %1163
    %1165 = vrot.lane.b32.xlu0 %v1094, 127
    %v1166 = vpop.permute.xlu0 %1165
    %v1167 = vsel %vm209, %v1164, %v1166
    %v1168 = vsel %vm209, %v1162, %v1164
    %v1169 = vsel %vm209, %v1160, %v1162
    %v1170 = vsel %vm209, %v1166, %v1160
    %v1171 = vmul.f32 %v1169, %v214
    %v1172 = vmul.f32 %v1168, %v215
    %v1173 = vmul.f32 %v1167, %v216
    %v1174 = vmul.f32 %v1170, %v217
    %1175 = vrot.lane.b32.xlu0 %v1091, 113
    %v1176 = vpop.permute.xlu0 %1175
    %1177 = vrot.lane.b32.xlu0 %v1092, 113
    %v1178 = vpop.permute.xlu0 %1177
    %1179 = vrot.lane.b32.xlu0 %v1093, 113
    %v1180 = vpop.permute.xlu0 %1179
    %1181 = vrot.lane.b32.xlu0 %v1094, 113
    %v1182 = vpop.permute.xlu0 %1181
    %v1183 = vsel %vm230, %v1180, %v1182
    %v1184 = vsel %vm230, %v1178, %v1180
    %v1185 = vsel %vm230, %v1176, %v1178
    %v1186 = vsel %vm230, %v1182, %v1176
    %v1187 = vmul.f32 %v1185, %v235
    %v1188 = vmul.f32 %v1184, %v236
    %v1189 = vmul.f32 %v1183, %v237
    %v1190 = vmul.f32 %v1186, %v238
    %1191 = vrot.lane.b32.xlu0 %v1091, 112
    %v1192 = vpop.permute.xlu0 %1191
    %1193 = vrot.lane.b32.xlu0 %v1092, 112
    %v1194 = vpop.permute.xlu0 %1193
    %1195 = vrot.lane.b32.xlu0 %v1093, 112
    %v1196 = vpop.permute.xlu0 %1195
    %1197 = vrot.lane.b32.xlu0 %v1094, 112
    %v1198 = vpop.permute.xlu0 %1197
    %v1199 = vsel %vm251, %v1196, %v1198
    %v1200 = vsel %vm251, %v1194, %v1196
    %v1201 = vsel %vm251, %v1192, %v1194
    %v1202 = vsel %vm251, %v1198, %v1192
    %v1203 = vmul.f32 %v1201, %v256
    %v1204 = vmul.f32 %v1200, %v257
    %v1205 = vmul.f32 %v1199, %v258
    %v1206 = vmul.f32 %v1202, %v259
    %1207 = vrot.lane.b32.xlu0 %v1091, 111
    %v1208 = vpop.permute.xlu0 %1207
    %1209 = vrot.lane.b32.xlu0 %v1092, 111
    %v1210 = vpop.permute.xlu0 %1209
    %1211 = vrot.lane.b32.xlu0 %v1093, 111
    %v1212 = vpop.permute.xlu0 %1211
    %1213 = vrot.lane.b32.xlu0 %v1094, 111
    %v1214 = vpop.permute.xlu0 %1213
    %v1215 = vsel %vm272, %v1212, %v1214
    %v1216 = vsel %vm272, %v1210, %v1212
    %v1217 = vsel %vm272, %v1208, %v1210
    %v1218 = vsel %vm272, %v1214, %v1208
    %v1219 = vmul.f32 %v1217, %v277
    %v1220 = vmul.f32 %v1216, %v278
    %v1221 = vmul.f32 %v1215, %v279
    %v1222 = vmul.f32 %v1218, %v280
    %v1223 = vld [vmem:[#allocation2 + $0x18] sm:$0xff]
    %v1224 = vld [vmem:[%s4 + $0x40] sm:$0xff]
    %1226 = vset.pattern.permute.xlu0 0
    %1227 = vperm.xlu0 %1226, %v1224
    %v1228 = vpop.permute.xlu0 %1227
    %v1231 = vsel %vm292, %v1223, 0
    %1233 = vmatpush.msra.mxu0 0.0
    %1234 = vmatpush.msra.mxu0 0.0
    %1235 = vmatpush.msra.mxu0 0.0
    %1236 = vmatpush.msra.mxu0 0.0
    %1237 = vmatpush.msra.mxu0 0.0
    %1238 = vmatpush.msra.mxu0 0.0
    %1239 = vmatpush.msra.mxu0 0.0
    %1240 = vmatpush.msra.mxu0 %v1219
    %1241 = vmatpush.msra.mxu0 %v1203
    %1242 = vmatpush.msra.mxu0 %v1187
    %1243 = vmatpush.msra.mxu0 %v1171
    %1244 = vmatpush.msra.mxu0 %v1091
    %1245 = vmatpush.msra.mxu0 %v1155
    %1246 = vmatpush.msra.mxu0 %v1139
    %1247 = vmatpush.msra.mxu0 %v1123
    %1248 = vmatpush.msra.mxu0 %v1107
    %1249 = vmatmul.f32.gmra.mxu0 %v1231
    %v1250 = vpop.f32.mrf.mxu0
    %v1251 = vadd.f32 %v1228, %v1250
    %1252 = vdwg.mxu0
    %1253 = vmatpush.msra.mxu0 0.0
    %1254 = vmatpush.msra.mxu0 0.0
    %1255 = vmatpush.msra.mxu0 0.0
    %1256 = vmatpush.msra.mxu0 0.0
    %1257 = vmatpush.msra.mxu0 0.0
    %1258 = vmatpush.msra.mxu0 0.0
    %1259 = vmatpush.msra.mxu0 0.0
    %1260 = vmatpush.msra.mxu0 %v1220
    %1261 = vmatpush.msra.mxu0 %v1204
    %1262 = vmatpush.msra.mxu0 %v1188
    %1263 = vmatpush.msra.mxu0 %v1172
    %1264 = vmatpush.msra.mxu0 %v1092
    %1265 = vmatpush.msra.mxu0 %v1156
    %1266 = vmatpush.msra.mxu0 %v1140
    %1267 = vmatpush.msra.mxu0 %v1124
    %1268 = vmatpush.msra.mxu0 %v1108
    %1269 = vmatmul.f32.gmra.mxu0 %v1231
    %v1270 = vpop.f32.mrf.mxu0
    %v1271 = vadd.f32 %v1228, %v1270
    %1272 = vdwg.mxu0
    %1273 = vmatpush.msra.mxu0 0.0
    %1274 = vmatpush.msra.mxu0 0.0
    %1275 = vmatpush.msra.mxu0 0.0
    %1276 = vmatpush.msra.mxu0 0.0
    %1277 = vmatpush.msra.mxu0 0.0
    %1278 = vmatpush.msra.mxu0 0.0
    %1279 = vmatpush.msra.mxu0 0.0
    %1280 = vmatpush.msra.mxu0 %v1221
    %1281 = vmatpush.msra.mxu0 %v1205
    %1282 = vmatpush.msra.mxu0 %v1189
    %1283 = vmatpush.msra.mxu0 %v1173
    %1284 = vmatpush.msra.mxu0 %v1093
    %1285 = vmatpush.msra.mxu0 %v1157
    %1286 = vmatpush.msra.mxu0 %v1141
    %1287 = vmatpush.msra.mxu0 %v1125
    %1288 = vmatpush.msra.mxu0 %v1109
    %1289 = vmatmul.f32.gmra.mxu0 %v1231
    %v1290 = vpop.f32.mrf.mxu0
    %v1291 = vadd.f32 %v1228, %v1290
    %1292 = vdwg.mxu0
    %1293 = vmatpush.msra.mxu0 0.0
    %1294 = vmatpush.msra.mxu0 0.0
    %1295 = vmatpush.msra.mxu0 0.0
    %1296 = vmatpush.msra.mxu0 0.0
    %1297 = vmatpush.msra.mxu0 0.0
    %1298 = vmatpush.msra.mxu0 0.0
    %1299 = vmatpush.msra.mxu0 0.0
    %1300 = vmatpush.msra.mxu0 %v1222
    %1301 = vmatpush.msra.mxu0 %v1206
    %1302 = vmatpush.msra.mxu0 %v1190
    %1303 = vmatpush.msra.mxu0 %v1174
    %1304 = vmatpush.msra.mxu0 %v1094
    %1305 = vmatpush.msra.mxu0 %v1158
    %1306 = vmatpush.msra.mxu0 %v1142
    %1307 = vmatpush.msra.mxu0 %v1126
    %1308 = vmatpush.msra.mxu0 %v1110
    %1309 = vmatmul.f32.gmra.mxu0 %v1231
    %v1310 = vpop.f32.mrf.mxu0
    %v1311 = vadd.f32 %v1228, %v1310
    %1312 = vdwg.mxu0
    %v1313 = vmax.f32 %v1251, 0.0
    %v1314 = vmax.f32 %v1271, 0.0
    %v1315 = vmax.f32 %v1291, 0.0
    %v1316 = vmax.f32 %v1311, 0.0
    %v1317 = vadd.f32 %v869, %v1313
    %v1318 = vadd.f32 %v870, %v1314
    %v1319 = vadd.f32 %v871, %v1315
    %v1320 = vadd.f32 %v872, %v1316
    %1321 = vrot.lane.b32.xlu0 %v549, 17
    %v1322 = vpop.permute.xlu0 %1321
    %1323 = vrot.lane.b32.xlu0 %v550, 17
    %v1324 = vpop.permute.xlu0 %1323
    %1325 = vrot.lane.b32.xlu0 %v551, 17
    %v1326 = vpop.permute.xlu0 %1325
    %1327 = vrot.lane.b32.xlu0 %v552, 17
    %v1328 = vpop.permute.xlu0 %1327
    %v1329 = vsel %vm125, %v1326, %v1328
    %v1330 = vsel %vm125, %v1324, %v1326
    %v1331 = vsel %vm125, %v1322, %v1324
    %v1332 = vsel %vm125, %v1328, %v1322
    %v1333 = vperm.slane %v103, 0
    %v1334 = vperm.slane %v104, 0
    %v1335 = vperm.slane %v105, 0
    %v1336 = vperm.slane %v106, 0
    %v1337 = vadd.f32 %v1332, %v1333
    %v1338 = vadd.f32 %v1331, %v1334
    %v1339 = vadd.f32 %v1330, %v1335
    %v1340 = vadd.f32 %v1329, %v1336
    %v1341 = vmax.f32 %v549, %v1337
    %v1342 = vmax.f32 %v550, %v1338
    %v1343 = vmax.f32 %v551, %v1339
    %v1344 = vmax.f32 %v552, %v1340
    %1345 = vrot.lane.b32.xlu0 %v549, 16
    %v1346 = vpop.permute.xlu0 %1345
    %1347 = vrot.lane.b32.xlu0 %v550, 16
    %v1348 = vpop.permute.xlu0 %1347
    %1349 = vrot.lane.b32.xlu0 %v551, 16
    %v1350 = vpop.permute.xlu0 %1349
    %1351 = vrot.lane.b32.xlu0 %v552, 16
    %v1352 = vpop.permute.xlu0 %1351
    %v1353 = vsel %vm146, %v1350, %v1352
    %v1354 = vsel %vm146, %v1348, %v1350
    %v1355 = vsel %vm146, %v1346, %v1348
    %v1356 = vsel %vm146, %v1352, %v1346
    %v1357 = vperm.slane %v103, 1
    %v1358 = vperm.slane %v104, 1
    %v1359 = vperm.slane %v105, 1
    %v1360 = vperm.slane %v106, 1
    %v1361 = vadd.f32 %v1356, %v1357
    %v1362 = vadd.f32 %v1355, %v1358
    %v1363 = vadd.f32 %v1354, %v1359
    %v1364 = vadd.f32 %v1353, %v1360
    %v1365 = vmax.f32 %v1341, %v1361
    %v1366 = vmax.f32 %v1342, %v1362
    %v1367 = vmax.f32 %v1343, %v1363
    %v1368 = vmax.f32 %v1344, %v1364
    %1369 = vrot.lane.b32.xlu0 %v549, 15
    %v1370 = vpop.permute.xlu0 %1369
    %1371 = vrot.lane.b32.xlu0 %v550, 15
    %v1372 = vpop.permute.xlu0 %1371
    %1373 = vrot.lane.b32.xlu0 %v551, 15
    %v1374 = vpop.permute.xlu0 %1373
    %1375 = vrot.lane.b32.xlu0 %v552, 15
    %v1376 = vpop.permute.xlu0 %1375
    %v1377 = vsel %vm167, %v1374, %v1376
    %v1378 = vsel %vm167, %v1372, %v1374
    %v1379 = vsel %vm167, %v1370, %v1372
    %v1380 = vsel %vm167, %v1376, %v1370
    %v1381 = vperm.slane %v103, 2
    %v1382 = vperm.slane %v104, 2
    %v1383 = vperm.slane %v105, 2
    %v1384 = vperm.slane %v106, 2
    %v1385 = vadd.f32 %v1380, %v1381
    %v1386 = vadd.f32 %v1379, %v1382
    %v1387 = vadd.f32 %v1378, %v1383
    %v1388 = vadd.f32 %v1377, %v1384
    %v1389 = vmax.f32 %v1365, %v1385
    %v1390 = vmax.f32 %v1366, %v1386
    %v1391 = vmax.f32 %v1367, %v1387
    %v1392 = vmax.f32 %v1368, %v1388
    %1393 = vrot.lane.b32.xlu0 %v549, 1
    %v1394 = vpop.permute.xlu0 %1393
    %1395 = vrot.lane.b32.xlu0 %v550, 1
    %v1396 = vpop.permute.xlu0 %1395
    %1397 = vrot.lane.b32.xlu0 %v551, 1
    %v1398 = vpop.permute.xlu0 %1397
    %1399 = vrot.lane.b32.xlu0 %v552, 1
    %v1400 = vpop.permute.xlu0 %1399
    %v1401 = vsel %vm188, %v1398, %v1400
    %v1402 = vsel %vm188, %v1396, %v1398
    %v1403 = vsel %vm188, %v1394, %v1396
    %v1404 = vsel %vm188, %v1400, %v1394
    %v1405 = vperm.slane %v103, 3
    %v1406 = vperm.slane %v104, 3
    %v1407 = vperm.slane %v105, 3
    %v1408 = vperm.slane %v106, 3
    %v1409 = vadd.f32 %v1404, %v1405
    %v1410 = vadd.f32 %v1403, %v1406
    %v1411 = vadd.f32 %v1402, %v1407
    %v1412 = vadd.f32 %v1401, %v1408
    %v1413 = vmax.f32 %v1389, %v1409
    %v1414 = vmax.f32 %v1390, %v1410
    %v1415 = vmax.f32 %v1391, %v1411
    %v1416 = vmax.f32 %v1392, %v1412
    %1417 = vrot.lane.b32.xlu0 %v549, 127
    %v1418 = vpop.permute.xlu0 %1417
    %1419 = vrot.lane.b32.xlu0 %v550, 127
    %v1420 = vpop.permute.xlu0 %1419
    %1421 = vrot.lane.b32.xlu0 %v551, 127
    %v1422 = vpop.permute.xlu0 %1421
    %1423 = vrot.lane.b32.xlu0 %v552, 127
    %v1424 = vpop.permute.xlu0 %1423
    %v1425 = vsel %vm209, %v1422, %v1424
    %v1426 = vsel %vm209, %v1420, %v1422
    %v1427 = vsel %vm209, %v1418, %v1420
    %v1428 = vsel %vm209, %v1424, %v1418
    %v1429 = vperm.slane %v103, 5
    %v1430 = vperm.slane %v104, 5
    %v1431 = vperm.slane %v105, 5
    %v1432 = vperm.slane %v106, 5
    %v1433 = vadd.f32 %v1427, %v1429
    %v1434 = vadd.f32 %v1426, %v1430
    %v1435 = vadd.f32 %v1425, %v1431
    %v1436 = vadd.f32 %v1428, %v1432
    %v1437 = vmax.f32 %v1413, %v1433
    %v1438 = vmax.f32 %v1414, %v1434
    %v1439 = vmax.f32 %v1415, %v1435
    %v1440 = vmax.f32 %v1416, %v1436
    %1441 = vrot.lane.b32.xlu0 %v549, 113
    %v1442 = vpop.permute.xlu0 %1441
    %1443 = vrot.lane.b32.xlu0 %v550, 113
    %v1444 = vpop.permute.xlu0 %1443
    %1445 = vrot.lane.b32.xlu0 %v551, 113
    %v1446 = vpop.permute.xlu0 %1445
    %1447 = vrot.lane.b32.xlu0 %v552, 113
    %v1448 = vpop.permute.xlu0 %1447
    %v1449 = vsel %vm230, %v1446, %v1448
    %v1450 = vsel %vm230, %v1444, %v1446
    %v1451 = vsel %vm230, %v1442, %v1444
    %v1452 = vsel %vm230, %v1448, %v1442
    %v1453 = vperm.slane %v103, 6
    %v1454 = vperm.slane %v104, 6
    %v1455 = vperm.slane %v105, 6
    %v1456 = vperm.slane %v106, 6
    %v1457 = vadd.f32 %v1451, %v1453
    %v1458 = vadd.f32 %v1450, %v1454
    %v1459 = vadd.f32 %v1449, %v1455
    %v1460 = vadd.f32 %v1452, %v1456
    %v1461 = vmax.f32 %v1437, %v1457
    %v1462 = vmax.f32 %v1438, %v1458
    %v1463 = vmax.f32 %v1439, %v1459
    %v1464 = vmax.f32 %v1440, %v1460
    %1465 = vrot.lane.b32.xlu0 %v549, 112
    %v1466 = vpop.permute.xlu0 %1465
    %1467 = vrot.lane.b32.xlu0 %v550, 112
    %v1468 = vpop.permute.xlu0 %1467
    %1469 = vrot.lane.b32.xlu0 %v551, 112
    %v1470 = vpop.permute.xlu0 %1469
    %1471 = vrot.lane.b32.xlu0 %v552, 112
    %v1472 = vpop.permute.xlu0 %1471
    %v1473 = vsel %vm251, %v1470, %v1472
    %v1474 = vsel %vm251, %v1468, %v1470
    %v1475 = vsel %vm251, %v1466, %v1468
    %v1476 = vsel %vm251, %v1472, %v1466
    %v1477 = vperm.slane %v103, 7
    %v1478 = vperm.slane %v104, 7
    %v1479 = vperm.slane %v105, 7
    %v1480 = vperm.slane %v106, 7
    %v1481 = vadd.f32 %v1475, %v1477
    %v1482 = vadd.f32 %v1474, %v1478
    %v1483 = vadd.f32 %v1473, %v1479
    %v1484 = vadd.f32 %v1476, %v1480
    %v1485 = vmax.f32 %v1461, %v1481
    %v1486 = vmax.f32 %v1462, %v1482
    %v1487 = vmax.f32 %v1463, %v1483
    %v1488 = vmax.f32 %v1464, %v1484
    %1489 = vrot.lane.b32.xlu0 %v549, 111
    %v1490 = vpop.permute.xlu0 %1489
    %1491 = vrot.lane.b32.xlu0 %v550, 111
    %v1492 = vpop.permute.xlu0 %1491
    %1493 = vrot.lane.b32.xlu0 %v551, 111
    %v1494 = vpop.permute.xlu0 %1493
    %1495 = vrot.lane.b32.xlu0 %v552, 111
    %v1496 = vpop.permute.xlu0 %1495
    %v1497 = vsel %vm272, %v1494, %v1496
    %v1498 = vsel %vm272, %v1492, %v1494
    %v1499 = vsel %vm272, %v1490, %v1492
    %v1500 = vsel %vm272, %v1496, %v1490
    %v1501 = vperm.slane %v107, 0
    %v1502 = vperm.slane %v108, 0
    %v1503 = vperm.slane %v109, 0
    %v1504 = vperm.slane %v110, 0
    %v1505 = vadd.f32 %v1499, %v1501
    %v1506 = vadd.f32 %v1498, %v1502
    %v1507 = vadd.f32 %v1497, %v1503
    %v1508 = vadd.f32 %v1500, %v1504
    %v1509 = vmax.f32 %v1485, %v1505
    %v1510 = vmax.f32 %v1486, %v1506
    %v1511 = vmax.f32 %v1487, %v1507
    %v1512 = vmax.f32 %v1488, %v1508
    %v1513 = vld [vmem:[#allocation4 + $0x28] sm:$0xff]
    %v1515 = vsel %vm408, %v1513, 0
    %1517 = vmatpush.msra.mxu0 0.0
    %1518 = vmatpush.msra.mxu0 0.0
    %1519 = vmatpush.msra.mxu0 0.0
    %1520 = vmatpush.msra.mxu0 0.0
    %1521 = vmatpush.msra.mxu0 0.0
    %1522 = vmatpush.msra.mxu0 0.0
    %1523 = vmatpush.msra.mxu0 0.0
    %1524 = vmatpush.msra.mxu0 0.0
    %1525 = vmatpush.msra.mxu0 0.0
    %1526 = vmatpush.msra.mxu0 0.0
    %1527 = vmatpush.msra.mxu0 0.0
    %1528 = vmatpush.msra.mxu0 0.0
    %1529 = vmatpush.msra.mxu0 0.0
    %1530 = vmatpush.msra.mxu0 0.0
    %1531 = vmatpush.msra.mxu0 0.0
    %1532 = vmatpush.msra.mxu0 %v1509
    %1533 = vmatmul.f32.gmra.mxu0 %v1515
    %v1534 = vpop.f32.mrf.mxu0
    %v1535 = vadd.f32 0.0, %v1534
    %1536 = vdwg.mxu0
    %1537 = vmatpush.msra.mxu0 0.0
    %1538 = vmatpush.msra.mxu0 0.0
    %1539 = vmatpush.msra.mxu0 0.0
    %1540 = vmatpush.msra.mxu0 0.0
    %1541 = vmatpush.msra.mxu0 0.0
    %1542 = vmatpush.msra.mxu0 0.0
    %1543 = vmatpush.msra.mxu0 0.0
    %1544 = vmatpush.msra.mxu0 0.0
    %1545 = vmatpush.msra.mxu0 0.0
    %1546 = vmatpush.msra.mxu0 0.0
    %1547 = vmatpush.msra.mxu0 0.0
    %1548 = vmatpush.msra.mxu0 0.0
    %1549 = vmatpush.msra.mxu0 0.0
    %1550 = vmatpush.msra.mxu0 0.0
    %1551 = vmatpush.msra.mxu0 0.0
    %1552 = vmatpush.msra.mxu0 %v1510
    %1553 = vmatmul.f32.gmra.mxu0 %v1515
    %v1554 = vpop.f32.mrf.mxu0
    %v1555 = vadd.f32 0.0, %v1554
    %1556 = vdwg.mxu0
    %1557 = vmatpush.msra.mxu0 0.0
    %1558 = vmatpush.msra.mxu0 0.0
    %1559 = vmatpush.msra.mxu0 0.0
    %1560 = vmatpush.msra.mxu0 0.0
    %1561 = vmatpush.msra.mxu0 0.0
    %1562 = vmatpush.msra.mxu0 0.0
    %1563 = vmatpush.msra.mxu0 0.0
    %1564 = vmatpush.msra.mxu0 0.0
    %1565 = vmatpush.msra.mxu0 0.0
    %1566 = vmatpush.msra.mxu0 0.0
    %1567 = vmatpush.msra.mxu0 0.0
    %1568 = vmatpush.msra.mxu0 0.0
    %1569 = vmatpush.msra.mxu0 0.0
    %1570 = vmatpush.msra.mxu0 0.0
    %1571 = vmatpush.msra.mxu0 0.0
    %1572 = vmatpush.msra.mxu0 %v1511
    %1573 = vmatmul.f32.gmra.mxu0 %v1515
    %v1574 = vpop.f32.mrf.mxu0
    %v1575 = vadd.f32 0.0, %v1574
    %1576 = vdwg.mxu0
    %1577 = vmatpush.msra.mxu0 0.0
    %1578 = vmatpush.msra.mxu0 0.0
    %1579 = vmatpush.msra.mxu0 0.0
    %1580 = vmatpush.msra.mxu0 0.0
    %1581 = vmatpush.msra.mxu0 0.0
    %1582 = vmatpush.msra.mxu0 0.0
    %1583 = vmatpush.msra.mxu0 0.0
    %1584 = vmatpush.msra.mxu0 0.0
    %1585 = vmatpush.msra.mxu0 0.0
    %1586 = vmatpush.msra.mxu0 0.0
    %1587 = vmatpush.msra.mxu0 0.0
    %1588 = vmatpush.msra.mxu0 0.0
    %1589 = vmatpush.msra.mxu0 0.0
    %1590 = vmatpush.msra.mxu0 0.0
    %1591 = vmatpush.msra.mxu0 0.0
    %1592 = vmatpush.msra.mxu0 %v1512
    %1593 = vmatmul.f32.gmra.mxu0 %v1515
    %v1594 = vpop.f32.mrf.mxu0
    %v1595 = vadd.f32 0.0, %v1594
    %1596 = vdwg.mxu0
    %v1597 = vadd.f32 %v1317, %v1535
    %v1598 = vadd.f32 %v1318, %v1555
    %v1599 = vadd.f32 %v1319, %v1575
    %v1600 = vadd.f32 %v1320, %v1595
    %v1601 = vld [vmem:[#allocation7] sm:$0xff]
    %v1602 = vld [vmem:[#allocation7 + $0x8] sm:$0xff]
    %v1603 = vld [vmem:[#allocation7 + $0x10] sm:$0xff]
    %v1604 = vld [vmem:[#allocation7 + $0x18] sm:$0xff]
    %v1605 = vld [vmem:[#allocation7 + $0x20] sm:$0xff]
    %v1606 = vld [vmem:[#allocation7 + $0x28] sm:$0xff]
    %v1607 = vld [vmem:[#allocation7 + $0x30] sm:$0xff]
    %v1608 = vld [vmem:[#allocation7 + $0x38] sm:$0xff]
    %v1609 = vld [vmem:[#allocation7 + $0x40] sm:$0xff]
    %v1610 = vld [vmem:[#allocation7 + $0x48] sm:$0xff]
    %v1611 = vld [vmem:[#allocation7 + $0x50] sm:$0xff]
    %v1612 = vld [vmem:[#allocation7 + $0x58] sm:$0xff]
    %v1613 = vld [vmem:[#allocation7 + $0x60] sm:$0xff]
    %v1614 = vld [vmem:[#allocation7 + $0x68] sm:$0xff]
    %v1615 = vld [vmem:[#allocation7 + $0x70] sm:$0xff]
    %v1616 = vld [vmem:[#allocation7 + $0x78] sm:$0xff]
    %v1617 = vld [vmem:[#allocation7 + $0x80] sm:$0xff]
    %v1618 = vld [vmem:[#allocation7 + $0x88] sm:$0xff]
    %v1619 = vld [vmem:[#allocation7 + $0x90] sm:$0xff]
    %v1620 = vld [vmem:[#allocation7 + $0x98] sm:$0xff]
    %v1621 = vld [vmem:[#allocation7 + $0xa0] sm:$0xff]
    %v1622 = vld [vmem:[#allocation7 + $0xa8] sm:$0xff]
    %v1623 = vld [vmem:[#allocation7 + $0xb0] sm:$0xff]
    %v1624 = vld [vmem:[#allocation7 + $0xb8] sm:$0xff]
    %v1625 = vld [vmem:[#allocation7 + $0xc0] sm:$0xff]
    %v1626 = vld [vmem:[#allocation7 + $0xc8] sm:$0xff]
    %v1627 = vld [vmem:[#allocation7 + $0xd0] sm:$0xff]
    %v1628 = vld [vmem:[#allocation7 + $0xd8] sm:$0xff]
    %v1629 = vld [vmem:[#allocation7 + $0xe0] sm:$0xff]
    %v1630 = vld [vmem:[#allocation7 + $0xe8] sm:$0xff]
    %v1631 = vld [vmem:[#allocation7 + $0xf0] sm:$0xff]
    %v1632 = vld [vmem:[#allocation7 + $0xf8] sm:$0xff]
    %v1633 = vld [vmem:[#allocation7 + $0x100] sm:$0xff]
    %v1634 = vld [vmem:[#allocation7 + $0x108] sm:$0xff]
    %v1635 = vld [vmem:[#allocation7 + $0x110] sm:$0xff]
    %v1636 = vld [vmem:[#allocation7 + $0x118] sm:$0xff]
    %v1637 = vld [vmem:[#allocation7 + $0x120] sm:$0xff]
    %v1638 = vld [vmem:[#allocation7 + $0x128] sm:$0xff]
    %v1639 = vld [vmem:[#allocation7 + $0x130] sm:$0xff]
    %v1640 = vld [vmem:[#allocation7 + $0x138] sm:$0xff]
    %v1641 = vld [vmem:[#allocation7 + $0x140] sm:$0xff]
    %v1642 = vld [vmem:[#allocation7 + $0x148] sm:$0xff]
    %v1643 = vld [vmem:[#allocation7 + $0x150] sm:$0xff]
    %v1644 = vld [vmem:[#allocation7 + $0x158] sm:$0xff]
    %v1645 = vld [vmem:[#allocation7 + $0x160] sm:$0xff]
    %v1646 = vld [vmem:[#allocation7 + $0x168] sm:$0xff]
    %v1647 = vld [vmem:[#allocation7 + $0x170] sm:$0xff]
    %v1648 = vld [vmem:[#allocation7 + $0x178] sm:$0xff]
    %v1649 = vld [vmem:[#allocation7 + $0x180] sm:$0xff]
    %v1650 = vld [vmem:[#allocation7 + $0x188] sm:$0xff]
    %v1651 = vld [vmem:[#allocation7 + $0x190] sm:$0xff]
    %v1652 = vld [vmem:[#allocation7 + $0x198] sm:$0xff]
    %v1653 = vld [vmem:[#allocation7 + $0x1a0] sm:$0xff]
    %v1654 = vld [vmem:[#allocation7 + $0x1a8] sm:$0xff]
    %v1655 = vld [vmem:[#allocation7 + $0x1b0] sm:$0xff]
    %v1656 = vld [vmem:[#allocation7 + $0x1b8] sm:$0xff]
    %v1657 = vld [vmem:[#allocation7 + $0x1c0] sm:$0xff]
    %v1658 = vld [vmem:[#allocation7 + $0x1c8] sm:$0xff]
    %v1659 = vld [vmem:[#allocation7 + $0x1d0] sm:$0xff]
    %v1660 = vld [vmem:[#allocation7 + $0x1d8] sm:$0xff]
    %v1661 = vld [vmem:[#allocation7 + $0x1e0] sm:$0xff]
    %v1662 = vld [vmem:[#allocation7 + $0x1e8] sm:$0xff]
    %v1663 = vld [vmem:[#allocation7 + $0x1f0] sm:$0xff]
    %v1664 = vld [vmem:[#allocation7 + $0x1f8] sm:$0xff]
    %1665 = vrot.lane.b32.xlu0 %v1597, 127
    %v1666 = vpop.permute.xlu0 %1665
    %1667 = vrot.lane.b32.xlu0 %v1598, 127
    %v1668 = vpop.permute.xlu0 %1667
    %1669 = vrot.lane.b32.xlu0 %v1599, 127
    %v1670 = vpop.permute.xlu0 %1669
    %1671 = vrot.lane.b32.xlu0 %v1600, 127
    %v1672 = vpop.permute.xlu0 %1671
    %v1673 = vsel %vm209, %v1670, %v1672
    %v1674 = vsel %vm209, %v1668, %v1670
    %v1675 = vsel %vm209, %v1666, %v1668
    %v1676 = vsel %vm209, %v1672, %v1666
    %v1677 = vmax.f32 %v1597, %v1675
    %v1678 = vmax.f32 %v1598, %v1674
    %v1679 = vmax.f32 %v1599, %v1673
    %v1680 = vmax.f32 %v1600, %v1676
    %1681 = vrot.lane.b32.xlu0 %v1597, 112
    %v1682 = vpop.permute.xlu0 %1681
    %1683 = vrot.lane.b32.xlu0 %v1598, 112
    %v1684 = vpop.permute.xlu0 %1683
    %1685 = vrot.lane.b32.xlu0 %v1599, 112
    %v1686 = vpop.permute.xlu0 %1685
    %1687 = vrot.lane.b32.xlu0 %v1600, 112
    %v1688 = vpop.permute.xlu0 %1687
    %v1689 = vsel %vm251, %v1686, %v1688
    %v1690 = vsel %vm251, %v1684, %v1686
    %v1691 = vsel %vm251, %v1682, %v1684
    %v1692 = vsel %vm251, %v1688, %v1682
    %v1693 = vmax.f32 %v1677, %v1691
    %v1694 = vmax.f32 %v1678, %v1690
    %v1695 = vmax.f32 %v1679, %v1689
    %v1696 = vmax.f32 %v1680, %v1692
    %1697 = vrot.lane.b32.xlu0 %v1597, 111
    %v1698 = vpop.permute.xlu0 %1697
    %1699 = vrot.lane.b32.xlu0 %v1598, 111
    %v1700 = vpop.permute.xlu0 %1699
    %1701 = vrot.lane.b32.xlu0 %v1599, 111
    %v1702 = vpop.permute.xlu0 %1701
    %1703 = vrot.lane.b32.xlu0 %v1600, 111
    %v1704 = vpop.permute.xlu0 %1703
    %v1705 = vsel %vm272, %v1702, %v1704
    %v1706 = vsel %vm272, %v1700, %v1702
    %v1707 = vsel %vm272, %v1698, %v1700
    %v1708 = vsel %vm272, %v1704, %v1698
    %v1709 = vmax.f32 %v1693, %v1707
    %v1710 = vmax.f32 %v1694, %v1706
    %v1711 = vmax.f32 %v1695, %v1705
    %v1712 = vmax.f32 %v1696, %v1708
    %1713 = vmatpush.msra.mxu0 %v1616
    %1714 = vmatpush.msra.mxu0 %v1615
    %1715 = vmatpush.msra.mxu0 %v1614
    %1716 = vmatpush.msra.mxu0 %v1613
    %1717 = vmatpush.msra.mxu0 %v1612
    %1718 = vmatpush.msra.mxu0 %v1611
    %1719 = vmatpush.msra.mxu0 %v1610
    %1720 = vmatpush.msra.mxu0 %v1609
    %1721 = vmatpush.msra.mxu0 %v1608
    %1722 = vmatpush.msra.mxu0 %v1607
    %1723 = vmatpush.msra.mxu0 %v1606
    %1724 = vmatpush.msra.mxu0 %v1605
    %1725 = vmatpush.msra.mxu0 %v1604
    %1726 = vmatpush.msra.mxu0 %v1603
    %1727 = vmatpush.msra.mxu0 %v1602
    %1728 = vmatpush.msra.mxu0 %v1601
    %1729 = vmatmul.f32.gmra.mxu0 %v1709
    %v1730 = vpop.f32.mrf.mxu0
    %v1731 = vadd.f32 0.0, %v1730
    %1732 = vdwg.mxu0
    %1733 = vmatpush.msra.mxu0 %v1632
    %1734 = vmatpush.msra.mxu0 %v1631
    %1735 = vmatpush.msra.mxu0 %v1630
    %1736 = vmatpush.msra.mxu0 %v1629
    %1737 = vmatpush.msra.mxu0 %v1628
    %1738 = vmatpush.msra.mxu0 %v1627
    %1739 = vmatpush.msra.mxu0 %v1626
    %1740 = vmatpush.msra.mxu0 %v1625
    %1741 = vmatpush.msra.mxu0 %v1624
    %1742 = vmatpush.msra.mxu0 %v1623
    %1743 = vmatpush.msra.mxu0 %v1622
    %1744 = vmatpush.msra.mxu0 %v1621
    %1745 = vmatpush.msra.mxu0 %v1620
    %1746 = vmatpush.msra.mxu0 %v1619
    %1747 = vmatpush.msra.mxu0 %v1618
    %1748 = vmatpush.msra.mxu0 %v1617
    %1749 = vmatmul.f32.gmra.mxu0 %v1710
    %v1750 = vpop.f32.mrf.mxu0
    %v1751 = vadd.f32 %v1731, %v1750
    %1752 = vdwg.mxu0
    %1753 = vmatpush.msra.mxu0 %v1648
    %1754 = vmatpush.msra.mxu0 %v1647
    %1755 = vmatpush.msra.mxu0 %v1646
    %1756 = vmatpush.msra.mxu0 %v1645
    %1757 = vmatpush.msra.mxu0 %v1644
    %1758 = vmatpush.msra.mxu0 %v1643
    %1759 = vmatpush.msra.mxu0 %v1642
    %1760 = vmatpush.msra.mxu0 %v1641
    %1761 = vmatpush.msra.mxu0 %v1640
    %1762 = vmatpush.msra.mxu0 %v1639
    %1763 = vmatpush.msra.mxu0 %v1638
    %1764 = vmatpush.msra.mxu0 %v1637
    %1765 = vmatpush.msra.mxu0 %v1636
    %1766 = vmatpush.msra.mxu0 %v1635
    %1767 = vmatpush.msra.mxu0 %v1634
    %1768 = vmatpush.msra.mxu0 %v1633
    %1769 = vmatmul.f32.gmra.mxu0 %v1711
    %v1770 = vpop.f32.mrf.mxu0
    %v1771 = vadd.f32 %v1751, %v1770
    %1772 = vdwg.mxu0
    %1773 = vmatpush.msra.mxu0 %v1664
    %1774 = vmatpush.msra.mxu0 %v1663
    %1775 = vmatpush.msra.mxu0 %v1662
    %1776 = vmatpush.msra.mxu0 %v1661
    %1777 = vmatpush.msra.mxu0 %v1660
    %1778 = vmatpush.msra.mxu0 %v1659
    %1779 = vmatpush.msra.mxu0 %v1658
    %1780 = vmatpush.msra.mxu0 %v1657
    %1781 = vmatpush.msra.mxu0 %v1656
    %1782 = vmatpush.msra.mxu0 %v1655
    %1783 = vmatpush.msra.mxu0 %v1654
    %1784 = vmatpush.msra.mxu0 %v1653
    %1785 = vmatpush.msra.mxu0 %v1652
    %1786 = vmatpush.msra.mxu0 %v1651
    %1787 = vmatpush.msra.mxu0 %v1650
    %1788 = vmatpush.msra.mxu0 %v1649
    %1789 = vmatmul.f32.gmra.mxu0 %v1712
    %v1790 = vpop.f32.mrf.mxu0
    %v1791 = vadd.f32 %v1771, %v1790
    %1792 = vdwg.mxu0
    %v1793 = vld [vmem:[%s6] sm:$0xff]
    %v1794 = vld [vmem:[%s6 + $0x8] sm:$0xff]
    %v1795 = vld [vmem:[%s6 + $0x10] sm:$0xff]
    %v1796 = vld [vmem:[%s6 + $0x18] sm:$0xff]
    %v1797 = vld [vmem:[#allocation4 + $0x30] sm:$0xff]
    %v1798 = vld [vmem:[#allocation4 + $0x38] sm:$0xff]
    %v1799 = vld [vmem:[#allocation4 + $0x40] sm:$0xff]
    %v1800 = vld [vmem:[#allocation4 + $0x48] sm:$0xff]
    %v1801 = vld [vmem:[%s4 + $0x48] sm:$0xff]
    %v1802 = vld [vmem:[%s4 + $0x50] sm:$0xff]
    %v1803 = vld [vmem:[%s4 + $0x58] sm:$0xff]
    %v1804 = vld [vmem:[%s4 + $0x60] sm:$0xff]
    %1806 = vset.pattern.permute.xlu0 0
    %1807 = vperm.xlu0 %1806, %v1801
    %v1808 = vpop.permute.xlu0 %1807
    %1811 = vset.pattern.permute.xlu0 0
    %1812 = vperm.xlu0 %1811, %v1802
    %v1813 = vpop.permute.xlu0 %1812
    %1816 = vset.pattern.permute.xlu0 0
    %1817 = vperm.xlu0 %1816, %v1803
    %v1818 = vpop.permute.xlu0 %1817
    %1821 = vset.pattern.permute.xlu0 0
    %1822 = vperm.xlu0 %1821, %v1804
    %v1823 = vpop.permute.xlu0 %1822
    %v1826 = vsel %vm408, %v1797, 0
    %v1829 = vsel %vm408, %v1798, 0
    %v1832 = vsel %vm408, %v1799, 0
    %v1835 = vsel %vm408, %v1800, 0
    %1837 = vmatpush.msra.mxu0 0.0
    %1838 = vmatpush.msra.mxu0 0.0
    %1839 = vmatpush.msra.mxu0 0.0
    %1840 = vmatpush.msra.mxu0 0.0
    %1841 = vmatpush.msra.mxu0 0.0
    %1842 = vmatpush.msra.mxu0 0.0
    %1843 = vmatpush.msra.mxu0 0.0
    %1844 = vmatpush.msra.mxu0 0.0
    %1845 = vmatpush.msra.mxu0 0.0
    %1846 = vmatpush.msra.mxu0 0.0
    %1847 = vmatpush.msra.mxu0 0.0
    %1848 = vmatpush.msra.mxu0 0.0
    %1849 = vmatpush.msra.mxu0 0.0
    %1850 = vmatpush.msra.mxu0 0.0
    %1851 = vmatpush.msra.mxu0 0.0
    %1852 = vmatpush.msra.mxu0 %v1791
    %1853 = vmatmul.f32.gmra.mxu0 %v1826
    %v1854 = vpop.f32.mrf.mxu0
    %v1855 = vadd.f32 %v1808, %v1854
    %1856 = vmatmul.f32.gmra.mxu0 %v1829
    %v1857 = vpop.f32.mrf.mxu0
    %v1858 = vadd.f32 %v1813, %v1857
    %1859 = vmatmul.f32.gmra.mxu0 %v1832
    %v1860 = vpop.f32.mrf.mxu0
    %v1861 = vadd.f32 %v1818, %v1860
    %1862 = vmatmul.f32.gmra.mxu0 %v1835
    %v1863 = vpop.f32.mrf.mxu0
    %v1864 = vadd.f32 %v1823, %v1863
    %1865 = vdwg.mxu0
    %v1866 = vmax.f32 %v1855, 0.0
    %v1867 = vmax.f32 %v1858, 0.0
    %v1868 = vmax.f32 %v1861, 0.0
    %v1869 = vmax.f32 %v1864, 0.0
    %1870 = vrot.lane.b32.xlu0 %v1866, 9
    %v1871 = vpop.permute.xlu0 %1870
    %v1872 = vperm.slane %v1793, 0
    %v1873 = vmul.f32 %v1871, %v1872
    %1874 = vrot.lane.b32.xlu0 %v1866, 8
    %v1875 = vpop.permute.xlu0 %1874
    %v1876 = vperm.slane %v1793, 1
    %v1877 = vmul.f32 %v1875, %v1876
    %1878 = vrot.lane.b32.xlu0 %v1866, 7
    %v1879 = vpop.permute.xlu0 %1878
    %v1880 = vperm.slane %v1793, 2
    %v1881 = vmul.f32 %v1879, %v1880
    %1882 = vrot.lane.b32.xlu0 %v1866, 1
    %v1883 = vpop.permute.xlu0 %1882
    %v1884 = vperm.slane %v1793, 3
    %v1885 = vmul.f32 %v1883, %v1884
    %1886 = vrot.lane.b32.xlu0 %v1866, 127
    %v1887 = vpop.permute.xlu0 %1886
    %v1888 = vperm.slane %v1793, 5
    %v1889 = vmul.f32 %v1887, %v1888
    %1890 = vrot.lane.b32.xlu0 %v1866, 121
    %v1891 = vpop.permute.xlu0 %1890
    %v1892 = vperm.slane %v1793, 6
    %v1893 = vmul.f32 %v1891, %v1892
    %1894 = vrot.lane.b32.xlu0 %v1866, 120
    %v1895 = vpop.permute.xlu0 %1894
    %v1896 = vperm.slane %v1793, 7
    %v1897 = vmul.f32 %v1895, %v1896
    %1898 = vrot.lane.b32.xlu0 %v1866, 119
    %v1899 = vpop.permute.xlu0 %1898
    %v1900 = vperm.slane %v1794, 0
    %v1901 = vmul.f32 %v1899, %v1900
    %v1902 = vld [vmem:[#allocation2 + $0x20] sm:$0xff]
    %v1903 = vld [vmem:[#allocation2 + $0x28] sm:$0xff]
    %v1904 = vld [vmem:[%s4 + $0x68] sm:$0xff]
    %v1905 = vld [vmem:[%s4 + $0x70] sm:$0xff]
    %1907 = vset.pattern.permute.xlu0 0
    %1908 = vperm.xlu0 %1907, %v1904
    %v1909 = vpop.permute.xlu0 %1908
    %1912 = vset.pattern.permute.xlu0 0
    %1913 = vperm.xlu0 %1912, %v1905
    %v1914 = vpop.permute.xlu0 %1913
    %v1917 = vsel %vm292, %v1902, 0
    %v1920 = vsel %vm292, %v1903, 0
    %1922 = vmatpush.msra.mxu0 0.0
    %1923 = vmatpush.msra.mxu0 0.0
    %1924 = vmatpush.msra.mxu0 0.0
    %1925 = vmatpush.msra.mxu0 0.0
    %1926 = vmatpush.msra.mxu0 0.0
    %1927 = vmatpush.msra.mxu0 0.0
    %1928 = vmatpush.msra.mxu0 0.0
    %1929 = vmatpush.msra.mxu0 %v1901
    %1930 = vmatpush.msra.mxu0 %v1897
    %1931 = vmatpush.msra.mxu0 %v1893
    %1932 = vmatpush.msra.mxu0 %v1889
    %1933 = vmatpush.msra.mxu0 %v1866
    %1934 = vmatpush.msra.mxu0 %v1885
    %1935 = vmatpush.msra.mxu0 %v1881
    %1936 = vmatpush.msra.mxu0 %v1877
    %1937 = vmatpush.msra.mxu0 %v1873
    %1938 = vmatmul.f32.gmra.mxu0 %v1917
    %v1939 = vpop.f32.mrf.mxu0
    %v1940 = vadd.f32 %v1909, %v1939
    %1941 = vmatmul.f32.gmra.mxu0 %v1920
    %v1942 = vpop.f32.mrf.mxu0
    %v1943 = vadd.f32 %v1914, %v1942
    %1944 = vdwg.mxu0
    %v1945 = vmax.f32 %v1940, 0.0
    %v1946 = vmax.f32 %v1943, 0.0
    %v1947 = vld [vmem:[#allocation4 + $0x50] sm:$0xff]
    %v1948 = vld [vmem:[#allocation4 + $0x58] sm:$0xff]
    %v1949 = vld [vmem:[%s4 + $0x78] sm:$0xff]
    %v1950 = vld [vmem:[%s4 + $0x80] sm:$0xff]
    %1952 = vset.pattern.permute.xlu0 0
    %1953 = vperm.xlu0 %1952, %v1949
    %v1954 = vpop.permute.xlu0 %1953
    %1957 = vset.pattern.permute.xlu0 0
    %1958 = vperm.xlu0 %1957, %v1950
    %v1959 = vpop.permute.xlu0 %1958
    %v1962 = vsel %vm408, %v1947, 0
    %v1965 = vsel %vm408, %v1948, 0
    %1967 = vmatpush.msra.mxu0 0.0
    %1968 = vmatpush.msra.mxu0 0.0
    %1969 = vmatpush.msra.mxu0 0.0
    %1970 = vmatpush.msra.mxu0 0.0
    %1971 = vmatpush.msra.mxu0 0.0
    %1972 = vmatpush.msra.mxu0 0.0
    %1973 = vmatpush.msra.mxu0 0.0
    %1974 = vmatpush.msra.mxu0 0.0
    %1975 = vmatpush.msra.mxu0 0.0
    %1976 = vmatpush.msra.mxu0 0.0
    %1977 = vmatpush.msra.mxu0 0.0
    %1978 = vmatpush.msra.mxu0 0.0
    %1979 = vmatpush.msra.mxu0 0.0
    %1980 = vmatpush.msra.mxu0 0.0
    %1981 = vmatpush.msra.mxu0 0.0
    %1982 = vmatpush.msra.mxu0 %v1867
    %1983 = vmatmul.f32.gmra.mxu0 %v1962
    %v1984 = vpop.f32.mrf.mxu0
    %v1985 = vadd.f32 %v1954, %v1984
    %1986 = vmatmul.f32.gmra.mxu0 %v1965
    %v1987 = vpop.f32.mrf.mxu0
    %v1988 = vadd.f32 %v1959, %v1987
    %1989 = vdwg.mxu0
    %v1990 = vmax.f32 %v1985, 0.0
    %v1991 = vmax.f32 %v1988, 0.0
    %v1992 = vadd.f32 %v1945, %v1990
    %v1993 = vadd.f32 %v1946, %v1991
    %1994 = vrot.lane.b32.xlu0 %v1868, 9
    %v1995 = vpop.permute.xlu0 %1994
    %v1996 = vmul.f32 %v1995, %v1872
    %1997 = vrot.lane.b32.xlu0 %v1868, 8
    %v1998 = vpop.permute.xlu0 %1997
    %v1999 = vmul.f32 %v1998, %v1876
    %2000 = vrot.lane.b32.xlu0 %v1868, 7
    %v2001 = vpop.permute.xlu0 %2000
    %v2002 = vmul.f32 %v2001, %v1880
    %2003 = vrot.lane.b32.xlu0 %v1868, 1
    %v2004 = vpop.permute.xlu0 %2003
    %v2005 = vmul.f32 %v2004, %v1884
    %2006 = vrot.lane.b32.xlu0 %v1868, 127
    %v2007 = vpop.permute.xlu0 %2006
    %v2008 = vmul.f32 %v2007, %v1888
    %2009 = vrot.lane.b32.xlu0 %v1868, 121
    %v2010 = vpop.permute.xlu0 %2009
    %v2011 = vmul.f32 %v2010, %v1892
    %2012 = vrot.lane.b32.xlu0 %v1868, 120
    %v2013 = vpop.permute.xlu0 %2012
    %v2014 = vmul.f32 %v2013, %v1896
    %2015 = vrot.lane.b32.xlu0 %v1868, 119
    %v2016 = vpop.permute.xlu0 %2015
    %v2017 = vmul.f32 %v2016, %v1900
    %v2018 = vld [vmem:[#allocation2 + $0x30] sm:$0xff]
    %v2019 = vld [vmem:[%s4 + $0x88] sm:$0xff]
    %2021 = vset.pattern.permute.xlu0 0
    %2022 = vperm.xlu0 %2021, %v2019
    %v2023 = vpop.permute.xlu0 %2022
    %v2026 = vsel %vm292, %v2018, 0
    %2028 = vmatpush.msra.mxu0 0.0
    %2029 = vmatpush.msra.mxu0 0.0
    %2030 = vmatpush.msra.mxu0 0.0
    %2031 = vmatpush.msra.mxu0 0.0
    %2032 = vmatpush.msra.mxu0 0.0
    %2033 = vmatpush.msra.mxu0 0.0
    %2034 = vmatpush.msra.mxu0 0.0
    %2035 = vmatpush.msra.mxu0 %v2017
    %2036 = vmatpush.msra.mxu0 %v2014
    %2037 = vmatpush.msra.mxu0 %v2011
    %2038 = vmatpush.msra.mxu0 %v2008
    %2039 = vmatpush.msra.mxu0 %v1868
    %2040 = vmatpush.msra.mxu0 %v2005
    %2041 = vmatpush.msra.mxu0 %v2002
    %2042 = vmatpush.msra.mxu0 %v1999
    %2043 = vmatpush.msra.mxu0 %v1996
    %2044 = vmatmul.f32.gmra.mxu0 %v2026
    %v2045 = vpop.f32.mrf.mxu0
    %v2046 = vadd.f32 %v2023, %v2045
    %2047 = vdwg.mxu0
    %v2048 = vmax.f32 %v2046, 0.0
    %2049 = vrot.lane.b32.xlu0 %v2048, 9
    %v2050 = vpop.permute.xlu0 %2049
    %v2051 = vmul.f32 %v2050, %v1872
    %2052 = vrot.lane.b32.xlu0 %v2048, 8
    %v2053 = vpop.permute.xlu0 %2052
    %v2054 = vmul.f32 %v2053, %v1876
    %2055 = vrot.lane.b32.xlu0 %v2048, 7
    %v2056 = vpop.permute.xlu0 %2055
    %v2057 = vmul.f32 %v2056, %v1880
    %2058 = vrot.lane.b32.xlu0 %v2048, 1
    %v2059 = vpop.permute.xlu0 %2058
    %v2060 = vmul.f32 %v2059, %v1884
    %2061 = vrot.lane.b32.xlu0 %v2048, 127
    %v2062 = vpop.permute.xlu0 %2061
    %v2063 = vmul.f32 %v2062, %v1888
    %2064 = vrot.lane.b32.xlu0 %v2048, 121
    %v2065 = vpop.permute.xlu0 %2064
    %v2066 = vmul.f32 %v2065, %v1892
    %2067 = vrot.lane.b32.xlu0 %v2048, 120
    %v2068 = vpop.permute.xlu0 %2067
    %v2069 = vmul.f32 %v2068, %v1896
    %2070 = vrot.lane.b32.xlu0 %v2048, 119
    %v2071 = vpop.permute.xlu0 %2070
    %v2072 = vmul.f32 %v2071, %v1900
    %v2073 = vld [vmem:[#allocation2 + $0x38] sm:$0xff]
    %v2074 = vld [vmem:[#allocation2 + $0x40] sm:$0xff]
    %v2075 = vld [vmem:[%s4 + $0x90] sm:$0xff]
    %v2076 = vld [vmem:[%s4 + $0x98] sm:$0xff]
    %2078 = vset.pattern.permute.xlu0 0
    %2079 = vperm.xlu0 %2078, %v2075
    %v2080 = vpop.permute.xlu0 %2079
    %2083 = vset.pattern.permute.xlu0 0
    %2084 = vperm.xlu0 %2083, %v2076
    %v2085 = vpop.permute.xlu0 %2084
    %v2088 = vsel %vm292, %v2073, 0
    %v2091 = vsel %vm292, %v2074, 0
    %2093 = vmatpush.msra.mxu0 0.0
    %2094 = vmatpush.msra.mxu0 0.0
    %2095 = vmatpush.msra.mxu0 0.0
    %2096 = vmatpush.msra.mxu0 0.0
    %2097 = vmatpush.msra.mxu0 0.0
    %2098 = vmatpush.msra.mxu0 0.0
    %2099 = vmatpush.msra.mxu0 0.0
    %2100 = vmatpush.msra.mxu0 %v2072
    %2101 = vmatpush.msra.mxu0 %v2069
    %2102 = vmatpush.msra.mxu0 %v2066
    %2103 = vmatpush.msra.mxu0 %v2063
    %2104 = vmatpush.msra.mxu0 %v2048
    %2105 = vmatpush.msra.mxu0 %v2060
    %2106 = vmatpush.msra.mxu0 %v2057
    %2107 = vmatpush.msra.mxu0 %v2054
    %2108 = vmatpush.msra.mxu0 %v2051
    %2109 = vmatmul.f32.gmra.mxu0 %v2088
    %v2110 = vpop.f32.mrf.mxu0
    %v2111 = vadd.f32 %v2080, %v2110
    %2112 = vmatmul.f32.gmra.mxu0 %v2091
    %v2113 = vpop.f32.mrf.mxu0
    %v2114 = vadd.f32 %v2085, %v2113
    %2115 = vdwg.mxu0
    %v2116 = vmax.f32 %v2111, 0.0
    %v2117 = vmax.f32 %v2114, 0.0
    %v2118 = vadd.f32 %v1992, %v2116
    %v2119 = vadd.f32 %v1993, %v2117
    %2120 = vrot.lane.b32.xlu0 %v1869, 9
    %v2121 = vpop.permute.xlu0 %2120
    %v2122 = vperm.slane %v1795, 0
    %v2123 = vadd.f32 %v2121, %v2122
    %v2124 = vmax.f32 %v1869, %v2123
    %2125 = vrot.lane.b32.xlu0 %v1869, 8
    %v2126 = vpop.permute.xlu0 %2125
    %v2127 = vperm.slane %v1795, 1
    %v2128 = vadd.f32 %v2126, %v2127
    %v2129 = vmax.f32 %v2124, %v2128
    %2130 = vrot.lane.b32.xlu0 %v1869, 7
    %v2131 = vpop.permute.xlu0 %2130
    %v2132 = vperm.slane %v1795, 2
    %v2133 = vadd.f32 %v2131, %v2132
    %v2134 = vmax.f32 %v2129, %v2133
    %2135 = vrot.lane.b32.xlu0 %v1869, 1
    %v2136 = vpop.permute.xlu0 %2135
    %v2137 = vperm.slane %v1795, 3
    %v2138 = vadd.f32 %v2136, %v2137
    %v2139 = vmax.f32 %v2134, %v2138
    %2140 = vrot.lane.b32.xlu0 %v1869, 127
    %v2141 = vpop.permute.xlu0 %2140
    %v2142 = vperm.slane %v1795, 5
    %v2143 = vadd.f32 %v2141, %v2142
    %v2144 = vmax.f32 %v2139, %v2143
    %2145 = vrot.lane.b32.xlu0 %v1869, 121
    %v2146 = vpop.permute.xlu0 %2145
    %v2147 = vperm.slane %v1795, 6
    %v2148 = vadd.f32 %v2146, %v2147
    %v2149 = vmax.f32 %v2144, %v2148
    %2150 = vrot.lane.b32.xlu0 %v1869, 120
    %v2151 = vpop.permute.xlu0 %2150
    %v2152 = vperm.slane %v1795, 7
    %v2153 = vadd.f32 %v2151, %v2152
    %v2154 = vmax.f32 %v2149, %v2153
    %2155 = vrot.lane.b32.xlu0 %v1869, 119
    %v2156 = vpop.permute.xlu0 %2155
    %v2157 = vperm.slane %v1796, 0
    %v2158 = vadd.f32 %v2156, %v2157
    %v2159 = vmax.f32 %v2154, %v2158
    %v2160 = vld [vmem:[#allocation4 + $0x60] sm:$0xff]
    %v2161 = vld [vmem:[#allocation4 + $0x68] sm:$0xff]
    %v2163 = vsel %vm408, %v2160, 0
    %v2166 = vsel %vm408, %v2161, 0
    %2168 = vmatpush.msra.mxu0 0.0
    %2169 = vmatpush.msra.mxu0 0.0
    %2170 = vmatpush.msra.mxu0 0.0
    %2171 = vmatpush.msra.mxu0 0.0
    %2172 = vmatpush.msra.mxu0 0.0
    %2173 = vmatpush.msra.mxu0 0.0
    %2174 = vmatpush.msra.mxu0 0.0
    %2175 = vmatpush.msra.mxu0 0.0
    %2176 = vmatpush.msra.mxu0 0.0
    %2177 = vmatpush.msra.mxu0 0.0
    %2178 = vmatpush.msra.mxu0 0.0
    %2179 = vmatpush.msra.mxu0 0.0
    %2180 = vmatpush.msra.mxu0 0.0
    %2181 = vmatpush.msra.mxu0 0.0
    %2182 = vmatpush.msra.mxu0 0.0
    %2183 = vmatpush.msra.mxu0 %v2159
    %2184 = vmatmul.f32.gmra.mxu0 %v2163
    %v2185 = vpop.f32.mrf.mxu0
    %v2186 = vadd.f32 0.0, %v2185
    %2187 = vmatmul.f32.gmra.mxu0 %v2166
    %v2188 = vpop.f32.mrf.mxu0
    %v2189 = vadd.f32 0.0, %v2188
    %2190 = vdwg.mxu0
    %v2191 = vadd.f32 %v2118, %v2186
    %v2192 = vadd.f32 %v2119, %v2189
    %v2193 = vld [vmem:[%s8] sm:$0xff]
    %v2194 = vld [vmem:[%s8 + $0x8] sm:$0xff]
    %v2195 = vld [vmem:[%s8 + $0x10] sm:$0xff]
    %v2196 = vld [vmem:[%s8 + $0x18] sm:$0xff]
    %v2197 = vld [vmem:[%s8 + $0x20] sm:$0xff]
    %v2198 = vld [vmem:[%s8 + $0x28] sm:$0xff]
    %v2199 = vld [vmem:[%s8 + $0x30] sm:$0xff]
    %v2200 = vld [vmem:[%s8 + $0x38] sm:$0xff]
    %v2201 = vld [vmem:[%s8 + $0x40] sm:$0xff]
    %v2202 = vld [vmem:[%s8 + $0x48] sm:$0xff]
    %v2203 = vld [vmem:[%s8 + $0x50] sm:$0xff]
    %v2204 = vld [vmem:[%s8 + $0x58] sm:$0xff]
    %v2205 = vld [vmem:[%s8 + $0x60] sm:$0xff]
    %v2206 = vld [vmem:[%s8 + $0x68] sm:$0xff]
    %v2207 = vld [vmem:[%s8 + $0x70] sm:$0xff]
    %v2208 = vld [vmem:[%s8 + $0x78] sm:$0xff]
    %2209 = vmatpush.msra.mxu0 %v2208
    %2210 = vmatpush.msra.mxu0 %v2207
    %2211 = vmatpush.msra.mxu0 %v2206
    %2212 = vmatpush.msra.mxu0 %v2205
    %2213 = vmatpush.msra.mxu0 %v2204
    %2214 = vmatpush.msra.mxu0 %v2203
    %2215 = vmatpush.msra.mxu0 %v2202
    %2216 = vmatpush.msra.mxu0 %v2201
    %2217 = vmatpush.msra.mxu0 %v2200
    %2218 = vmatpush.msra.mxu0 %v2199
    %2219 = vmatpush.msra.mxu0 %v2198
    %2220 = vmatpush.msra.mxu0 %v2197
    %2221 = vmatpush.msra.mxu0 %v2196
    %2222 = vmatpush.msra.mxu0 %v2195
    %2223 = vmatpush.msra.mxu0 %v2194
    %2224 = vmatpush.msra.mxu0 %v2193
    %2225 = vmatmul.f32.gmra.mxu0 %v2191
    %v2226 = vpop.f32.mrf.mxu0
    %v2227 = vadd.f32 0.0, %v2226
    %2228 = vmatmul.f32.gmra.mxu0 %v2192
    %v2229 = vpop.f32.mrf.mxu0
    %v2230 = vadd.f32 0.0, %v2229
    %2231 = vdwg.mxu0
    %v2232 = vld [vmem:[%s3] sm:$0xff]
    %v2233 = vld [vmem:[%s3 + $0x8] sm:$0xff]
    %v2234 = vld [vmem:[%s4 + $0xa0] sm:$0xff]
    %v2235 = vld [vmem:[%s4 + $0xa8] sm:$0xff]
    %2237 = vset.pattern.permute.xlu0 0
    %2238 = vperm.xlu0 %2237, %v2234
    %v2239 = vpop.permute.xlu0 %2238
    %2242 = vset.pattern.permute.xlu0 0
    %2243 = vperm.xlu0 %2242, %v2235
    %v2244 = vpop.permute.xlu0 %2243
    %vm2246 = vcmask 130048
    %v2248 = vsel %vm2246, %v2232, 0
    %v2251 = vsel %vm2246, %v2233, 0
    %2253 = vmatpush.msra.mxu0 0.0
    %2254 = vmatpush.msra.mxu0 0.0
    %2255 = vmatpush.msra.mxu0 0.0
    %2256 = vmatpush.msra.mxu0 0.0
    %2257 = vmatpush.msra.mxu0 0.0
    %2258 = vmatpush.msra.mxu0 0.0
    %2259 = vmatpush.msra.mxu0 0.0
    %2260 = vmatpush.msra.mxu0 0.0
    %2261 = vmatpush.msra.mxu0 0.0
    %2262 = vmatpush.msra.mxu0 0.0
    %2263 = vmatpush.msra.mxu0 0.0
    %2264 = vmatpush.msra.mxu0 0.0
    %2265 = vmatpush.msra.mxu0 0.0
    %2266 = vmatpush.msra.mxu0 0.0
    %2267 = vmatpush.msra.mxu0 %v2230
    %2268 = vmatpush.msra.mxu0 %v2227
    %2269 = vmatmul.f32.gmra.mxu0 %v2248
    %v2270 = vpop.f32.mrf.mxu0
    %v2271 = vadd.f32 %v2239, %v2270
    %2272 = vmatmul.f32.gmra.mxu0 %v2251
    %v2273 = vpop.f32.mrf.mxu0
    %v2274 = vadd.f32 %v2244, %v2273
    %2275 = vdwg.mxu0
    %vm2276 = vcmask 15360
    %2277 = vst.msk [vmem:[%s9] sm:$0xff] %vm2276, %v2271
    %2278 = vst.msk [vmem:[%s9 + $0x8] sm:$0xff] %vm2276, %v2274
    // Predicated region
    $region54: #{_lambda_.1} parent=1 // pred_check
      _
    $region55: #{_lambda_.1} parent=1 // pred_check_branch
      %2280 = sbr.rel (0) target = $region57
    $region56: #{_lambda_.1} parent=1 // pred_region
      _
    $region57: #{_lambda_.1} parent=1 // pred_fallthru
      _
    // Predicated region
    $region58: #{_lambda_.1} parent=1 // pred_check
      _
    $region59: #{_lambda_.1} parent=1 // pred_check_branch
      %2282 = sbr.rel (0) target = $region61
    $region60: #{_lambda_.1} parent=1 // pred_region
      _
    $region61: #{_lambda_.1} parent=1 // pred_fallthru
      _
    %2283 = vsyncpa [#allocation3], 1
    %2284 = vsyncpa [#allocation5], 1
    %2285 = vsyncpa [#allocation8], 1

</llo_original>
